<compile_context>
chip_gen: v6e
topology: v6e:2x2x1
jax: 0.10.0
libtpu: 0.0.40
codegen_flags: <defaults>
</compile_context>

<pallas_src>
import math
import functools

import jax
import jax.numpy as jnp
from jax import lax
from jax.experimental import pallas as pl
from jax.experimental.pallas import tpu as pltpu


# ----------------------------- in-kernel helpers -----------------------------

def _layernorm(x, w, b, eps=1e-6):
    # matches torch.nn.LayerNorm (biased variance), eps=1e-6
    mu = jnp.mean(x, axis=-1, keepdims=True)
    var = jnp.mean((x - mu) ** 2, axis=-1, keepdims=True)
    return (x - mu) * lax.rsqrt(var + eps) * w + b


def _erf_approx(x):
    # Abramowitz & Stegun 7.1.26 rational approximation, |abs err| < 1.5e-7.
    # exp + approx reciprocal both live on the EUP slot (off the VALU).
    a1, a2, a3, a4, a5 = 0.254829592, -0.284496736, 1.421413741, -1.453152027, 1.061405429
    p = 0.3275911
    ax = jnp.abs(x)
    t = pl.reciprocal(1.0 + p * ax, approx=True)
    y = 1.0 - (((((a5 * t + a4) * t) + a3) * t + a2) * t + a1) * t * jnp.exp(-ax * ax)
    return jnp.where(x >= 0, y, -y)


def _gelu_exact(x):
    # PyTorch F.gelu default ("none") = 0.5 * x * (1 + erf(x / sqrt(2)))
    return 0.5 * x * (1.0 + _erf_approx(x * 0.7071067811865476))


# --------------------------------- kernel ------------------------------------

def fused_vit_kernel(patches_ref,               # [N, C*p*p]  (per batch element)
                     pw_ref, pb_ref,            # [C*p*p, D], [1, D]
                     cls_ref, pos_ref,          # [1, D], [S, D]
                     ln1w_ref, ln1b_ref,        # [L, 1, D]
                     qkvw_ref, qkvb_ref,        # [L, D, 3D], [L, 1, 3D]
                     wo_ref, bo_ref,            # [L, D, D], [L, 1, D]
                     ln2w_ref, ln2b_ref,        # [L, 1, D]
                     w1_ref, b1_ref,            # [L, D, mlp], [L, 1, mlp]
                     w2_ref, b2_ref,            # [L, mlp, D], [L, 1, D]
                     encw_ref, encb_ref,        # [1, D]
                     o_ref,                     # [S, D]  (per batch element)
                     x_scr,                     # VMEM scratch [S, D] f32
                     *, num_heads, num_layers):
    S, D = x_scr.shape
    H = num_heads
    hd = D // H
    scale = 1.0 / math.sqrt(hd)

    # ---- Embeddings: patch "conv" matmul + cls + pos, assembled with direct
    #      slice stores (no sublane concatenate/relayout). Dropout: inference. ----
    emb = jnp.dot(patches_ref[...], pw_ref[...],
                  preferred_element_type=jnp.float32) + pb_ref[...]          # [N, D]
    x_scr[0:1, :] = cls_ref[...] + pos_ref[0:1, :]
    x_scr[1:, :] = emb + pos_ref[1:, :]

    # ---- all transformer layers inside one grid step (weights VMEM-resident) ----
    def layer_body(l, carry):
        x = x_scr[...]                                    # [S, D] f32

        # attention (pre-LN), fused QKV projection
        xn = _layernorm(x, ln1w_ref[l], ln1b_ref[l])
        qkv = jnp.dot(xn, qkvw_ref[l],
                      preferred_element_type=jnp.float32) + qkvb_ref[l]      # [S, 3D]

        ctx_parts = []
        # hd=8 is too narrow for lane-dense batched-head MXU tiles at this size;
        # keep a short static head loop and fuse the heads back with ONE Wo matmul.
        for h in range(H):
            q_h = qkv[:, h * hd:(h + 1) * hd]             # [S, hd]
            k_h = qkv[:, D + h * hd:D + (h + 1) * hd]
            v_h = qkv[:, 2 * D + h * hd:2 * D + (h + 1) * hd]
            s = lax.dot_general(q_h, k_h, (((1,), (1,)), ((), ())),
                                preferred_element_type=jnp.float32) * scale  # [S, S]
            s = s - jnp.max(s, axis=-1, keepdims=True)
            e = jnp.exp(s)
            p = e * pl.reciprocal(jnp.sum(e, axis=-1, keepdims=True), approx=True)
            ctx_parts.append(jnp.dot(p, v_h, preferred_element_type=jnp.float32))
        ctx = jnp.concatenate(ctx_parts, axis=-1)         # [S, D]

        attn_out = jnp.dot(ctx, wo_ref[l],
                           preferred_element_type=jnp.float32) + bo_ref[l]   # [S, D]
        x = x + attn_out                                  # residual

        # MLP (pre-LN), exact-erf GELU
        xn2 = _layernorm(x, ln2w_ref[l], ln2b_ref[l])
        h1 = _gelu_exact(jnp.dot(xn2, w1_ref[l],
                                 preferred_element_type=jnp.float32) + b1_ref[l])
        h2 = jnp.dot(h1, w2_ref[l],
                     preferred_element_type=jnp.float32) + b2_ref[l]
        x_scr[...] = x + h2                               # residual; dropout: identity
        return carry

    lax.fori_loop(0, num_layers, layer_body, 0, unroll=True)

    # ---- final encoder LayerNorm ----
    o_ref[...] = _layernorm(x_scr[...], encw_ref[...], encb_ref[...]).astype(o_ref.dtype)


# ------------------------------- wrapper --------------------------------------

def transformer_forward(x_nchw, params, cfg):
    """Full forward: Embeddings -> Encoder.  Returns (encoded, attn_weights)."""
    B, C, Himg, Wimg = x_nchw.shape
    p = cfg["patch"]
    D = cfg["hidden_size"]
    L = cfg["num_layers"]
    M = cfg["mlp_dim"]
    Hh = cfg["num_heads"]
    hd = D // Hh
    gh, gw = Himg // p, Wimg // p
    N = gh * gw
    S = N + 1
    P = C * p * p

    # Patch extraction glue (Conv2d k=stride=p): [B,C,H,W] -> [B, N, C*p*p],
    # patch order row-major, inner order (c, ph, pw) to match the flattened conv weight.
    xp = (x_nchw.reshape(B, C, gh, p, gw, p)
                .transpose(0, 2, 4, 1, 3, 5)
                .reshape(B, N, P))

    st = params["stacked"]

    # Inputs 1..18: whole-array blocks with a constant block index -> fetched once
    # into VMEM and kept resident across the (parallel) batch grid axis.
    in_arrays = [
        params["patch_w"], params["patch_b"],
        params["cls_token"], params["pos_embed"],
        st["ln1_w"], st["ln1_b"],
        st["qkv_w"], st["qkv_b"],
        st["wo"], st["bo"],
        st["ln2_w"], st["ln2_b"],
        st["w1"], st["b1"],
        st["w2"], st["b2"],
        params["enc_ln_w"], params["enc_ln_b"],
    ]

    def whole(arr):
        shp = arr.shape
        return pl.BlockSpec(shp, lambda b, _n=len(shp): (0,) * _n)

    in_specs = [pl.BlockSpec((None, N, P), lambda b: (b, 0, 0))] + [whole(a) for a in in_arrays]

    # Explicit VMEM budget: resident weight blocks + per-step activation blocks,
    # with double-buffering / padding headroom.
    weight_bytes = sum(int(a.size) * a.dtype.itemsize for a in in_arrays)
    step_bytes = (N * P + 2 * S * D) * 4
    vmem_limit = int(min(max(4 * (weight_bytes + step_bytes) + (2 << 20), 16 << 20),
                         100 << 20))

    # Advisory cost estimate for XLA scheduling around the fused call.
    flops_layer = (2 * S * D * 3 * D          # fused qkv
                   + Hh * (4 * S * S * hd)    # scores + ctx per head
                   + 2 * S * D * D            # out projection
                   + 4 * S * D * M)           # mlp fc1 + fc2
    cost = pl.CostEstimate(
        flops=int(B * (2 * N * P * D + L * flops_layer)),
        transcendentals=int(B * (L * (Hh * (S * S + S) + 2 * S * M) + (2 * L + 1) * S)),
        bytes_accessed=int(weight_bytes + B * (N * P + S * D) * 4),
    )

    out = pl.pallas_call(
        functools.partial(fused_vit_kernel, num_heads=Hh, num_layers=L),
        out_shape=jax.ShapeDtypeStruct((B, S, D), jnp.float32),
        grid=(B,),
        in_specs=in_specs,
        out_specs=pl.BlockSpec((None, S, D), lambda b: (b, 0, 0)),
        scratch_shapes=[pltpu.VMEM((S, D), jnp.float32)],
        compiler_params=pltpu.CompilerParams(
            dimension_semantics=("parallel",),
            vmem_limit_bytes=vmem_limit),
        cost_estimate=cost,
    )(xp, *in_arrays)

    attn_weights = []   # vis=False -> PyTorch returns [] (weights=None per block)
    return out, attn_weights


# ---------------------------- parameter init ----------------------------------

def init_params(key, cfg, img_size, in_channels):
    D, p, mlp, L = cfg["hidden_size"], cfg["patch"], cfg["mlp_dim"], cfg["num_layers"]
    n_patches = (img_size // p) ** 2
    kit = iter(jax.random.split(key, 2 + 12 * L))

    def nrm(shape, scale=0.02):
        return scale * jax.random.normal(next(kit), shape, jnp.float32)

    params = {
        # Conv2d weight is [D, C, p, p] in torch; store flattened + transposed for matmul.
        "patch_w": nrm((D, in_channels, p, p)).reshape(D, -1).T,        # [C*p*p, D]
        "patch_b": nrm((1, D)),
        "cls_token": jnp.zeros((1, D), jnp.float32),                    # torch.zeros init
        "pos_embed": jnp.zeros((n_patches + 1, D), jnp.float32),        # torch.zeros init
        "enc_ln_w": jnp.ones((1, D), jnp.float32),
        "enc_ln_b": jnp.zeros((1, D), jnp.float32),
    }

    acc = {k: [] for k in ["ln1_w", "ln1_b", "qkv_w", "qkv_b", "wo", "bo",
                           "ln2_w", "ln2_b", "w1", "b1", "w2", "b2"]}
    for _ in range(L):
        wq, bq = nrm((D, D)), nrm((1, D))
        wk, bk = nrm((D, D)), nrm((1, D))
        wv, bv = nrm((D, D)), nrm((1, D))
        acc["ln1_w"].append(jnp.ones((1, D), jnp.float32))
        acc["ln1_b"].append(jnp.zeros((1, D), jnp.float32))
        acc["qkv_w"].append(jnp.concatenate([wq, wk, wv], axis=1))      # [D, 3D]
        acc["qkv_b"].append(jnp.concatenate([bq, bk, bv], axis=1))      # [1, 3D]
        acc["wo"].append(nrm((D, D)))
        acc["bo"].append(nrm((1, D)))
        acc["ln2_w"].append(jnp.ones((1, D), jnp.float32))
        acc["ln2_b"].append(jnp.zeros((1, D), jnp.float32))
        acc["w1"].append(nrm((D, mlp)))
        acc["b1"].append(1e-6 * jax.random.normal(next(kit), (1, mlp), jnp.float32))
        acc["w2"].append(nrm((mlp, D)))
        acc["b2"].append(1e-6 * jax.random.normal(next(kit), (1, D), jnp.float32))
    params["stacked"] = {k: jnp.stack(v, axis=0) for k, v in acc.items()}
    return params


# ----------------------------------- main --------------------------------------

if __name__ == "__main__":
    # config: hidden=32, heads=4 (head_dim=8), mlp=64, 2 layers, 4x4 patches on 16x16 image
    cfg = dict(hidden_size=32, num_heads=4, mlp_dim=64, num_layers=2, patch=4)
    img_size, in_channels, B = 16, 3, 2

    key = jax.random.PRNGKey(0)
    pkey, xkey = jax.random.split(key)
    params = init_params(pkey, cfg, img_size, in_channels)
    x = jax.random.normal(xkey, (B, in_channels, img_size, img_size), jnp.float32)

    fwd = jax.jit(functools.partial(transformer_forward, cfg=cfg))
    encoded, attn_weights = fwd(x, params)
    encoded = jax.block_until_ready(encoded)

    S = (img_size // cfg["patch"]) ** 2 + 1          # 17 (16 patches + cls)
    assert encoded.shape == (B, S, cfg["hidden_size"])
    assert bool(jnp.all(jnp.isfinite(encoded)))
    assert list(attn_weights) == []                  # vis=False
    print("KERNEL_OK")
</pallas_src>

<mosaic_0001>
module attributes {stable_mosaic.version = 11 : i64} {
  func.func @fused_vit_kernel(%arg0: i32, %arg1: memref<1x16x48xf32, #tpu.memory_space<vmem>>, %arg2: memref<48x32xf32, #tpu.memory_space<vmem>>, %arg3: memref<1x32xf32, #tpu.memory_space<vmem>>, %arg4: memref<1x32xf32, #tpu.memory_space<vmem>>, %arg5: memref<17x32xf32, #tpu.memory_space<vmem>>, %arg6: memref<2x1x32xf32, #tpu.memory_space<vmem>>, %arg7: memref<2x1x32xf32, #tpu.memory_space<vmem>>, %arg8: memref<2x32x96xf32, #tpu.memory_space<vmem>>, %arg9: memref<2x1x96xf32, #tpu.memory_space<vmem>>, %arg10: memref<2x32x32xf32, #tpu.memory_space<vmem>>, %arg11: memref<2x1x32xf32, #tpu.memory_space<vmem>>, %arg12: memref<2x1x32xf32, #tpu.memory_space<vmem>>, %arg13: memref<2x1x32xf32, #tpu.memory_space<vmem>>, %arg14: memref<2x32x64xf32, #tpu.memory_space<vmem>>, %arg15: memref<2x1x64xf32, #tpu.memory_space<vmem>>, %arg16: memref<2x64x32xf32, #tpu.memory_space<vmem>>, %arg17: memref<2x1x32xf32, #tpu.memory_space<vmem>>, %arg18: memref<1x32xf32, #tpu.memory_space<vmem>>, %arg19: memref<1x32xf32, #tpu.memory_space<vmem>>, %arg20: memref<1x17x32xf32, #tpu.memory_space<vmem>>, %arg21: memref<17x32xf32, #tpu.memory_space<vmem>>) attributes {dimension_semantics = [#tpu.dimension_semantics<parallel>], iteration_bounds = array<i64: 2>, scalar_prefetch = 0 : i64, scratch_operands = 1 : i64, tpu.core_type = #tpu.core_type<tc>, window_params = [{transform_indices = @transform_0, window_bounds = array<i64: 1, 16, 48>}, {pipeline_mode = #tpu.pipeline_mode<synchronous>, transform_indices = @transform_1, window_bounds = array<i64: 48, 32>}, {pipeline_mode = #tpu.pipeline_mode<synchronous>, transform_indices = @transform_2, window_bounds = array<i64: 1, 32>}, {pipeline_mode = #tpu.pipeline_mode<synchronous>, transform_indices = @transform_3, window_bounds = array<i64: 1, 32>}, {pipeline_mode = #tpu.pipeline_mode<synchronous>, transform_indices = @transform_4, window_bounds = array<i64: 17, 32>}, {pipeline_mode = #tpu.pipeline_mode<synchronous>, transform_indices = @transform_5, window_bounds = array<i64: 2, 1, 32>}, {pipeline_mode = #tpu.pipeline_mode<synchronous>, transform_indices = @transform_6, window_bounds = array<i64: 2, 1, 32>}, {pipeline_mode = #tpu.pipeline_mode<synchronous>, transform_indices = @transform_7, window_bounds = array<i64: 2, 32, 96>}, {pipeline_mode = #tpu.pipeline_mode<synchronous>, transform_indices = @transform_8, window_bounds = array<i64: 2, 1, 96>}, {pipeline_mode = #tpu.pipeline_mode<synchronous>, transform_indices = @transform_9, window_bounds = array<i64: 2, 32, 32>}, {pipeline_mode = #tpu.pipeline_mode<synchronous>, transform_indices = @transform_10, window_bounds = array<i64: 2, 1, 32>}, {pipeline_mode = #tpu.pipeline_mode<synchronous>, transform_indices = @transform_11, window_bounds = array<i64: 2, 1, 32>}, {pipeline_mode = #tpu.pipeline_mode<synchronous>, transform_indices = @transform_12, window_bounds = array<i64: 2, 1, 32>}, {pipeline_mode = #tpu.pipeline_mode<synchronous>, transform_indices = @transform_13, window_bounds = array<i64: 2, 32, 64>}, {pipeline_mode = #tpu.pipeline_mode<synchronous>, transform_indices = @transform_14, window_bounds = array<i64: 2, 1, 64>}, {pipeline_mode = #tpu.pipeline_mode<synchronous>, transform_indices = @transform_15, window_bounds = array<i64: 2, 64, 32>}, {pipeline_mode = #tpu.pipeline_mode<synchronous>, transform_indices = @transform_16, window_bounds = array<i64: 2, 1, 32>}, {pipeline_mode = #tpu.pipeline_mode<synchronous>, transform_indices = @transform_17, window_bounds = array<i64: 1, 32>}, {pipeline_mode = #tpu.pipeline_mode<synchronous>, transform_indices = @transform_18, window_bounds = array<i64: 1, 32>}, {transform_indices = @transform_19, window_bounds = array<i64: 1, 17, 32>}]} {
    %c0 = arith.constant 0 : index
    %c0_0 = arith.constant 0 : index
    %c0_1 = arith.constant 0 : index
    %0 = vector.load %arg1[%c0, %c0_0, %c0_1] : memref<1x16x48xf32, #tpu.memory_space<vmem>>, vector<1x16x48xf32>
    %1 = vector.shape_cast %0 : vector<1x16x48xf32> to vector<16x48xf32>
    %c0_2 = arith.constant 0 : index
    %c0_3 = arith.constant 0 : index
    %2 = vector.load %arg2[%c0_2, %c0_3] : memref<48x32xf32, #tpu.memory_space<vmem>>, vector<48x32xf32>
    %cst = arith.constant dense<0.000000e+00> : vector<16x32xf32>
    %3 = tpu.matmul %1, %2, %cst {dimension_numbers = #tpu.dot_dimension_numbers<[1], [0], [0], [1], [0, 0, 1, 1], [], []>} : vector<16x48xf32>, vector<48x32xf32>, vector<16x32xf32> -> vector<16x32xf32>
    %c0_4 = arith.constant 0 : index
    %c0_5 = arith.constant 0 : index
    %4 = vector.load %arg3[%c0_4, %c0_5] : memref<1x32xf32, #tpu.memory_space<vmem>>, vector<1x32xf32>
    %5 = vector.broadcast %4 : vector<1x32xf32> to vector<16x32xf32>
    %6 = arith.addf %3, %5 : vector<16x32xf32>
    %c0_6 = arith.constant 0 : index
    %c0_7 = arith.constant 0 : index
    %7 = vector.load %arg4[%c0_6, %c0_7] : memref<1x32xf32, #tpu.memory_space<vmem>>, vector<1x32xf32>
    %c0_8 = arith.constant 0 : index
    %c0_9 = arith.constant 0 : index
    %8 = vector.load %arg5[%c0_8, %c0_9] : memref<17x32xf32, #tpu.memory_space<vmem>>, vector<1x32xf32>
    %9 = arith.addf %7, %8 : vector<1x32xf32>
    %c0_10 = arith.constant 0 : index
    %c0_11 = arith.constant 0 : index
    %10 = vector.load %arg21[%c0_10, %c0_11] : memref<17x32xf32, #tpu.memory_space<vmem>>, vector<1x32xf32>
    tpu.vector_store %arg21[%c0_10, %c0_11], %9 {strides = array<i32>} : memref<17x32xf32, #tpu.memory_space<vmem>>, vector<1x32xf32>,
    %c1 = arith.constant 1 : index
    %c0_12 = arith.constant 0 : index
    %11 = vector.load %arg5[%c1, %c0_12] : memref<17x32xf32, #tpu.memory_space<vmem>>, vector<16x32xf32>
    %12 = arith.addf %6, %11 : vector<16x32xf32>
    %c1_13 = arith.constant 1 : index
    %c0_14 = arith.constant 0 : index
    %13 = vector.load %arg21[%c1_13, %c0_14] : memref<17x32xf32, #tpu.memory_space<vmem>>, vector<16x32xf32>
    tpu.vector_store %arg21[%c1_13, %c0_14], %12 {strides = array<i32>} : memref<17x32xf32, #tpu.memory_space<vmem>>, vector<16x32xf32>,
    %c0_i32 = arith.constant 0 : i32
    %c0_15 = arith.constant 0 : index
    %c0_16 = arith.constant 0 : index
    %14 = vector.load %arg21[%c0_15, %c0_16] : memref<17x32xf32, #tpu.memory_space<vmem>>, vector<17x32xf32>
    %15 = arith.index_cast %c0_i32 : i32 to index
    %c0_17 = arith.constant 0 : index
    %c0_18 = arith.constant 0 : index
    %16 = vector.load %arg6[%15, %c0_17, %c0_18] : memref<2x1x32xf32, #tpu.memory_space<vmem>>, vector<1x1x32xf32>
    %17 = vector.shape_cast %16 : vector<1x1x32xf32> to vector<1x32xf32>
    %18 = arith.index_cast %c0_i32 : i32 to index
    %c0_19 = arith.constant 0 : index
    %c0_20 = arith.constant 0 : index
    %19 = vector.load %arg7[%18, %c0_19, %c0_20] : memref<2x1x32xf32, #tpu.memory_space<vmem>>, vector<1x1x32xf32>
    %20 = vector.shape_cast %19 : vector<1x1x32xf32> to vector<1x32xf32>
    %cst_21 = arith.constant dense<0.000000e+00> : vector<17xf32>
    %21 = vector.multi_reduction <add>, %14, %cst_21 [1] : vector<17x32xf32> to vector<17xf32>
    %22 = vector.shape_cast %21 : vector<17xf32> to vector<17x1xf32>
    %cst_22 = arith.constant 3.200000e+01 : f32
    %23 = vector.broadcast %cst_22 : f32 to vector<17x1xf32>
    %24 = arith.divf %22, %23 : vector<17x1xf32>
    %25 = vector.broadcast %24 : vector<17x1xf32> to vector<17x32xf32>
    %26 = arith.subf %14, %25 : vector<17x32xf32>
    %27 = arith.mulf %26, %26 : vector<17x32xf32>
    %cst_23 = arith.constant dense<0.000000e+00> : vector<17xf32>
    %28 = vector.multi_reduction <add>, %27, %cst_23 [1] : vector<17x32xf32> to vector<17xf32>
    %29 = vector.shape_cast %28 : vector<17xf32> to vector<17x1xf32>
    %cst_24 = arith.constant 3.200000e+01 : f32
    %30 = vector.broadcast %cst_24 : f32 to vector<17x1xf32>
    %31 = arith.divf %29, %30 : vector<17x1xf32>
    %32 = vector.broadcast %24 : vector<17x1xf32> to vector<17x32xf32>
    %33 = arith.subf %14, %32 : vector<17x32xf32>
    %cst_25 = arith.constant 9.99999997E-7 : f32
    %34 = vector.broadcast %cst_25 : f32 to vector<17x1xf32>
    %35 = arith.addf %31, %34 : vector<17x1xf32>
    %36 = math.rsqrt %35 : vector<17x1xf32>
    %37 = vector.broadcast %36 : vector<17x1xf32> to vector<17x32xf32>
    %38 = arith.mulf %33, %37 : vector<17x32xf32>
    %39 = vector.broadcast %17 : vector<1x32xf32> to vector<17x32xf32>
    %40 = arith.mulf %38, %39 : vector<17x32xf32>
    %41 = vector.broadcast %20 : vector<1x32xf32> to vector<17x32xf32>
    %42 = arith.addf %40, %41 : vector<17x32xf32>
    %43 = arith.index_cast %c0_i32 : i32 to index
    %c0_26 = arith.constant 0 : index
    %c0_27 = arith.constant 0 : index
    %44 = vector.load %arg8[%43, %c0_26, %c0_27] : memref<2x32x96xf32, #tpu.memory_space<vmem>>, vector<1x32x96xf32>
    %45 = vector.shape_cast %44 : vector<1x32x96xf32> to vector<32x96xf32>
    %cst_28 = arith.constant dense<0.000000e+00> : vector<17x96xf32>
    %46 = tpu.matmul %42, %45, %cst_28 {dimension_numbers = #tpu.dot_dimension_numbers<[1], [0], [0], [1], [0, 0, 1, 1], [], []>} : vector<17x32xf32>, vector<32x96xf32>, vector<17x96xf32> -> vector<17x96xf32>
    %47 = arith.index_cast %c0_i32 : i32 to index
    %c0_29 = arith.constant 0 : index
    %c0_30 = arith.constant 0 : index
    %48 = vector.load %arg9[%47, %c0_29, %c0_30] : memref<2x1x96xf32, #tpu.memory_space<vmem>>, vector<1x1x96xf32>
    %49 = vector.shape_cast %48 : vector<1x1x96xf32> to vector<1x96xf32>
    %50 = vector.broadcast %49 : vector<1x96xf32> to vector<17x96xf32>
    %51 = arith.addf %46, %50 : vector<17x96xf32>
    %52 = vector.extract_strided_slice %51 {offsets = [0, 0], sizes = [17, 8], strides = [1, 1]} : vector<17x96xf32> to vector<17x8xf32>
    %53 = vector.extract_strided_slice %51 {offsets = [0, 32], sizes = [17, 8], strides = [1, 1]} : vector<17x96xf32> to vector<17x8xf32>
    %54 = vector.extract_strided_slice %51 {offsets = [0, 64], sizes = [17, 8], strides = [1, 1]} : vector<17x96xf32> to vector<17x8xf32>
    %cst_31 = arith.constant dense<0.000000e+00> : vector<17x17xf32>
    %55 = tpu.matmul %52, %53, %cst_31 {dimension_numbers = #tpu.dot_dimension_numbers<[1], [1], [0], [0], [0, 0, 1, 0], [], []>} : vector<17x8xf32>, vector<17x8xf32>, vector<17x17xf32> -> vector<17x17xf32>
    %cst_32 = arith.constant 0.353553385 : f32
    %56 = vector.broadcast %cst_32 : f32 to vector<17x17xf32>
    %57 = arith.mulf %55, %56 : vector<17x17xf32>
    %cst_33 = arith.constant dense<0xFF800000> : vector<17xf32>
    %58 = vector.multi_reduction <maximumf>, %57, %cst_33 [1] : vector<17x17xf32> to vector<17xf32>
    %59 = vector.shape_cast %58 : vector<17xf32> to vector<17x1xf32>
    %60 = vector.broadcast %59 : vector<17x1xf32> to vector<17x17xf32>
    %61 = arith.subf %57, %60 : vector<17x17xf32>
    %62 = math.exp %61 : vector<17x17xf32>
    %cst_34 = arith.constant dense<0.000000e+00> : vector<17xf32>
    %63 = vector.multi_reduction <add>, %62, %cst_34 [1] : vector<17x17xf32> to vector<17xf32>
    %64 = vector.shape_cast %63 : vector<17xf32> to vector<17x1xf32>
    %65 = tpu.reciprocal %64 {approx = true} : vector<17x1xf32> -> vector<17x1xf32>
    %66 = vector.broadcast %65 : vector<17x1xf32> to vector<17x17xf32>
    %67 = arith.mulf %62, %66 : vector<17x17xf32>
    %cst_35 = arith.constant dense<0.000000e+00> : vector<17x8xf32>
    %68 = tpu.matmul %67, %54, %cst_35 {dimension_numbers = #tpu.dot_dimension_numbers<[1], [0], [0], [1], [0, 0, 1, 1], [], []>} : vector<17x17xf32>, vector<17x8xf32>, vector<17x8xf32> -> vector<17x8xf32>
    %69 = vector.extract_strided_slice %51 {offsets = [0, 8], sizes = [17, 8], strides = [1, 1]} : vector<17x96xf32> to vector<17x8xf32>
    %70 = vector.extract_strided_slice %51 {offsets = [0, 40], sizes = [17, 8], strides = [1, 1]} : vector<17x96xf32> to vector<17x8xf32>
    %71 = vector.extract_strided_slice %51 {offsets = [0, 72], sizes = [17, 8], strides = [1, 1]} : vector<17x96xf32> to vector<17x8xf32>
    %cst_36 = arith.constant dense<0.000000e+00> : vector<17x17xf32>
    %72 = tpu.matmul %69, %70, %cst_36 {dimension_numbers = #tpu.dot_dimension_numbers<[1], [1], [0], [0], [0, 0, 1, 0], [], []>} : vector<17x8xf32>, vector<17x8xf32>, vector<17x17xf32> -> vector<17x17xf32>
    %cst_37 = arith.constant 0.353553385 : f32
    %73 = vector.broadcast %cst_37 : f32 to vector<17x17xf32>
    %74 = arith.mulf %72, %73 : vector<17x17xf32>
    %cst_38 = arith.constant dense<0xFF800000> : vector<17xf32>
    %75 = vector.multi_reduction <maximumf>, %74, %cst_38 [1] : vector<17x17xf32> to vector<17xf32>
    %76 = vector.shape_cast %75 : vector<17xf32> to vector<17x1xf32>
    %77 = vector.broadcast %76 : vector<17x1xf32> to vector<17x17xf32>
    %78 = arith.subf %74, %77 : vector<17x17xf32>
    %79 = math.exp %78 : vector<17x17xf32>
    %cst_39 = arith.constant dense<0.000000e+00> : vector<17xf32>
    %80 = vector.multi_reduction <add>, %79, %cst_39 [1] : vector<17x17xf32> to vector<17xf32>
    %81 = vector.shape_cast %80 : vector<17xf32> to vector<17x1xf32>
    %82 = tpu.reciprocal %81 {approx = true} : vector<17x1xf32> -> vector<17x1xf32>
    %83 = vector.broadcast %82 : vector<17x1xf32> to vector<17x17xf32>
    %84 = arith.mulf %79, %83 : vector<17x17xf32>
    %cst_40 = arith.constant dense<0.000000e+00> : vector<17x8xf32>
    %85 = tpu.matmul %84, %71, %cst_40 {dimension_numbers = #tpu.dot_dimension_numbers<[1], [0], [0], [1], [0, 0, 1, 1], [], []>} : vector<17x17xf32>, vector<17x8xf32>, vector<17x8xf32> -> vector<17x8xf32>
    %86 = vector.extract_strided_slice %51 {offsets = [0, 16], sizes = [17, 8], strides = [1, 1]} : vector<17x96xf32> to vector<17x8xf32>
    %87 = vector.extract_strided_slice %51 {offsets = [0, 48], sizes = [17, 8], strides = [1, 1]} : vector<17x96xf32> to vector<17x8xf32>
    %88 = vector.extract_strided_slice %51 {offsets = [0, 80], sizes = [17, 8], strides = [1, 1]} : vector<17x96xf32> to vector<17x8xf32>
    %cst_41 = arith.constant dense<0.000000e+00> : vector<17x17xf32>
    %89 = tpu.matmul %86, %87, %cst_41 {dimension_numbers = #tpu.dot_dimension_numbers<[1], [1], [0], [0], [0, 0, 1, 0], [], []>} : vector<17x8xf32>, vector<17x8xf32>, vector<17x17xf32> -> vector<17x17xf32>
    %cst_42 = arith.constant 0.353553385 : f32
    %90 = vector.broadcast %cst_42 : f32 to vector<17x17xf32>
    %91 = arith.mulf %89, %90 : vector<17x17xf32>
    %cst_43 = arith.constant dense<0xFF800000> : vector<17xf32>
    %92 = vector.multi_reduction <maximumf>, %91, %cst_43 [1] : vector<17x17xf32> to vector<17xf32>
    %93 = vector.shape_cast %92 : vector<17xf32> to vector<17x1xf32>
    %94 = vector.broadcast %93 : vector<17x1xf32> to vector<17x17xf32>
    %95 = arith.subf %91, %94 : vector<17x17xf32>
    %96 = math.exp %95 : vector<17x17xf32>
    %cst_44 = arith.constant dense<0.000000e+00> : vector<17xf32>
    %97 = vector.multi_reduction <add>, %96, %cst_44 [1] : vector<17x17xf32> to vector<17xf32>
    %98 = vector.shape_cast %97 : vector<17xf32> to vector<17x1xf32>
    %99 = tpu.reciprocal %98 {approx = true} : vector<17x1xf32> -> vector<17x1xf32>
    %100 = vector.broadcast %99 : vector<17x1xf32> to vector<17x17xf32>
    %101 = arith.mulf %96, %100 : vector<17x17xf32>
    %cst_45 = arith.constant dense<0.000000e+00> : vector<17x8xf32>
    %102 = tpu.matmul %101, %88, %cst_45 {dimension_numbers = #tpu.dot_dimension_numbers<[1], [0], [0], [1], [0, 0, 1, 1], [], []>} : vector<17x17xf32>, vector<17x8xf32>, vector<17x8xf32> -> vector<17x8xf32>
    %103 = vector.extract_strided_slice %51 {offsets = [0, 24], sizes = [17, 8], strides = [1, 1]} : vector<17x96xf32> to vector<17x8xf32>
    %104 = vector.extract_strided_slice %51 {offsets = [0, 56], sizes = [17, 8], strides = [1, 1]} : vector<17x96xf32> to vector<17x8xf32>
    %105 = vector.extract_strided_slice %51 {offsets = [0, 88], sizes = [17, 8], strides = [1, 1]} : vector<17x96xf32> to vector<17x8xf32>
    %cst_46 = arith.constant dense<0.000000e+00> : vector<17x17xf32>
    %106 = tpu.matmul %103, %104, %cst_46 {dimension_numbers = #tpu.dot_dimension_numbers<[1], [1], [0], [0], [0, 0, 1, 0], [], []>} : vector<17x8xf32>, vector<17x8xf32>, vector<17x17xf32> -> vector<17x17xf32>
    %cst_47 = arith.constant 0.353553385 : f32
    %107 = vector.broadcast %cst_47 : f32 to vector<17x17xf32>
    %108 = arith.mulf %106, %107 : vector<17x17xf32>
    %cst_48 = arith.constant dense<0xFF800000> : vector<17xf32>
    %109 = vector.multi_reduction <maximumf>, %108, %cst_48 [1] : vector<17x17xf32> to vector<17xf32>
    %110 = vector.shape_cast %109 : vector<17xf32> to vector<17x1xf32>
    %111 = vector.broadcast %110 : vector<17x1xf32> to vector<17x17xf32>
    %112 = arith.subf %108, %111 : vector<17x17xf32>
    %113 = math.exp %112 : vector<17x17xf32>
    %cst_49 = arith.constant dense<0.000000e+00> : vector<17xf32>
    %114 = vector.multi_reduction <add>, %113, %cst_49 [1] : vector<17x17xf32> to vector<17xf32>
    %115 = vector.shape_cast %114 : vector<17xf32> to vector<17x1xf32>
    %116 = tpu.reciprocal %115 {approx = true} : vector<17x1xf32> -> vector<17x1xf32>
    %117 = vector.broadcast %116 : vector<17x1xf32> to vector<17x17xf32>
    %118 = arith.mulf %113, %117 : vector<17x17xf32>
    %cst_50 = arith.constant dense<0.000000e+00> : vector<17x8xf32>
    %119 = tpu.matmul %118, %105, %cst_50 {dimension_numbers = #tpu.dot_dimension_numbers<[1], [0], [0], [1], [0, 0, 1, 1], [], []>} : vector<17x17xf32>, vector<17x8xf32>, vector<17x8xf32> -> vector<17x8xf32>
    %120 = tpu.concatenate %68, %85, %102, %119 in 1 : vector<17x8xf32>, vector<17x8xf32>, vector<17x8xf32>, vector<17x8xf32> -> vector<17x32xf32>
    %121 = arith.index_cast %c0_i32 : i32 to index
    %c0_51 = arith.constant 0 : index
    %c0_52 = arith.constant 0 : index
    %122 = vector.load %arg10[%121, %c0_51, %c0_52] : memref<2x32x32xf32, #tpu.memory_space<vmem>>, vector<1x32x32xf32>
    %123 = vector.shape_cast %122 : vector<1x32x32xf32> to vector<32x32xf32>
    %cst_53 = arith.constant dense<0.000000e+00> : vector<17x32xf32>
    %124 = tpu.matmul %120, %123, %cst_53 {dimension_numbers = #tpu.dot_dimension_numbers<[1], [0], [0], [1], [0, 0, 1, 1], [], []>} : vector<17x32xf32>, vector<32x32xf32>, vector<17x32xf32> -> vector<17x32xf32>
    %125 = arith.index_cast %c0_i32 : i32 to index
    %c0_54 = arith.constant 0 : index
    %c0_55 = arith.constant 0 : index
    %126 = vector.load %arg11[%125, %c0_54, %c0_55] : memref<2x1x32xf32, #tpu.memory_space<vmem>>, vector<1x1x32xf32>
    %127 = vector.shape_cast %126 : vector<1x1x32xf32> to vector<1x32xf32>
    %128 = vector.broadcast %127 : vector<1x32xf32> to vector<17x32xf32>
    %129 = arith.addf %124, %128 : vector<17x32xf32>
    %130 = arith.addf %14, %129 : vector<17x32xf32>
    %131 = arith.index_cast %c0_i32 : i32 to index
    %c0_56 = arith.constant 0 : index
    %c0_57 = arith.constant 0 : index
    %132 = vector.load %arg12[%131, %c0_56, %c0_57] : memref<2x1x32xf32, #tpu.memory_space<vmem>>, vector<1x1x32xf32>
    %133 = vector.shape_cast %132 : vector<1x1x32xf32> to vector<1x32xf32>
    %134 = arith.index_cast %c0_i32 : i32 to index
    %c0_58 = arith.constant 0 : index
    %c0_59 = arith.constant 0 : index
    %135 = vector.load %arg13[%134, %c0_58, %c0_59] : memref<2x1x32xf32, #tpu.memory_space<vmem>>, vector<1x1x32xf32>
    %136 = vector.shape_cast %135 : vector<1x1x32xf32> to vector<1x32xf32>
    %cst_60 = arith.constant dense<0.000000e+00> : vector<17xf32>
    %137 = vector.multi_reduction <add>, %130, %cst_60 [1] : vector<17x32xf32> to vector<17xf32>
    %138 = vector.shape_cast %137 : vector<17xf32> to vector<17x1xf32>
    %cst_61 = arith.constant 3.200000e+01 : f32
    %139 = vector.broadcast %cst_61 : f32 to vector<17x1xf32>
    %140 = arith.divf %138, %139 : vector<17x1xf32>
    %141 = vector.broadcast %140 : vector<17x1xf32> to vector<17x32xf32>
    %142 = arith.subf %130, %141 : vector<17x32xf32>
    %143 = arith.mulf %142, %142 : vector<17x32xf32>
    %cst_62 = arith.constant dense<0.000000e+00> : vector<17xf32>
    %144 = vector.multi_reduction <add>, %143, %cst_62 [1] : vector<17x32xf32> to vector<17xf32>
    %145 = vector.shape_cast %144 : vector<17xf32> to vector<17x1xf32>
    %cst_63 = arith.constant 3.200000e+01 : f32
    %146 = vector.broadcast %cst_63 : f32 to vector<17x1xf32>
    %147 = arith.divf %145, %146 : vector<17x1xf32>
    %148 = vector.broadcast %140 : vector<17x1xf32> to vector<17x32xf32>
    %149 = arith.subf %130, %148 : vector<17x32xf32>
    %cst_64 = arith.constant 9.99999997E-7 : f32
    %150 = vector.broadcast %cst_64 : f32 to vector<17x1xf32>
    %151 = arith.addf %147, %150 : vector<17x1xf32>
    %152 = math.rsqrt %151 : vector<17x1xf32>
    %153 = vector.broadcast %152 : vector<17x1xf32> to vector<17x32xf32>
    %154 = arith.mulf %149, %153 : vector<17x32xf32>
    %155 = vector.broadcast %133 : vector<1x32xf32> to vector<17x32xf32>
    %156 = arith.mulf %154, %155 : vector<17x32xf32>
    %157 = vector.broadcast %136 : vector<1x32xf32> to vector<17x32xf32>
    %158 = arith.addf %156, %157 : vector<17x32xf32>
    %159 = arith.index_cast %c0_i32 : i32 to index
    %c0_65 = arith.constant 0 : index
    %c0_66 = arith.constant 0 : index
    %160 = vector.load %arg14[%159, %c0_65, %c0_66] : memref<2x32x64xf32, #tpu.memory_space<vmem>>, vector<1x32x64xf32>
    %161 = vector.shape_cast %160 : vector<1x32x64xf32> to vector<32x64xf32>
    %cst_67 = arith.constant dense<0.000000e+00> : vector<17x64xf32>
    %162 = tpu.matmul %158, %161, %cst_67 {dimension_numbers = #tpu.dot_dimension_numbers<[1], [0], [0], [1], [0, 0, 1, 1], [], []>} : vector<17x32xf32>, vector<32x64xf32>, vector<17x64xf32> -> vector<17x64xf32>
    %163 = arith.index_cast %c0_i32 : i32 to index
    %c0_68 = arith.constant 0 : index
    %c0_69 = arith.constant 0 : index
    %164 = vector.load %arg15[%163, %c0_68, %c0_69] : memref<2x1x64xf32, #tpu.memory_space<vmem>>, vector<1x1x64xf32>
    %165 = vector.shape_cast %164 : vector<1x1x64xf32> to vector<1x64xf32>
    %166 = vector.broadcast %165 : vector<1x64xf32> to vector<17x64xf32>
    %167 = arith.addf %162, %166 : vector<17x64xf32>
    %cst_70 = arith.constant 5.000000e-01 : f32
    %168 = vector.broadcast %cst_70 : f32 to vector<17x64xf32>
    %169 = arith.mulf %168, %167 : vector<17x64xf32>
    %cst_71 = arith.constant 0.707106769 : f32
    %170 = vector.broadcast %cst_71 : f32 to vector<17x64xf32>
    %171 = arith.mulf %167, %170 : vector<17x64xf32>
    %172 = math.absf %171 : vector<17x64xf32>
    %cst_72 = arith.constant 0.327591091 : f32
    %173 = vector.broadcast %cst_72 : f32 to vector<17x64xf32>
    %174 = arith.mulf %173, %172 : vector<17x64xf32>
    %cst_73 = arith.constant 1.000000e+00 : f32
    %175 = vector.broadcast %cst_73 : f32 to vector<17x64xf32>
    %176 = arith.addf %175, %174 : vector<17x64xf32>
    %177 = tpu.reciprocal %176 {approx = true} : vector<17x64xf32> -> vector<17x64xf32>
    %cst_74 = arith.constant 1.06140542 : f32
    %178 = vector.broadcast %cst_74 : f32 to vector<17x64xf32>
    %179 = arith.mulf %178, %177 : vector<17x64xf32>
    %cst_75 = arith.constant -1.45315206 : f32
    %180 = vector.broadcast %cst_75 : f32 to vector<17x64xf32>
    %181 = arith.addf %179, %180 : vector<17x64xf32>
    %182 = arith.mulf %181, %177 : vector<17x64xf32>
    %cst_76 = arith.constant 1.42141378 : f32
    %183 = vector.broadcast %cst_76 : f32 to vector<17x64xf32>
    %184 = arith.addf %182, %183 : vector<17x64xf32>
    %185 = arith.mulf %184, %177 : vector<17x64xf32>
    %cst_77 = arith.constant -0.284496725 : f32
    %186 = vector.broadcast %cst_77 : f32 to vector<17x64xf32>
    %187 = arith.addf %185, %186 : vector<17x64xf32>
    %188 = arith.mulf %187, %177 : vector<17x64xf32>
    %cst_78 = arith.constant 0.254829586 : f32
    %189 = vector.broadcast %cst_78 : f32 to vector<17x64xf32>
    %190 = arith.addf %188, %189 : vector<17x64xf32>
    %191 = arith.mulf %190, %177 : vector<17x64xf32>
    %cst_79 = arith.constant 0.000000e+00 : f32
    %192 = vector.broadcast %cst_79 : f32 to vector<17x64xf32>
    %193 = arith.subf %192, %172 : vector<17x64xf32>
    %194 = arith.mulf %193, %172 : vector<17x64xf32>
    %195 = math.exp %194 : vector<17x64xf32>
    %196 = arith.mulf %191, %195 : vector<17x64xf32>
    %cst_80 = arith.constant 1.000000e+00 : f32
    %197 = vector.broadcast %cst_80 : f32 to vector<17x64xf32>
    %198 = arith.subf %197, %196 : vector<17x64xf32>
    %cst_81 = arith.constant 0.000000e+00 : f32
    %199 = vector.broadcast %cst_81 : f32 to vector<17x64xf32>
    %200 = arith.cmpf oge, %171, %199 : vector<17x64xf32>
    %cst_82 = arith.constant 0.000000e+00 : f32
    %201 = vector.broadcast %cst_82 : f32 to vector<17x64xf32>
    %202 = arith.subf %201, %198 : vector<17x64xf32>
    %203 = arith.select %200, %198, %202 : vector<17x64xi1>, vector<17x64xf32>
    %cst_83 = arith.constant 1.000000e+00 : f32
    %204 = vector.broadcast %cst_83 : f32 to vector<17x64xf32>
    %205 = arith.addf %204, %203 : vector<17x64xf32>
    %206 = arith.mulf %169, %205 : vector<17x64xf32>
    %207 = arith.index_cast %c0_i32 : i32 to index
    %c0_84 = arith.constant 0 : index
    %c0_85 = arith.constant 0 : index
    %208 = vector.load %arg16[%207, %c0_84, %c0_85] : memref<2x64x32xf32, #tpu.memory_space<vmem>>, vector<1x64x32xf32>
    %209 = vector.shape_cast %208 : vector<1x64x32xf32> to vector<64x32xf32>
    %cst_86 = arith.constant dense<0.000000e+00> : vector<17x32xf32>
    %210 = tpu.matmul %206, %209, %cst_86 {dimension_numbers = #tpu.dot_dimension_numbers<[1], [0], [0], [1], [0, 0, 1, 1], [], []>} : vector<17x64xf32>, vector<64x32xf32>, vector<17x32xf32> -> vector<17x32xf32>
    %211 = arith.index_cast %c0_i32 : i32 to index
    %c0_87 = arith.constant 0 : index
    %c0_88 = arith.constant 0 : index
    %212 = vector.load %arg17[%211, %c0_87, %c0_88] : memref<2x1x32xf32, #tpu.memory_space<vmem>>, vector<1x1x32xf32>
    %213 = vector.shape_cast %212 : vector<1x1x32xf32> to vector<1x32xf32>
    %214 = vector.broadcast %213 : vector<1x32xf32> to vector<17x32xf32>
    %215 = arith.addf %210, %214 : vector<17x32xf32>
    %216 = arith.addf %130, %215 : vector<17x32xf32>
    %c0_89 = arith.constant 0 : index
    %c0_90 = arith.constant 0 : index
    %217 = vector.load %arg21[%c0_89, %c0_90] : memref<17x32xf32, #tpu.memory_space<vmem>>, vector<17x32xf32>
    tpu.vector_store %arg21[%c0_89, %c0_90], %216 {strides = array<i32>} : memref<17x32xf32, #tpu.memory_space<vmem>>, vector<17x32xf32>,
    %c1_i32 = arith.constant 1 : i32
    %c0_91 = arith.constant 0 : index
    %c0_92 = arith.constant 0 : index
    %218 = vector.load %arg21[%c0_91, %c0_92] : memref<17x32xf32, #tpu.memory_space<vmem>>, vector<17x32xf32>
    %219 = arith.index_cast %c1_i32 : i32 to index
    %c0_93 = arith.constant 0 : index
    %c0_94 = arith.constant 0 : index
    %220 = vector.load %arg6[%219, %c0_93, %c0_94] : memref<2x1x32xf32, #tpu.memory_space<vmem>>, vector<1x1x32xf32>
    %221 = vector.shape_cast %220 : vector<1x1x32xf32> to vector<1x32xf32>
    %222 = arith.index_cast %c1_i32 : i32 to index
    %c0_95 = arith.constant 0 : index
    %c0_96 = arith.constant 0 : index
    %223 = vector.load %arg7[%222, %c0_95, %c0_96] : memref<2x1x32xf32, #tpu.memory_space<vmem>>, vector<1x1x32xf32>
    %224 = vector.shape_cast %223 : vector<1x1x32xf32> to vector<1x32xf32>
    %cst_97 = arith.constant dense<0.000000e+00> : vector<17xf32>
    %225 = vector.multi_reduction <add>, %218, %cst_97 [1] : vector<17x32xf32> to vector<17xf32>
    %226 = vector.shape_cast %225 : vector<17xf32> to vector<17x1xf32>
    %cst_98 = arith.constant 3.200000e+01 : f32
    %227 = vector.broadcast %cst_98 : f32 to vector<17x1xf32>
    %228 = arith.divf %226, %227 : vector<17x1xf32>
    %229 = vector.broadcast %228 : vector<17x1xf32> to vector<17x32xf32>
    %230 = arith.subf %218, %229 : vector<17x32xf32>
    %231 = arith.mulf %230, %230 : vector<17x32xf32>
    %cst_99 = arith.constant dense<0.000000e+00> : vector<17xf32>
    %232 = vector.multi_reduction <add>, %231, %cst_99 [1] : vector<17x32xf32> to vector<17xf32>
    %233 = vector.shape_cast %232 : vector<17xf32> to vector<17x1xf32>
    %cst_100 = arith.constant 3.200000e+01 : f32
    %234 = vector.broadcast %cst_100 : f32 to vector<17x1xf32>
    %235 = arith.divf %233, %234 : vector<17x1xf32>
    %236 = vector.broadcast %228 : vector<17x1xf32> to vector<17x32xf32>
    %237 = arith.subf %218, %236 : vector<17x32xf32>
    %cst_101 = arith.constant 9.99999997E-7 : f32
    %238 = vector.broadcast %cst_101 : f32 to vector<17x1xf32>
    %239 = arith.addf %235, %238 : vector<17x1xf32>
    %240 = math.rsqrt %239 : vector<17x1xf32>
    %241 = vector.broadcast %240 : vector<17x1xf32> to vector<17x32xf32>
    %242 = arith.mulf %237, %241 : vector<17x32xf32>
    %243 = vector.broadcast %221 : vector<1x32xf32> to vector<17x32xf32>
    %244 = arith.mulf %242, %243 : vector<17x32xf32>
    %245 = vector.broadcast %224 : vector<1x32xf32> to vector<17x32xf32>
    %246 = arith.addf %244, %245 : vector<17x32xf32>
    %247 = arith.index_cast %c1_i32 : i32 to index
    %c0_102 = arith.constant 0 : index
    %c0_103 = arith.constant 0 : index
    %248 = vector.load %arg8[%247, %c0_102, %c0_103] : memref<2x32x96xf32, #tpu.memory_space<vmem>>, vector<1x32x96xf32>
    %249 = vector.shape_cast %248 : vector<1x32x96xf32> to vector<32x96xf32>
    %cst_104 = arith.constant dense<0.000000e+00> : vector<17x96xf32>
    %250 = tpu.matmul %246, %249, %cst_104 {dimension_numbers = #tpu.dot_dimension_numbers<[1], [0], [0], [1], [0, 0, 1, 1], [], []>} : vector<17x32xf32>, vector<32x96xf32>, vector<17x96xf32> -> vector<17x96xf32>
    %251 = arith.index_cast %c1_i32 : i32 to index
    %c0_105 = arith.constant 0 : index
    %c0_106 = arith.constant 0 : index
    %252 = vector.load %arg9[%251, %c0_105, %c0_106] : memref<2x1x96xf32, #tpu.memory_space<vmem>>, vector<1x1x96xf32>
    %253 = vector.shape_cast %252 : vector<1x1x96xf32> to vector<1x96xf32>
    %254 = vector.broadcast %253 : vector<1x96xf32> to vector<17x96xf32>
    %255 = arith.addf %250, %254 : vector<17x96xf32>
    %256 = vector.extract_strided_slice %255 {offsets = [0, 0], sizes = [17, 8], strides = [1, 1]} : vector<17x96xf32> to vector<17x8xf32>
    %257 = vector.extract_strided_slice %255 {offsets = [0, 32], sizes = [17, 8], strides = [1, 1]} : vector<17x96xf32> to vector<17x8xf32>
    %258 = vector.extract_strided_slice %255 {offsets = [0, 64], sizes = [17, 8], strides = [1, 1]} : vector<17x96xf32> to vector<17x8xf32>
    %cst_107 = arith.constant dense<0.000000e+00> : vector<17x17xf32>
    %259 = tpu.matmul %256, %257, %cst_107 {dimension_numbers = #tpu.dot_dimension_numbers<[1], [1], [0], [0], [0, 0, 1, 0], [], []>} : vector<17x8xf32>, vector<17x8xf32>, vector<17x17xf32> -> vector<17x17xf32>
    %cst_108 = arith.constant 0.353553385 : f32
    %260 = vector.broadcast %cst_108 : f32 to vector<17x17xf32>
    %261 = arith.mulf %259, %260 : vector<17x17xf32>
    %cst_109 = arith.constant dense<0xFF800000> : vector<17xf32>
    %262 = vector.multi_reduction <maximumf>, %261, %cst_109 [1] : vector<17x17xf32> to vector<17xf32>
    %263 = vector.shape_cast %262 : vector<17xf32> to vector<17x1xf32>
    %264 = vector.broadcast %263 : vector<17x1xf32> to vector<17x17xf32>
    %265 = arith.subf %261, %264 : vector<17x17xf32>
    %266 = math.exp %265 : vector<17x17xf32>
    %cst_110 = arith.constant dense<0.000000e+00> : vector<17xf32>
    %267 = vector.multi_reduction <add>, %266, %cst_110 [1] : vector<17x17xf32> to vector<17xf32>
    %268 = vector.shape_cast %267 : vector<17xf32> to vector<17x1xf32>
    %269 = tpu.reciprocal %268 {approx = true} : vector<17x1xf32> -> vector<17x1xf32>
    %270 = vector.broadcast %269 : vector<17x1xf32> to vector<17x17xf32>
    %271 = arith.mulf %266, %270 : vector<17x17xf32>
    %cst_111 = arith.constant dense<0.000000e+00> : vector<17x8xf32>
    %272 = tpu.matmul %271, %258, %cst_111 {dimension_numbers = #tpu.dot_dimension_numbers<[1], [0], [0], [1], [0, 0, 1, 1], [], []>} : vector<17x17xf32>, vector<17x8xf32>, vector<17x8xf32> -> vector<17x8xf32>
    %273 = vector.extract_strided_slice %255 {offsets = [0, 8], sizes = [17, 8], strides = [1, 1]} : vector<17x96xf32> to vector<17x8xf32>
    %274 = vector.extract_strided_slice %255 {offsets = [0, 40], sizes = [17, 8], strides = [1, 1]} : vector<17x96xf32> to vector<17x8xf32>
    %275 = vector.extract_strided_slice %255 {offsets = [0, 72], sizes = [17, 8], strides = [1, 1]} : vector<17x96xf32> to vector<17x8xf32>
    %cst_112 = arith.constant dense<0.000000e+00> : vector<17x17xf32>
    %276 = tpu.matmul %273, %274, %cst_112 {dimension_numbers = #tpu.dot_dimension_numbers<[1], [1], [0], [0], [0, 0, 1, 0], [], []>} : vector<17x8xf32>, vector<17x8xf32>, vector<17x17xf32> -> vector<17x17xf32>
    %cst_113 = arith.constant 0.353553385 : f32
    %277 = vector.broadcast %cst_113 : f32 to vector<17x17xf32>
    %278 = arith.mulf %276, %277 : vector<17x17xf32>
    %cst_114 = arith.constant dense<0xFF800000> : vector<17xf32>
    %279 = vector.multi_reduction <maximumf>, %278, %cst_114 [1] : vector<17x17xf32> to vector<17xf32>
    %280 = vector.shape_cast %279 : vector<17xf32> to vector<17x1xf32>
    %281 = vector.broadcast %280 : vector<17x1xf32> to vector<17x17xf32>
    %282 = arith.subf %278, %281 : vector<17x17xf32>
    %283 = math.exp %282 : vector<17x17xf32>
    %cst_115 = arith.constant dense<0.000000e+00> : vector<17xf32>
    %284 = vector.multi_reduction <add>, %283, %cst_115 [1] : vector<17x17xf32> to vector<17xf32>
    %285 = vector.shape_cast %284 : vector<17xf32> to vector<17x1xf32>
    %286 = tpu.reciprocal %285 {approx = true} : vector<17x1xf32> -> vector<17x1xf32>
    %287 = vector.broadcast %286 : vector<17x1xf32> to vector<17x17xf32>
    %288 = arith.mulf %283, %287 : vector<17x17xf32>
    %cst_116 = arith.constant dense<0.000000e+00> : vector<17x8xf32>
    %289 = tpu.matmul %288, %275, %cst_116 {dimension_numbers = #tpu.dot_dimension_numbers<[1], [0], [0], [1], [0, 0, 1, 1], [], []>} : vector<17x17xf32>, vector<17x8xf32>, vector<17x8xf32> -> vector<17x8xf32>
    %290 = vector.extract_strided_slice %255 {offsets = [0, 16], sizes = [17, 8], strides = [1, 1]} : vector<17x96xf32> to vector<17x8xf32>
    %291 = vector.extract_strided_slice %255 {offsets = [0, 48], sizes = [17, 8], strides = [1, 1]} : vector<17x96xf32> to vector<17x8xf32>
    %292 = vector.extract_strided_slice %255 {offsets = [0, 80], sizes = [17, 8], strides = [1, 1]} : vector<17x96xf32> to vector<17x8xf32>
    %cst_117 = arith.constant dense<0.000000e+00> : vector<17x17xf32>
    %293 = tpu.matmul %290, %291, %cst_117 {dimension_numbers = #tpu.dot_dimension_numbers<[1], [1], [0], [0], [0, 0, 1, 0], [], []>} : vector<17x8xf32>, vector<17x8xf32>, vector<17x17xf32> -> vector<17x17xf32>
    %cst_118 = arith.constant 0.353553385 : f32
    %294 = vector.broadcast %cst_118 : f32 to vector<17x17xf32>
    %295 = arith.mulf %293, %294 : vector<17x17xf32>
    %cst_119 = arith.constant dense<0xFF800000> : vector<17xf32>
    %296 = vector.multi_reduction <maximumf>, %295, %cst_119 [1] : vector<17x17xf32> to vector<17xf32>
    %297 = vector.shape_cast %296 : vector<17xf32> to vector<17x1xf32>
    %298 = vector.broadcast %297 : vector<17x1xf32> to vector<17x17xf32>
    %299 = arith.subf %295, %298 : vector<17x17xf32>
    %300 = math.exp %299 : vector<17x17xf32>
    %cst_120 = arith.constant dense<0.000000e+00> : vector<17xf32>
    %301 = vector.multi_reduction <add>, %300, %cst_120 [1] : vector<17x17xf32> to vector<17xf32>
    %302 = vector.shape_cast %301 : vector<17xf32> to vector<17x1xf32>
    %303 = tpu.reciprocal %302 {approx = true} : vector<17x1xf32> -> vector<17x1xf32>
    %304 = vector.broadcast %303 : vector<17x1xf32> to vector<17x17xf32>
    %305 = arith.mulf %300, %304 : vector<17x17xf32>
    %cst_121 = arith.constant dense<0.000000e+00> : vector<17x8xf32>
    %306 = tpu.matmul %305, %292, %cst_121 {dimension_numbers = #tpu.dot_dimension_numbers<[1], [0], [0], [1], [0, 0, 1, 1], [], []>} : vector<17x17xf32>, vector<17x8xf32>, vector<17x8xf32> -> vector<17x8xf32>
    %307 = vector.extract_strided_slice %255 {offsets = [0, 24], sizes = [17, 8], strides = [1, 1]} : vector<17x96xf32> to vector<17x8xf32>
    %308 = vector.extract_strided_slice %255 {offsets = [0, 56], sizes = [17, 8], strides = [1, 1]} : vector<17x96xf32> to vector<17x8xf32>
    %309 = vector.extract_strided_slice %255 {offsets = [0, 88], sizes = [17, 8], strides = [1, 1]} : vector<17x96xf32> to vector<17x8xf32>
    %cst_122 = arith.constant dense<0.000000e+00> : vector<17x17xf32>
    %310 = tpu.matmul %307, %308, %cst_122 {dimension_numbers = #tpu.dot_dimension_numbers<[1], [1], [0], [0], [0, 0, 1, 0], [], []>} : vector<17x8xf32>, vector<17x8xf32>, vector<17x17xf32> -> vector<17x17xf32>
    %cst_123 = arith.constant 0.353553385 : f32
    %311 = vector.broadcast %cst_123 : f32 to vector<17x17xf32>
    %312 = arith.mulf %310, %311 : vector<17x17xf32>
    %cst_124 = arith.constant dense<0xFF800000> : vector<17xf32>
    %313 = vector.multi_reduction <maximumf>, %312, %cst_124 [1] : vector<17x17xf32> to vector<17xf32>
    %314 = vector.shape_cast %313 : vector<17xf32> to vector<17x1xf32>
    %315 = vector.broadcast %314 : vector<17x1xf32> to vector<17x17xf32>
    %316 = arith.subf %312, %315 : vector<17x17xf32>
    %317 = math.exp %316 : vector<17x17xf32>
    %cst_125 = arith.constant dense<0.000000e+00> : vector<17xf32>
    %318 = vector.multi_reduction <add>, %317, %cst_125 [1] : vector<17x17xf32> to vector<17xf32>
    %319 = vector.shape_cast %318 : vector<17xf32> to vector<17x1xf32>
    %320 = tpu.reciprocal %319 {approx = true} : vector<17x1xf32> -> vector<17x1xf32>
    %321 = vector.broadcast %320 : vector<17x1xf32> to vector<17x17xf32>
    %322 = arith.mulf %317, %321 : vector<17x17xf32>
    %cst_126 = arith.constant dense<0.000000e+00> : vector<17x8xf32>
    %323 = tpu.matmul %322, %309, %cst_126 {dimension_numbers = #tpu.dot_dimension_numbers<[1], [0], [0], [1], [0, 0, 1, 1], [], []>} : vector<17x17xf32>, vector<17x8xf32>, vector<17x8xf32> -> vector<17x8xf32>
    %324 = tpu.concatenate %272, %289, %306, %323 in 1 : vector<17x8xf32>, vector<17x8xf32>, vector<17x8xf32>, vector<17x8xf32> -> vector<17x32xf32>
    %325 = arith.index_cast %c1_i32 : i32 to index
    %c0_127 = arith.constant 0 : index
    %c0_128 = arith.constant 0 : index
    %326 = vector.load %arg10[%325, %c0_127, %c0_128] : memref<2x32x32xf32, #tpu.memory_space<vmem>>, vector<1x32x32xf32>
    %327 = vector.shape_cast %326 : vector<1x32x32xf32> to vector<32x32xf32>
    %cst_129 = arith.constant dense<0.000000e+00> : vector<17x32xf32>
    %328 = tpu.matmul %324, %327, %cst_129 {dimension_numbers = #tpu.dot_dimension_numbers<[1], [0], [0], [1], [0, 0, 1, 1], [], []>} : vector<17x32xf32>, vector<32x32xf32>, vector<17x32xf32> -> vector<17x32xf32>
    %329 = arith.index_cast %c1_i32 : i32 to index
    %c0_130 = arith.constant 0 : index
    %c0_131 = arith.constant 0 : index
    %330 = vector.load %arg11[%329, %c0_130, %c0_131] : memref<2x1x32xf32, #tpu.memory_space<vmem>>, vector<1x1x32xf32>
    %331 = vector.shape_cast %330 : vector<1x1x32xf32> to vector<1x32xf32>
    %332 = vector.broadcast %331 : vector<1x32xf32> to vector<17x32xf32>
    %333 = arith.addf %328, %332 : vector<17x32xf32>
    %334 = arith.addf %218, %333 : vector<17x32xf32>
    %335 = arith.index_cast %c1_i32 : i32 to index
    %c0_132 = arith.constant 0 : index
    %c0_133 = arith.constant 0 : index
    %336 = vector.load %arg12[%335, %c0_132, %c0_133] : memref<2x1x32xf32, #tpu.memory_space<vmem>>, vector<1x1x32xf32>
    %337 = vector.shape_cast %336 : vector<1x1x32xf32> to vector<1x32xf32>
    %338 = arith.index_cast %c1_i32 : i32 to index
    %c0_134 = arith.constant 0 : index
    %c0_135 = arith.constant 0 : index
    %339 = vector.load %arg13[%338, %c0_134, %c0_135] : memref<2x1x32xf32, #tpu.memory_space<vmem>>, vector<1x1x32xf32>
    %340 = vector.shape_cast %339 : vector<1x1x32xf32> to vector<1x32xf32>
    %cst_136 = arith.constant dense<0.000000e+00> : vector<17xf32>
    %341 = vector.multi_reduction <add>, %334, %cst_136 [1] : vector<17x32xf32> to vector<17xf32>
    %342 = vector.shape_cast %341 : vector<17xf32> to vector<17x1xf32>
    %cst_137 = arith.constant 3.200000e+01 : f32
    %343 = vector.broadcast %cst_137 : f32 to vector<17x1xf32>
    %344 = arith.divf %342, %343 : vector<17x1xf32>
    %345 = vector.broadcast %344 : vector<17x1xf32> to vector<17x32xf32>
    %346 = arith.subf %334, %345 : vector<17x32xf32>
    %347 = arith.mulf %346, %346 : vector<17x32xf32>
    %cst_138 = arith.constant dense<0.000000e+00> : vector<17xf32>
    %348 = vector.multi_reduction <add>, %347, %cst_138 [1] : vector<17x32xf32> to vector<17xf32>
    %349 = vector.shape_cast %348 : vector<17xf32> to vector<17x1xf32>
    %cst_139 = arith.constant 3.200000e+01 : f32
    %350 = vector.broadcast %cst_139 : f32 to vector<17x1xf32>
    %351 = arith.divf %349, %350 : vector<17x1xf32>
    %352 = vector.broadcast %344 : vector<17x1xf32> to vector<17x32xf32>
    %353 = arith.subf %334, %352 : vector<17x32xf32>
    %cst_140 = arith.constant 9.99999997E-7 : f32
    %354 = vector.broadcast %cst_140 : f32 to vector<17x1xf32>
    %355 = arith.addf %351, %354 : vector<17x1xf32>
    %356 = math.rsqrt %355 : vector<17x1xf32>
    %357 = vector.broadcast %356 : vector<17x1xf32> to vector<17x32xf32>
    %358 = arith.mulf %353, %357 : vector<17x32xf32>
    %359 = vector.broadcast %337 : vector<1x32xf32> to vector<17x32xf32>
    %360 = arith.mulf %358, %359 : vector<17x32xf32>
    %361 = vector.broadcast %340 : vector<1x32xf32> to vector<17x32xf32>
    %362 = arith.addf %360, %361 : vector<17x32xf32>
    %363 = arith.index_cast %c1_i32 : i32 to index
    %c0_141 = arith.constant 0 : index
    %c0_142 = arith.constant 0 : index
    %364 = vector.load %arg14[%363, %c0_141, %c0_142] : memref<2x32x64xf32, #tpu.memory_space<vmem>>, vector<1x32x64xf32>
    %365 = vector.shape_cast %364 : vector<1x32x64xf32> to vector<32x64xf32>
    %cst_143 = arith.constant dense<0.000000e+00> : vector<17x64xf32>
    %366 = tpu.matmul %362, %365, %cst_143 {dimension_numbers = #tpu.dot_dimension_numbers<[1], [0], [0], [1], [0, 0, 1, 1], [], []>} : vector<17x32xf32>, vector<32x64xf32>, vector<17x64xf32> -> vector<17x64xf32>
    %367 = arith.index_cast %c1_i32 : i32 to index
    %c0_144 = arith.constant 0 : index
    %c0_145 = arith.constant 0 : index
    %368 = vector.load %arg15[%367, %c0_144, %c0_145] : memref<2x1x64xf32, #tpu.memory_space<vmem>>, vector<1x1x64xf32>
    %369 = vector.shape_cast %368 : vector<1x1x64xf32> to vector<1x64xf32>
    %370 = vector.broadcast %369 : vector<1x64xf32> to vector<17x64xf32>
    %371 = arith.addf %366, %370 : vector<17x64xf32>
    %cst_146 = arith.constant 5.000000e-01 : f32
    %372 = vector.broadcast %cst_146 : f32 to vector<17x64xf32>
    %373 = arith.mulf %372, %371 : vector<17x64xf32>
    %cst_147 = arith.constant 0.707106769 : f32
    %374 = vector.broadcast %cst_147 : f32 to vector<17x64xf32>
    %375 = arith.mulf %371, %374 : vector<17x64xf32>
    %376 = math.absf %375 : vector<17x64xf32>
    %cst_148 = arith.constant 0.327591091 : f32
    %377 = vector.broadcast %cst_148 : f32 to vector<17x64xf32>
    %378 = arith.mulf %377, %376 : vector<17x64xf32>
    %cst_149 = arith.constant 1.000000e+00 : f32
    %379 = vector.broadcast %cst_149 : f32 to vector<17x64xf32>
    %380 = arith.addf %379, %378 : vector<17x64xf32>
    %381 = tpu.reciprocal %380 {approx = true} : vector<17x64xf32> -> vector<17x64xf32>
    %cst_150 = arith.constant 1.06140542 : f32
    %382 = vector.broadcast %cst_150 : f32 to vector<17x64xf32>
    %383 = arith.mulf %382, %381 : vector<17x64xf32>
    %cst_151 = arith.constant -1.45315206 : f32
    %384 = vector.broadcast %cst_151 : f32 to vector<17x64xf32>
    %385 = arith.addf %383, %384 : vector<17x64xf32>
    %386 = arith.mulf %385, %381 : vector<17x64xf32>
    %cst_152 = arith.constant 1.42141378 : f32
    %387 = vector.broadcast %cst_152 : f32 to vector<17x64xf32>
    %388 = arith.addf %386, %387 : vector<17x64xf32>
    %389 = arith.mulf %388, %381 : vector<17x64xf32>
    %cst_153 = arith.constant -0.284496725 : f32
    %390 = vector.broadcast %cst_153 : f32 to vector<17x64xf32>
    %391 = arith.addf %389, %390 : vector<17x64xf32>
    %392 = arith.mulf %391, %381 : vector<17x64xf32>
    %cst_154 = arith.constant 0.254829586 : f32
    %393 = vector.broadcast %cst_154 : f32 to vector<17x64xf32>
    %394 = arith.addf %392, %393 : vector<17x64xf32>
    %395 = arith.mulf %394, %381 : vector<17x64xf32>
    %cst_155 = arith.constant 0.000000e+00 : f32
    %396 = vector.broadcast %cst_155 : f32 to vector<17x64xf32>
    %397 = arith.subf %396, %376 : vector<17x64xf32>
    %398 = arith.mulf %397, %376 : vector<17x64xf32>
    %399 = math.exp %398 : vector<17x64xf32>
    %400 = arith.mulf %395, %399 : vector<17x64xf32>
    %cst_156 = arith.constant 1.000000e+00 : f32
    %401 = vector.broadcast %cst_156 : f32 to vector<17x64xf32>
    %402 = arith.subf %401, %400 : vector<17x64xf32>
    %cst_157 = arith.constant 0.000000e+00 : f32
    %403 = vector.broadcast %cst_157 : f32 to vector<17x64xf32>
    %404 = arith.cmpf oge, %375, %403 : vector<17x64xf32>
    %cst_158 = arith.constant 0.000000e+00 : f32
    %405 = vector.broadcast %cst_158 : f32 to vector<17x64xf32>
    %406 = arith.subf %405, %402 : vector<17x64xf32>
    %407 = arith.select %404, %402, %406 : vector<17x64xi1>, vector<17x64xf32>
    %cst_159 = arith.constant 1.000000e+00 : f32
    %408 = vector.broadcast %cst_159 : f32 to vector<17x64xf32>
    %409 = arith.addf %408, %407 : vector<17x64xf32>
    %410 = arith.mulf %373, %409 : vector<17x64xf32>
    %411 = arith.index_cast %c1_i32 : i32 to index
    %c0_160 = arith.constant 0 : index
    %c0_161 = arith.constant 0 : index
    %412 = vector.load %arg16[%411, %c0_160, %c0_161] : memref<2x64x32xf32, #tpu.memory_space<vmem>>, vector<1x64x32xf32>
    %413 = vector.shape_cast %412 : vector<1x64x32xf32> to vector<64x32xf32>
    %cst_162 = arith.constant dense<0.000000e+00> : vector<17x32xf32>
    %414 = tpu.matmul %410, %413, %cst_162 {dimension_numbers = #tpu.dot_dimension_numbers<[1], [0], [0], [1], [0, 0, 1, 1], [], []>} : vector<17x64xf32>, vector<64x32xf32>, vector<17x32xf32> -> vector<17x32xf32>
    %415 = arith.index_cast %c1_i32 : i32 to index
    %c0_163 = arith.constant 0 : index
    %c0_164 = arith.constant 0 : index
    %416 = vector.load %arg17[%415, %c0_163, %c0_164] : memref<2x1x32xf32, #tpu.memory_space<vmem>>, vector<1x1x32xf32>
    %417 = vector.shape_cast %416 : vector<1x1x32xf32> to vector<1x32xf32>
    %418 = vector.broadcast %417 : vector<1x32xf32> to vector<17x32xf32>
    %419 = arith.addf %414, %418 : vector<17x32xf32>
    %420 = arith.addf %334, %419 : vector<17x32xf32>
    %c0_165 = arith.constant 0 : index
    %c0_166 = arith.constant 0 : index
    %421 = vector.load %arg21[%c0_165, %c0_166] : memref<17x32xf32, #tpu.memory_space<vmem>>, vector<17x32xf32>
    tpu.vector_store %arg21[%c0_165, %c0_166], %420 {strides = array<i32>} : memref<17x32xf32, #tpu.memory_space<vmem>>, vector<17x32xf32>,
    %c2_i32 = arith.constant 2 : i32
    %c0_167 = arith.constant 0 : index
    %c0_168 = arith.constant 0 : index
    %422 = vector.load %arg21[%c0_167, %c0_168] : memref<17x32xf32, #tpu.memory_space<vmem>>, vector<17x32xf32>
    %c0_169 = arith.constant 0 : index
    %c0_170 = arith.constant 0 : index
    %423 = vector.load %arg18[%c0_169, %c0_170] : memref<1x32xf32, #tpu.memory_space<vmem>>, vector<1x32xf32>
    %c0_171 = arith.constant 0 : index
    %c0_172 = arith.constant 0 : index
    %424 = vector.load %arg19[%c0_171, %c0_172] : memref<1x32xf32, #tpu.memory_space<vmem>>, vector<1x32xf32>
    %cst_173 = arith.constant dense<0.000000e+00> : vector<17xf32>
    %425 = vector.multi_reduction <add>, %422, %cst_173 [1] : vector<17x32xf32> to vector<17xf32>
    %426 = vector.shape_cast %425 : vector<17xf32> to vector<17x1xf32>
    %cst_174 = arith.constant 3.200000e+01 : f32
    %427 = vector.broadcast %cst_174 : f32 to vector<17x1xf32>
    %428 = arith.divf %426, %427 : vector<17x1xf32>
    %429 = vector.broadcast %428 : vector<17x1xf32> to vector<17x32xf32>
    %430 = arith.subf %422, %429 : vector<17x32xf32>
    %431 = arith.mulf %430, %430 : vector<17x32xf32>
    %cst_175 = arith.constant dense<0.000000e+00> : vector<17xf32>
    %432 = vector.multi_reduction <add>, %431, %cst_175 [1] : vector<17x32xf32> to vector<17xf32>
    %433 = vector.shape_cast %432 : vector<17xf32> to vector<17x1xf32>
    %cst_176 = arith.constant 3.200000e+01 : f32
    %434 = vector.broadcast %cst_176 : f32 to vector<17x1xf32>
    %435 = arith.divf %433, %434 : vector<17x1xf32>
    %436 = vector.broadcast %428 : vector<17x1xf32> to vector<17x32xf32>
    %437 = arith.subf %422, %436 : vector<17x32xf32>
    %cst_177 = arith.constant 9.99999997E-7 : f32
    %438 = vector.broadcast %cst_177 : f32 to vector<17x1xf32>
    %439 = arith.addf %435, %438 : vector<17x1xf32>
    %440 = math.rsqrt %439 : vector<17x1xf32>
    %441 = vector.broadcast %440 : vector<17x1xf32> to vector<17x32xf32>
    %442 = arith.mulf %437, %441 : vector<17x32xf32>
    %443 = vector.broadcast %423 : vector<1x32xf32> to vector<17x32xf32>
    %444 = arith.mulf %442, %443 : vector<17x32xf32>
    %445 = vector.broadcast %424 : vector<1x32xf32> to vector<17x32xf32>
    %446 = arith.addf %444, %445 : vector<17x32xf32>
    %c0_178 = arith.constant 0 : index
    %c0_179 = arith.constant 0 : index
    %c0_180 = arith.constant 0 : index
    %447 = vector.load %arg20[%c0_178, %c0_179, %c0_180] : memref<1x17x32xf32, #tpu.memory_space<vmem>>, vector<1x17x32xf32>
    %448 = vector.shape_cast %447 : vector<1x17x32xf32> to vector<17x32xf32>
    %449 = vector.shape_cast %446 : vector<17x32xf32> to vector<1x17x32xf32>
    tpu.vector_store %arg20[%c0_178, %c0_179, %c0_180], %449 {strides = array<i32>} : memref<1x17x32xf32, #tpu.memory_space<vmem>>, vector<1x17x32xf32>,
    return
  }
  func.func @transform_0(%arg0: i32) -> (i32, i32, i32) {
    %c0_i32 = arith.constant 0 : i32
    %c0_i32_0 = arith.constant 0 : i32
    %c0_i32_1 = arith.constant 0 : i32
    return %arg0, %c0_i32, %c0_i32_0 : i32, i32, i32
  }
  func.func @transform_1(%arg0: i32) -> (i32, i32) {
    %c0_i32 = arith.constant 0 : i32
    %c0_i32_0 = arith.constant 0 : i32
    %c0_i32_1 = arith.constant 0 : i32
    return %c0_i32, %c0_i32_0 : i32, i32
  }
  func.func @transform_2(%arg0: i32) -> (i32, i32) {
    %c0_i32 = arith.constant 0 : i32
    %c0_i32_0 = arith.constant 0 : i32
    %c0_i32_1 = arith.constant 0 : i32
    return %c0_i32, %c0_i32_0 : i32, i32
  }
  func.func @transform_3(%arg0: i32) -> (i32, i32) {
    %c0_i32 = arith.constant 0 : i32
    %c0_i32_0 = arith.constant 0 : i32
    %c0_i32_1 = arith.constant 0 : i32
    return %c0_i32, %c0_i32_0 : i32, i32
  }
  func.func @transform_4(%arg0: i32) -> (i32, i32) {
    %c0_i32 = arith.constant 0 : i32
    %c0_i32_0 = arith.constant 0 : i32
    %c0_i32_1 = arith.constant 0 : i32
    return %c0_i32, %c0_i32_0 : i32, i32
  }
  func.func @transform_5(%arg0: i32) -> (i32, i32, i32) {
    %c0_i32 = arith.constant 0 : i32
    %c0_i32_0 = arith.constant 0 : i32
    %c0_i32_1 = arith.constant 0 : i32
    %c0_i32_2 = arith.constant 0 : i32
    return %c0_i32, %c0_i32_0, %c0_i32_1 : i32, i32, i32
  }
  func.func @transform_6(%arg0: i32) -> (i32, i32, i32) {
    %c0_i32 = arith.constant 0 : i32
    %c0_i32_0 = arith.constant 0 : i32
    %c0_i32_1 = arith.constant 0 : i32
    %c0_i32_2 = arith.constant 0 : i32
    return %c0_i32, %c0_i32_0, %c0_i32_1 : i32, i32, i32
  }
  func.func @transform_7(%arg0: i32) -> (i32, i32, i32) {
    %c0_i32 = arith.constant 0 : i32
    %c0_i32_0 = arith.constant 0 : i32
    %c0_i32_1 = arith.constant 0 : i32
    %c0_i32_2 = arith.constant 0 : i32
    return %c0_i32, %c0_i32_0, %c0_i32_1 : i32, i32, i32
  }
  func.func @transform_8(%arg0: i32) -> (i32, i32, i32) {
    %c0_i32 = arith.constant 0 : i32
    %c0_i32_0 = arith.constant 0 : i32
    %c0_i32_1 = arith.constant 0 : i32
    %c0_i32_2 = arith.constant 0 : i32
    return %c0_i32, %c0_i32_0, %c0_i32_1 : i32, i32, i32
  }
  func.func @transform_9(%arg0: i32) -> (i32, i32, i32) {
    %c0_i32 = arith.constant 0 : i32
    %c0_i32_0 = arith.constant 0 : i32
    %c0_i32_1 = arith.constant 0 : i32
    %c0_i32_2 = arith.constant 0 : i32
    return %c0_i32, %c0_i32_0, %c0_i32_1 : i32, i32, i32
  }
  func.func @transform_10(%arg0: i32) -> (i32, i32, i32) {
    %c0_i32 = arith.constant 0 : i32
    %c0_i32_0 = arith.constant 0 : i32
    %c0_i32_1 = arith.constant 0 : i32
    %c0_i32_2 = arith.constant 0 : i32
    return %c0_i32, %c0_i32_0, %c0_i32_1 : i32, i32, i32
  }
  func.func @transform_11(%arg0: i32) -> (i32, i32, i32) {
    %c0_i32 = arith.constant 0 : i32
    %c0_i32_0 = arith.constant 0 : i32
    %c0_i32_1 = arith.constant 0 : i32
    %c0_i32_2 = arith.constant 0 : i32
    return %c0_i32, %c0_i32_0, %c0_i32_1 : i32, i32, i32
  }
  func.func @transform_12(%arg0: i32) -> (i32, i32, i32) {
    %c0_i32 = arith.constant 0 : i32
    %c0_i32_0 = arith.constant 0 : i32
    %c0_i32_1 = arith.constant 0 : i32
    %c0_i32_2 = arith.constant 0 : i32
    return %c0_i32, %c0_i32_0, %c0_i32_1 : i32, i32, i32
  }
  func.func @transform_13(%arg0: i32) -> (i32, i32, i32) {
    %c0_i32 = arith.constant 0 : i32
    %c0_i32_0 = arith.constant 0 : i32
    %c0_i32_1 = arith.constant 0 : i32
    %c0_i32_2 = arith.constant 0 : i32
    return %c0_i32, %c0_i32_0, %c0_i32_1 : i32, i32, i32
  }
  func.func @transform_14(%arg0: i32) -> (i32, i32, i32) {
    %c0_i32 = arith.constant 0 : i32
    %c0_i32_0 = arith.constant 0 : i32
    %c0_i32_1 = arith.constant 0 : i32
    %c0_i32_2 = arith.constant 0 : i32
    return %c0_i32, %c0_i32_0, %c0_i32_1 : i32, i32, i32
  }
  func.func @transform_15(%arg0: i32) -> (i32, i32, i32) {
    %c0_i32 = arith.constant 0 : i32
    %c0_i32_0 = arith.constant 0 : i32
    %c0_i32_1 = arith.constant 0 : i32
    %c0_i32_2 = arith.constant 0 : i32
    return %c0_i32, %c0_i32_0, %c0_i32_1 : i32, i32, i32
  }
  func.func @transform_16(%arg0: i32) -> (i32, i32, i32) {
    %c0_i32 = arith.constant 0 : i32
    %c0_i32_0 = arith.constant 0 : i32
    %c0_i32_1 = arith.constant 0 : i32
    %c0_i32_2 = arith.constant 0 : i32
    return %c0_i32, %c0_i32_0, %c0_i32_1 : i32, i32, i32
  }
  func.func @transform_17(%arg0: i32) -> (i32, i32) {
    %c0_i32 = arith.constant 0 : i32
    %c0_i32_0 = arith.constant 0 : i32
    %c0_i32_1 = arith.constant 0 : i32
    return %c0_i32, %c0_i32_0 : i32, i32
  }
  func.func @transform_18(%arg0: i32) -> (i32, i32) {
    %c0_i32 = arith.constant 0 : i32
    %c0_i32_0 = arith.constant 0 : i32
    %c0_i32_1 = arith.constant 0 : i32
    return %c0_i32, %c0_i32_0 : i32, i32
  }
  func.func @transform_19(%arg0: i32) -> (i32, i32, i32) {
    %c0_i32 = arith.constant 0 : i32
    %c0_i32_0 = arith.constant 0 : i32
    %c0_i32_1 = arith.constant 0 : i32
    return %arg0, %c0_i32, %c0_i32_0 : i32, i32, i32
  }
}

</mosaic_0001>

<llo_original>
// kernel: transformer_forward.1
$region0: #{transformer_forward.1}
  #allocation0 [shape = 'u32[]', space=smem, size = 0x4, offset = 0x4, fixed_abs, tag = 'smem constant byte address 0x4 - core index']
  #allocation1 [shape = 'u32[144,128]{1,0:T(1,128)}', space=vmem, size = 0x12000, scoped, tag = 'internal scratch']
  #allocation2 [shape = 'f32[17,32]{1,0:T(8,128)}', space=vmem, size = 0x3000, scoped, tag = 'scratch operand']
  %s0 = inlined_call_operand.vmem [shape: f32[2,16,48], index: 0, kind: input, shape index: {}]
  %s1 = inlined_call_operand.vmem [shape: f32[48,32], index: 1, kind: input, shape index: {}]
  %s2 = inlined_call_operand.vmem [shape: f32[1,32], index: 2, kind: input, shape index: {}]
  %s3 = inlined_call_operand.vmem [shape: f32[1,32], index: 3, kind: input, shape index: {}]
  %s4 = inlined_call_operand.vmem [shape: f32[17,32], index: 4, kind: input, shape index: {}]
  %s5 = inlined_call_operand.vmem [shape: f32[2,1,32], index: 5, kind: input, shape index: {}]
  %s6 = inlined_call_operand.vmem [shape: f32[2,1,32], index: 6, kind: input, shape index: {}]
  %s7 = inlined_call_operand.vmem [shape: f32[2,32,96], index: 7, kind: input, shape index: {}]
  %s8 = inlined_call_operand.vmem [shape: f32[2,1,96], index: 8, kind: input, shape index: {}]
  %s9 = inlined_call_operand.vmem [shape: f32[2,32,32], index: 9, kind: input, shape index: {}]
  %s10 = inlined_call_operand.vmem [shape: f32[2,1,32], index: 10, kind: input, shape index: {}]
  %s11 = inlined_call_operand.vmem [shape: f32[2,1,32], index: 11, kind: input, shape index: {}]
  %s12 = inlined_call_operand.vmem [shape: f32[2,1,32], index: 12, kind: input, shape index: {}]
  %s13 = inlined_call_operand.vmem [shape: f32[2,32,64], index: 13, kind: input, shape index: {}]
  %s14 = inlined_call_operand.vmem [shape: f32[2,1,64], index: 14, kind: input, shape index: {}]
  %s15 = inlined_call_operand.vmem [shape: f32[2,64,32], index: 15, kind: input, shape index: {}]
  %s16 = inlined_call_operand.vmem [shape: f32[2,1,32], index: 16, kind: input, shape index: {}]
  %s17 = inlined_call_operand.vmem [shape: f32[1,32], index: 17, kind: input, shape index: {}]
  %s18 = inlined_call_operand.vmem [shape: f32[1,32], index: 18, kind: input, shape index: {}]
  %s19 = inlined_call_operand.vmem [shape: f32[2,17,32], index: 19, kind: output, shape index: {}]
  %s20 = sld [smem:[#allocation0]]
  $region109: #{transformer_forward.1} parent=0
    _
  %s22 = ssub.s32 1, %s20
  %s23 = scalar_select 0, %s22, %s20
  loop: start=0, step=1, limit=4
  $region2: #{transformer_forward.1} parent=0 // loop_pre_header
    _
  $region3: #{transformer_forward.1} parent=0 // loop_header
    %s25 = sphi 0, %s29
    %p26 = scmp.ge.s32.totalorder %s25, 4
    %s35 = sphi 0, %s37
    %s38 = sphi 0, %s35
    %s39 = sphi 0, %s38
    %s55 = sphi 0, %s39
    %s59 = sphi 0, %s59
    %s61 = sphi 0, %s59
    %s62 = sphi 0, %s61
    %s76 = sphi 0, %s62
    %s80 = sphi 0, %s80
    %s82 = sphi 0, %s80
    %s83 = sphi 0, %s82
    %s97 = sphi 0, %s83
    %s101 = sphi 0, %s101
    %s103 = sphi 0, %s101
    %s104 = sphi 0, %s103
    %s118 = sphi 0, %s104
    %s122 = sphi 0, %s122
    %s124 = sphi 0, %s122
    %s125 = sphi 0, %s124
    %s139 = sphi 0, %s125
    %s143 = sphi 0, %s143
    %s145 = sphi 0, %s143
    %s146 = sphi 0, %s145
    %s160 = sphi 0, %s146
    %s164 = sphi 0, %s164
    %s166 = sphi 0, %s164
    %s167 = sphi 0, %s166
    %s181 = sphi 0, %s167
    %s185 = sphi 0, %s185
    %s187 = sphi 0, %s185
    %s188 = sphi 0, %s187
    %s202 = sphi 0, %s188
    %s206 = sphi 0, %s206
    %s208 = sphi 0, %s206
    %s209 = sphi 0, %s208
    %s223 = sphi 0, %s209
    %s227 = sphi 0, %s227
    %s229 = sphi 0, %s227
    %s230 = sphi 0, %s229
    %s244 = sphi 0, %s230
    %s248 = sphi 0, %s248
    %s250 = sphi 0, %s248
    %s251 = sphi 0, %s250
    %s265 = sphi 0, %s251
    %s269 = sphi 0, %s269
    %s271 = sphi 0, %s269
    %s272 = sphi 0, %s271
    %s286 = sphi 0, %s272
    %s290 = sphi 0, %s290
    %s292 = sphi 0, %s290
    %s293 = sphi 0, %s292
    %s307 = sphi 0, %s293
    %s311 = sphi 0, %s311
    %s313 = sphi 0, %s311
    %s314 = sphi 0, %s313
    %s328 = sphi 0, %s314
    %s332 = sphi 0, %s332
    %s334 = sphi 0, %s332
    %s335 = sphi 0, %s334
    %s349 = sphi 0, %s335
    %s353 = sphi 0, %s353
    %s355 = sphi 0, %s353
    %s356 = sphi 0, %s355
    %s370 = sphi 0, %s356
    %s374 = sphi 0, %s374
    %s376 = sphi 0, %s374
    %s377 = sphi 0, %s376
    %s391 = sphi 0, %s377
    %s395 = sphi 0, %s395
    %s397 = sphi 0, %s395
    %s398 = sphi 0, %s397
    %s412 = sphi 0, %s398
    %s416 = sphi 0, %s416
    %s418 = sphi 0, %s416
    %s419 = sphi 0, %s418
    %s433 = sphi 0, %s419
    %s439 = sphi 0, %s441
    %s442 = sphi 0, %s439
    %s443 = sphi 0, %s442
    %s459 = sphi 0, %s443
  $region4: #{transformer_forward.1} parent=0 // loop_header_branch
    %28 = sbr.rel (%p26) target = $region8
  $region5: #{transformer_forward.1} parent=0 // loop_body
    %s30 = ssub.s32 %s25, 1
    %s31 = ssub.s32 %s25, 2
    %s32 = sadd.s32 %s25, 1
    %s33 = ssub.s32 %s25, %s32
    %p34 = scmp.eq.s32.totalorder %s33, 0
    %s36 = sadd.s32 %s35, 1
    %s37 = scalar_select %p34, %s35, %s36
    %p40 = pneg %p34
    %p41 = scmp.eq.s32.totalorder %s25, 1
    %p42 = por %p40, %p41
    %p43 = scmp.ne.s32.totalorder %s35, %s38
    %p44 = scmp.eq.s32.totalorder %s25, 0
    %p45 = por %p43, %p44
    %p46 = scmp.ne.s32.totalorder %s35, %s38
    %p47 = scmp.eq.s32.totalorder %s30, 1
    %p48 = por %p46, %p47
    %p49 = scmp.ne.s32.totalorder %s38, %s39
    %p50 = scmp.eq.s32.totalorder %s30, 0
    %p51 = por %p49, %p50
    %p52 = scmp.ne.s32.totalorder %s38, %s39
    %p53 = scmp.eq.s32.totalorder %s31, 1
    %p54 = por %p52, %p53
    %p56 = scmp.ne.s32.totalorder %s39, %s55
    %p57 = scmp.eq.s32.totalorder %s31, 0
    %p58 = por %p56, %p57
    %s60 = sadd.s32 %s59, 1
    %p63 = scmp.eq.s32.totalorder %s25, 1
    %p64 = scmp.ne.s32.totalorder %s59, %s61
    %p65 = scmp.eq.s32.totalorder %s25, 0
    %p66 = por %p64, %p65
    %p67 = scmp.ne.s32.totalorder %s59, %s61
    %p68 = scmp.eq.s32.totalorder %s30, 1
    %p69 = por %p67, %p68
    %p70 = scmp.ne.s32.totalorder %s61, %s62
    %p71 = scmp.eq.s32.totalorder %s30, 0
    %p72 = por %p70, %p71
    %p73 = scmp.ne.s32.totalorder %s61, %s62
    %p74 = scmp.eq.s32.totalorder %s31, 1
    %p75 = por %p73, %p74
    %p77 = scmp.ne.s32.totalorder %s62, %s76
    %p78 = scmp.eq.s32.totalorder %s31, 0
    %p79 = por %p77, %p78
    %s81 = sadd.s32 %s80, 1
    %p84 = scmp.eq.s32.totalorder %s25, 1
    %p85 = scmp.ne.s32.totalorder %s80, %s82
    %p86 = scmp.eq.s32.totalorder %s25, 0
    %p87 = por %p85, %p86
    %p88 = scmp.ne.s32.totalorder %s80, %s82
    %p89 = scmp.eq.s32.totalorder %s30, 1
    %p90 = por %p88, %p89
    %p91 = scmp.ne.s32.totalorder %s82, %s83
    %p92 = scmp.eq.s32.totalorder %s30, 0
    %p93 = por %p91, %p92
    %p94 = scmp.ne.s32.totalorder %s82, %s83
    %p95 = scmp.eq.s32.totalorder %s31, 1
    %p96 = por %p94, %p95
    %p98 = scmp.ne.s32.totalorder %s83, %s97
    %p99 = scmp.eq.s32.totalorder %s31, 0
    %p100 = por %p98, %p99
    %s102 = sadd.s32 %s101, 1
    %p105 = scmp.eq.s32.totalorder %s25, 1
    %p106 = scmp.ne.s32.totalorder %s101, %s103
    %p107 = scmp.eq.s32.totalorder %s25, 0
    %p108 = por %p106, %p107
    %p109 = scmp.ne.s32.totalorder %s101, %s103
    %p110 = scmp.eq.s32.totalorder %s30, 1
    %p111 = por %p109, %p110
    %p112 = scmp.ne.s32.totalorder %s103, %s104
    %p113 = scmp.eq.s32.totalorder %s30, 0
    %p114 = por %p112, %p113
    %p115 = scmp.ne.s32.totalorder %s103, %s104
    %p116 = scmp.eq.s32.totalorder %s31, 1
    %p117 = por %p115, %p116
    %p119 = scmp.ne.s32.totalorder %s104, %s118
    %p120 = scmp.eq.s32.totalorder %s31, 0
    %p121 = por %p119, %p120
    %s123 = sadd.s32 %s122, 1
    %p126 = scmp.eq.s32.totalorder %s25, 1
    %p127 = scmp.ne.s32.totalorder %s122, %s124
    %p128 = scmp.eq.s32.totalorder %s25, 0
    %p129 = por %p127, %p128
    %p130 = scmp.ne.s32.totalorder %s122, %s124
    %p131 = scmp.eq.s32.totalorder %s30, 1
    %p132 = por %p130, %p131
    %p133 = scmp.ne.s32.totalorder %s124, %s125
    %p134 = scmp.eq.s32.totalorder %s30, 0
    %p135 = por %p133, %p134
    %p136 = scmp.ne.s32.totalorder %s124, %s125
    %p137 = scmp.eq.s32.totalorder %s31, 1
    %p138 = por %p136, %p137
    %p140 = scmp.ne.s32.totalorder %s125, %s139
    %p141 = scmp.eq.s32.totalorder %s31, 0
    %p142 = por %p140, %p141
    %s144 = sadd.s32 %s143, 1
    %p147 = scmp.eq.s32.totalorder %s25, 1
    %p148 = scmp.ne.s32.totalorder %s143, %s145
    %p149 = scmp.eq.s32.totalorder %s25, 0
    %p150 = por %p148, %p149
    %p151 = scmp.ne.s32.totalorder %s143, %s145
    %p152 = scmp.eq.s32.totalorder %s30, 1
    %p153 = por %p151, %p152
    %p154 = scmp.ne.s32.totalorder %s145, %s146
    %p155 = scmp.eq.s32.totalorder %s30, 0
    %p156 = por %p154, %p155
    %p157 = scmp.ne.s32.totalorder %s145, %s146
    %p158 = scmp.eq.s32.totalorder %s31, 1
    %p159 = por %p157, %p158
    %p161 = scmp.ne.s32.totalorder %s146, %s160
    %p162 = scmp.eq.s32.totalorder %s31, 0
    %p163 = por %p161, %p162
    %s165 = sadd.s32 %s164, 1
    %p168 = scmp.eq.s32.totalorder %s25, 1
    %p169 = scmp.ne.s32.totalorder %s164, %s166
    %p170 = scmp.eq.s32.totalorder %s25, 0
    %p171 = por %p169, %p170
    %p172 = scmp.ne.s32.totalorder %s164, %s166
    %p173 = scmp.eq.s32.totalorder %s30, 1
    %p174 = por %p172, %p173
    %p175 = scmp.ne.s32.totalorder %s166, %s167
    %p176 = scmp.eq.s32.totalorder %s30, 0
    %p177 = por %p175, %p176
    %p178 = scmp.ne.s32.totalorder %s166, %s167
    %p179 = scmp.eq.s32.totalorder %s31, 1
    %p180 = por %p178, %p179
    %p182 = scmp.ne.s32.totalorder %s167, %s181
    %p183 = scmp.eq.s32.totalorder %s31, 0
    %p184 = por %p182, %p183
    %s186 = sadd.s32 %s185, 1
    %p189 = scmp.eq.s32.totalorder %s25, 1
    %p190 = scmp.ne.s32.totalorder %s185, %s187
    %p191 = scmp.eq.s32.totalorder %s25, 0
    %p192 = por %p190, %p191
    %p193 = scmp.ne.s32.totalorder %s185, %s187
    %p194 = scmp.eq.s32.totalorder %s30, 1
    %p195 = por %p193, %p194
    %p196 = scmp.ne.s32.totalorder %s187, %s188
    %p197 = scmp.eq.s32.totalorder %s30, 0
    %p198 = por %p196, %p197
    %p199 = scmp.ne.s32.totalorder %s187, %s188
    %p200 = scmp.eq.s32.totalorder %s31, 1
    %p201 = por %p199, %p200
    %p203 = scmp.ne.s32.totalorder %s188, %s202
    %p204 = scmp.eq.s32.totalorder %s31, 0
    %p205 = por %p203, %p204
    %s207 = sadd.s32 %s206, 1
    %p210 = scmp.eq.s32.totalorder %s25, 1
    %p211 = scmp.ne.s32.totalorder %s206, %s208
    %p212 = scmp.eq.s32.totalorder %s25, 0
    %p213 = por %p211, %p212
    %p214 = scmp.ne.s32.totalorder %s206, %s208
    %p215 = scmp.eq.s32.totalorder %s30, 1
    %p216 = por %p214, %p215
    %p217 = scmp.ne.s32.totalorder %s208, %s209
    %p218 = scmp.eq.s32.totalorder %s30, 0
    %p219 = por %p217, %p218
    %p220 = scmp.ne.s32.totalorder %s208, %s209
    %p221 = scmp.eq.s32.totalorder %s31, 1
    %p222 = por %p220, %p221
    %p224 = scmp.ne.s32.totalorder %s209, %s223
    %p225 = scmp.eq.s32.totalorder %s31, 0
    %p226 = por %p224, %p225
    %s228 = sadd.s32 %s227, 1
    %p231 = scmp.eq.s32.totalorder %s25, 1
    %p232 = scmp.ne.s32.totalorder %s227, %s229
    %p233 = scmp.eq.s32.totalorder %s25, 0
    %p234 = por %p232, %p233
    %p235 = scmp.ne.s32.totalorder %s227, %s229
    %p236 = scmp.eq.s32.totalorder %s30, 1
    %p237 = por %p235, %p236
    %p238 = scmp.ne.s32.totalorder %s229, %s230
    %p239 = scmp.eq.s32.totalorder %s30, 0
    %p240 = por %p238, %p239
    %p241 = scmp.ne.s32.totalorder %s229, %s230
    %p242 = scmp.eq.s32.totalorder %s31, 1
    %p243 = por %p241, %p242
    %p245 = scmp.ne.s32.totalorder %s230, %s244
    %p246 = scmp.eq.s32.totalorder %s31, 0
    %p247 = por %p245, %p246
    %s249 = sadd.s32 %s248, 1
    %p252 = scmp.eq.s32.totalorder %s25, 1
    %p253 = scmp.ne.s32.totalorder %s248, %s250
    %p254 = scmp.eq.s32.totalorder %s25, 0
    %p255 = por %p253, %p254
    %p256 = scmp.ne.s32.totalorder %s248, %s250
    %p257 = scmp.eq.s32.totalorder %s30, 1
    %p258 = por %p256, %p257
    %p259 = scmp.ne.s32.totalorder %s250, %s251
    %p260 = scmp.eq.s32.totalorder %s30, 0
    %p261 = por %p259, %p260
    %p262 = scmp.ne.s32.totalorder %s250, %s251
    %p263 = scmp.eq.s32.totalorder %s31, 1
    %p264 = por %p262, %p263
    %p266 = scmp.ne.s32.totalorder %s251, %s265
    %p267 = scmp.eq.s32.totalorder %s31, 0
    %p268 = por %p266, %p267
    %s270 = sadd.s32 %s269, 1
    %p273 = scmp.eq.s32.totalorder %s25, 1
    %p274 = scmp.ne.s32.totalorder %s269, %s271
    %p275 = scmp.eq.s32.totalorder %s25, 0
    %p276 = por %p274, %p275
    %p277 = scmp.ne.s32.totalorder %s269, %s271
    %p278 = scmp.eq.s32.totalorder %s30, 1
    %p279 = por %p277, %p278
    %p280 = scmp.ne.s32.totalorder %s271, %s272
    %p281 = scmp.eq.s32.totalorder %s30, 0
    %p282 = por %p280, %p281
    %p283 = scmp.ne.s32.totalorder %s271, %s272
    %p284 = scmp.eq.s32.totalorder %s31, 1
    %p285 = por %p283, %p284
    %p287 = scmp.ne.s32.totalorder %s272, %s286
    %p288 = scmp.eq.s32.totalorder %s31, 0
    %p289 = por %p287, %p288
    %s291 = sadd.s32 %s290, 1
    %p294 = scmp.eq.s32.totalorder %s25, 1
    %p295 = scmp.ne.s32.totalorder %s290, %s292
    %p296 = scmp.eq.s32.totalorder %s25, 0
    %p297 = por %p295, %p296
    %p298 = scmp.ne.s32.totalorder %s290, %s292
    %p299 = scmp.eq.s32.totalorder %s30, 1
    %p300 = por %p298, %p299
    %p301 = scmp.ne.s32.totalorder %s292, %s293
    %p302 = scmp.eq.s32.totalorder %s30, 0
    %p303 = por %p301, %p302
    %p304 = scmp.ne.s32.totalorder %s292, %s293
    %p305 = scmp.eq.s32.totalorder %s31, 1
    %p306 = por %p304, %p305
    %p308 = scmp.ne.s32.totalorder %s293, %s307
    %p309 = scmp.eq.s32.totalorder %s31, 0
    %p310 = por %p308, %p309
    %s312 = sadd.s32 %s311, 1
    %p315 = scmp.eq.s32.totalorder %s25, 1
    %p316 = scmp.ne.s32.totalorder %s311, %s313
    %p317 = scmp.eq.s32.totalorder %s25, 0
    %p318 = por %p316, %p317
    %p319 = scmp.ne.s32.totalorder %s311, %s313
    %p320 = scmp.eq.s32.totalorder %s30, 1
    %p321 = por %p319, %p320
    %p322 = scmp.ne.s32.totalorder %s313, %s314
    %p323 = scmp.eq.s32.totalorder %s30, 0
    %p324 = por %p322, %p323
    %p325 = scmp.ne.s32.totalorder %s313, %s314
    %p326 = scmp.eq.s32.totalorder %s31, 1
    %p327 = por %p325, %p326
    %p329 = scmp.ne.s32.totalorder %s314, %s328
    %p330 = scmp.eq.s32.totalorder %s31, 0
    %p331 = por %p329, %p330
    %s333 = sadd.s32 %s332, 1
    %p336 = scmp.eq.s32.totalorder %s25, 1
    %p337 = scmp.ne.s32.totalorder %s332, %s334
    %p338 = scmp.eq.s32.totalorder %s25, 0
    %p339 = por %p337, %p338
    %p340 = scmp.ne.s32.totalorder %s332, %s334
    %p341 = scmp.eq.s32.totalorder %s30, 1
    %p342 = por %p340, %p341
    %p343 = scmp.ne.s32.totalorder %s334, %s335
    %p344 = scmp.eq.s32.totalorder %s30, 0
    %p345 = por %p343, %p344
    %p346 = scmp.ne.s32.totalorder %s334, %s335
    %p347 = scmp.eq.s32.totalorder %s31, 1
    %p348 = por %p346, %p347
    %p350 = scmp.ne.s32.totalorder %s335, %s349
    %p351 = scmp.eq.s32.totalorder %s31, 0
    %p352 = por %p350, %p351
    %s354 = sadd.s32 %s353, 1
    %p357 = scmp.eq.s32.totalorder %s25, 1
    %p358 = scmp.ne.s32.totalorder %s353, %s355
    %p359 = scmp.eq.s32.totalorder %s25, 0
    %p360 = por %p358, %p359
    %p361 = scmp.ne.s32.totalorder %s353, %s355
    %p362 = scmp.eq.s32.totalorder %s30, 1
    %p363 = por %p361, %p362
    %p364 = scmp.ne.s32.totalorder %s355, %s356
    %p365 = scmp.eq.s32.totalorder %s30, 0
    %p366 = por %p364, %p365
    %p367 = scmp.ne.s32.totalorder %s355, %s356
    %p368 = scmp.eq.s32.totalorder %s31, 1
    %p369 = por %p367, %p368
    %p371 = scmp.ne.s32.totalorder %s356, %s370
    %p372 = scmp.eq.s32.totalorder %s31, 0
    %p373 = por %p371, %p372
    %s375 = sadd.s32 %s374, 1
    %p378 = scmp.eq.s32.totalorder %s25, 1
    %p379 = scmp.ne.s32.totalorder %s374, %s376
    %p380 = scmp.eq.s32.totalorder %s25, 0
    %p381 = por %p379, %p380
    %p382 = scmp.ne.s32.totalorder %s374, %s376
    %p383 = scmp.eq.s32.totalorder %s30, 1
    %p384 = por %p382, %p383
    %p385 = scmp.ne.s32.totalorder %s376, %s377
    %p386 = scmp.eq.s32.totalorder %s30, 0
    %p387 = por %p385, %p386
    %p388 = scmp.ne.s32.totalorder %s376, %s377
    %p389 = scmp.eq.s32.totalorder %s31, 1
    %p390 = por %p388, %p389
    %p392 = scmp.ne.s32.totalorder %s377, %s391
    %p393 = scmp.eq.s32.totalorder %s31, 0
    %p394 = por %p392, %p393
    %s396 = sadd.s32 %s395, 1
    %p399 = scmp.eq.s32.totalorder %s25, 1
    %p400 = scmp.ne.s32.totalorder %s395, %s397
    %p401 = scmp.eq.s32.totalorder %s25, 0
    %p402 = por %p400, %p401
    %p403 = scmp.ne.s32.totalorder %s395, %s397
    %p404 = scmp.eq.s32.totalorder %s30, 1
    %p405 = por %p403, %p404
    %p406 = scmp.ne.s32.totalorder %s397, %s398
    %p407 = scmp.eq.s32.totalorder %s30, 0
    %p408 = por %p406, %p407
    %p409 = scmp.ne.s32.totalorder %s397, %s398
    %p410 = scmp.eq.s32.totalorder %s31, 1
    %p411 = por %p409, %p410
    %p413 = scmp.ne.s32.totalorder %s398, %s412
    %p414 = scmp.eq.s32.totalorder %s31, 0
    %p415 = por %p413, %p414
    %s417 = sadd.s32 %s416, 1
    %p420 = scmp.eq.s32.totalorder %s25, 1
    %p421 = scmp.ne.s32.totalorder %s416, %s418
    %p422 = scmp.eq.s32.totalorder %s25, 0
    %p423 = por %p421, %p422
    %p424 = scmp.ne.s32.totalorder %s416, %s418
    %p425 = scmp.eq.s32.totalorder %s30, 1
    %p426 = por %p424, %p425
    %p427 = scmp.ne.s32.totalorder %s418, %s419
    %p428 = scmp.eq.s32.totalorder %s30, 0
    %p429 = por %p427, %p428
    %p430 = scmp.ne.s32.totalorder %s418, %s419
    %p431 = scmp.eq.s32.totalorder %s31, 1
    %p432 = por %p430, %p431
    %p434 = scmp.ne.s32.totalorder %s419, %s433
    %p435 = scmp.eq.s32.totalorder %s31, 0
    %p436 = por %p434, %p435
    %s437 = ssub.s32 %s25, %s32
    %p438 = scmp.eq.s32.totalorder %s437, 0
    %s440 = sadd.s32 %s439, 1
    %s441 = scalar_select %p438, %s439, %s440
    %p444 = pneg %p438
    %p445 = scmp.eq.s32.totalorder %s25, 1
    %p446 = por %p444, %p445
    %p447 = scmp.ne.s32.totalorder %s439, %s442
    %p448 = scmp.eq.s32.totalorder %s25, 0
    %p449 = por %p447, %p448
    %p450 = scmp.ne.s32.totalorder %s439, %s442
    %p451 = scmp.eq.s32.totalorder %s30, 1
    %p452 = por %p450, %p451
    %p453 = scmp.ne.s32.totalorder %s442, %s443
    %p454 = scmp.eq.s32.totalorder %s30, 0
    %p455 = por %p453, %p454
    %p456 = scmp.ne.s32.totalorder %s442, %s443
    %p457 = scmp.eq.s32.totalorder %s31, 1
    %p458 = por %p456, %p457
    %p460 = scmp.ne.s32.totalorder %s443, %s459
    %p461 = scmp.eq.s32.totalorder %s31, 0
    %p462 = por %p460, %p461
    %p463 = scmp.le.s32.totalorder 1, %s25
    %p464 = scmp.lt.s32.totalorder %s25, 3
    %p465 = pnand %p463, %p464
    %p466 = pneg %p465
    // Predicated region
    $region9: #{transformer_forward.1} parent=5 // pred_check
      _
    $region10: #{transformer_forward.1} parent=5 // pred_check_branch
      %468 = sbr.rel (%p465) target = $region12
    $region11: #{transformer_forward.1} parent=5 // pred_region
      %s469 = ssub.s32 %s25, 1
      // Predicated region
      $region13: #{transformer_forward.1} parent=11 // pred_check
        %p470 = pneg %p72
      $region14: #{transformer_forward.1} parent=11 // pred_check_branch
        %472 = sbr.rel (%p470) target = $region16
      $region15: #{transformer_forward.1} parent=11 // pred_region
        _
      $region16: #{transformer_forward.1} parent=11 // pred_fallthru
        _
      // Predicated region
      $region17: #{transformer_forward.1} parent=11 // pred_check
        %p473 = pneg %p93
      $region18: #{transformer_forward.1} parent=11 // pred_check_branch
        %475 = sbr.rel (%p473) target = $region20
      $region19: #{transformer_forward.1} parent=11 // pred_region
        _
      $region20: #{transformer_forward.1} parent=11 // pred_fallthru
        _
      // Predicated region
      $region21: #{transformer_forward.1} parent=11 // pred_check
        %p476 = pneg %p114
      $region22: #{transformer_forward.1} parent=11 // pred_check_branch
        %478 = sbr.rel (%p476) target = $region24
      $region23: #{transformer_forward.1} parent=11 // pred_region
        _
      $region24: #{transformer_forward.1} parent=11 // pred_fallthru
        _
      // Predicated region
      $region25: #{transformer_forward.1} parent=11 // pred_check
        %p479 = pneg %p135
      $region26: #{transformer_forward.1} parent=11 // pred_check_branch
        %481 = sbr.rel (%p479) target = $region28
      $region27: #{transformer_forward.1} parent=11 // pred_region
        _
      $region28: #{transformer_forward.1} parent=11 // pred_fallthru
        _
      // Predicated region
      $region29: #{transformer_forward.1} parent=11 // pred_check
        %p482 = pneg %p156
      $region30: #{transformer_forward.1} parent=11 // pred_check_branch
        %484 = sbr.rel (%p482) target = $region32
      $region31: #{transformer_forward.1} parent=11 // pred_region
        _
      $region32: #{transformer_forward.1} parent=11 // pred_fallthru
        _
      // Predicated region
      $region33: #{transformer_forward.1} parent=11 // pred_check
        %p485 = pneg %p177
      $region34: #{transformer_forward.1} parent=11 // pred_check_branch
        %487 = sbr.rel (%p485) target = $region36
      $region35: #{transformer_forward.1} parent=11 // pred_region
        _
      $region36: #{transformer_forward.1} parent=11 // pred_fallthru
        _
      // Predicated region
      $region37: #{transformer_forward.1} parent=11 // pred_check
        %p488 = pneg %p198
      $region38: #{transformer_forward.1} parent=11 // pred_check_branch
        %490 = sbr.rel (%p488) target = $region40
      $region39: #{transformer_forward.1} parent=11 // pred_region
        _
      $region40: #{transformer_forward.1} parent=11 // pred_fallthru
        _
      // Predicated region
      $region41: #{transformer_forward.1} parent=11 // pred_check
        %p491 = pneg %p219
      $region42: #{transformer_forward.1} parent=11 // pred_check_branch
        %493 = sbr.rel (%p491) target = $region44
      $region43: #{transformer_forward.1} parent=11 // pred_region
        _
      $region44: #{transformer_forward.1} parent=11 // pred_fallthru
        _
      // Predicated region
      $region45: #{transformer_forward.1} parent=11 // pred_check
        %p494 = pneg %p240
      $region46: #{transformer_forward.1} parent=11 // pred_check_branch
        %496 = sbr.rel (%p494) target = $region48
      $region47: #{transformer_forward.1} parent=11 // pred_region
        _
      $region48: #{transformer_forward.1} parent=11 // pred_fallthru
        _
      // Predicated region
      $region49: #{transformer_forward.1} parent=11 // pred_check
        %p497 = pneg %p261
      $region50: #{transformer_forward.1} parent=11 // pred_check_branch
        %499 = sbr.rel (%p497) target = $region52
      $region51: #{transformer_forward.1} parent=11 // pred_region
        _
      $region52: #{transformer_forward.1} parent=11 // pred_fallthru
        _
      // Predicated region
      $region53: #{transformer_forward.1} parent=11 // pred_check
        %p500 = pneg %p282
      $region54: #{transformer_forward.1} parent=11 // pred_check_branch
        %502 = sbr.rel (%p500) target = $region56
      $region55: #{transformer_forward.1} parent=11 // pred_region
        _
      $region56: #{transformer_forward.1} parent=11 // pred_fallthru
        _
      // Predicated region
      $region57: #{transformer_forward.1} parent=11 // pred_check
        %p503 = pneg %p303
      $region58: #{transformer_forward.1} parent=11 // pred_check_branch
        %505 = sbr.rel (%p503) target = $region60
      $region59: #{transformer_forward.1} parent=11 // pred_region
        _
      $region60: #{transformer_forward.1} parent=11 // pred_fallthru
        _
      // Predicated region
      $region61: #{transformer_forward.1} parent=11 // pred_check
        %p506 = pneg %p324
      $region62: #{transformer_forward.1} parent=11 // pred_check_branch
        %508 = sbr.rel (%p506) target = $region64
      $region63: #{transformer_forward.1} parent=11 // pred_region
        _
      $region64: #{transformer_forward.1} parent=11 // pred_fallthru
        _
      // Predicated region
      $region65: #{transformer_forward.1} parent=11 // pred_check
        %p509 = pneg %p345
      $region66: #{transformer_forward.1} parent=11 // pred_check_branch
        %511 = sbr.rel (%p509) target = $region68
      $region67: #{transformer_forward.1} parent=11 // pred_region
        _
      $region68: #{transformer_forward.1} parent=11 // pred_fallthru
        _
      // Predicated region
      $region69: #{transformer_forward.1} parent=11 // pred_check
        %p512 = pneg %p366
      $region70: #{transformer_forward.1} parent=11 // pred_check_branch
        %514 = sbr.rel (%p512) target = $region72
      $region71: #{transformer_forward.1} parent=11 // pred_region
        _
      $region72: #{transformer_forward.1} parent=11 // pred_fallthru
        _
      // Predicated region
      $region73: #{transformer_forward.1} parent=11 // pred_check
        %p515 = pneg %p387
      $region74: #{transformer_forward.1} parent=11 // pred_check_branch
        %517 = sbr.rel (%p515) target = $region76
      $region75: #{transformer_forward.1} parent=11 // pred_region
        _
      $region76: #{transformer_forward.1} parent=11 // pred_fallthru
        _
      // Predicated region
      $region77: #{transformer_forward.1} parent=11 // pred_check
        %p518 = pneg %p408
      $region78: #{transformer_forward.1} parent=11 // pred_check_branch
        %520 = sbr.rel (%p518) target = $region80
      $region79: #{transformer_forward.1} parent=11 // pred_region
        _
      $region80: #{transformer_forward.1} parent=11 // pred_fallthru
        _
      // Predicated region
      $region81: #{transformer_forward.1} parent=11 // pred_check
        %p521 = pneg %p429
      $region82: #{transformer_forward.1} parent=11 // pred_check_branch
        %523 = sbr.rel (%p521) target = $region84
      $region83: #{transformer_forward.1} parent=11 // pred_region
        _
      $region84: #{transformer_forward.1} parent=11 // pred_fallthru
        _
    $region12: #{transformer_forward.1} parent=5 // pred_fallthru
      _
    %p524 = scmp.lt.s32.totalorder %s25, 2
    // Predicated region
    $region85: #{transformer_forward.1} parent=5 // pred_check
      %p525 = pneg %p524
    $region86: #{transformer_forward.1} parent=5 // pred_check_branch
      %527 = sbr.rel (%p525) target = $region88
    $region87: #{transformer_forward.1} parent=5 // pred_region
      // Predicated region
      $region89: #{transformer_forward.1} parent=87 // pred_check
        %p528 = pneg %p45
      $region90: #{transformer_forward.1} parent=87 // pred_check_branch
        %530 = sbr.rel (%p528) target = $region92
      $region91: #{transformer_forward.1} parent=87 // pred_region
        %p531 = scmp.lt.s32.totalorder %s25, 1
        %s532 = scalar_select %p531, %s25, 1
        %s533 = smul.addr %s532, 2
        %s534 = smul.addr %s533, 8
        %s535 = scalar_lea.vmem %s0, %s534
      $region92: #{transformer_forward.1} parent=87 // pred_fallthru
        _
    $region88: #{transformer_forward.1} parent=5 // pred_fallthru
      _
    %p536 = scmp.le.s32.totalorder 1, %s25
    %p537 = scmp.lt.s32.totalorder %s25, 3
    %p538 = pnand %p536, %p537
    %p539 = pneg %p538
    // Predicated region
    $region93: #{transformer_forward.1} parent=5 // pred_check
      _
    $region94: #{transformer_forward.1} parent=5 // pred_check_branch
      %541 = sbr.rel (%p538) target = $region96
    $region95: #{transformer_forward.1} parent=5 // pred_region
      %s542 = ssub.s32 %s25, 1
      %p543 = scmp.lt.s32.totalorder %s30, 1
      %s544 = scalar_select %p543, %s30, 1
      %s545 = smul.addr %s544, 2
      %s546 = smul.addr %s545, 8
      %s547 = scalar_lea.vmem %s0, %s546
      %p548 = pneg %p51
      %p549 = pneg %p48
      %p550 = pneg %p72
      %p551 = pneg %p69
      %p552 = pneg %p93
      %p553 = pneg %p90
      %p554 = pneg %p114
      %p555 = pneg %p111
      %p556 = pneg %p135
      %p557 = pneg %p132
      %p558 = pneg %p156
      %p559 = pneg %p153
      %p560 = pneg %p177
      %p561 = pneg %p174
      %p562 = pneg %p198
      %p563 = pneg %p195
      %p564 = pneg %p219
      %p565 = pneg %p216
      %p566 = pneg %p240
      %p567 = pneg %p237
      %p568 = pneg %p261
      %p569 = pneg %p258
      %p570 = pneg %p282
      %p571 = pneg %p279
      %p572 = pneg %p303
      %p573 = pneg %p300
      %p574 = pneg %p324
      %p575 = pneg %p321
      %p576 = pneg %p345
      %p577 = pneg %p342
      %p578 = pneg %p366
      %p579 = pneg %p363
      %p580 = pneg %p387
      %p581 = pneg %p384
      %p582 = pneg %p408
      %p583 = pneg %p405
      %p584 = pneg %p429
      %p585 = pneg %p426
      %p586 = pneg %p455
      %p587 = pneg %p452
      %p588 = scmp.lt.s32.totalorder %s30, 1
      %s589 = scalar_select %p588, %s30, 1
      %s590 = smul.addr %s589, 3
      %s591 = smul.addr %s590, 8
      %s592 = scalar_lea.vmem %s19, %s591
      %p593 = scmp.lt.s32.totalorder %s30, 1
      %s594 = scalar_select %p593, %s30, 1
      %s595 = smul.addr %s594, 2
      %s596 = smul.addr %s595, 8
      %s597 = scalar_lea.vmem %s0, %s596
      %p598 = scmp.lt.s32.totalorder %s30, 1
      %s599 = scalar_select %p598, %s30, 1
      %s600 = smul.addr %s599, 3
      %s601 = smul.addr %s600, 8
      %s602 = scalar_lea.vmem %s19, %s601
      %v603 = vld [vmem:[%s597] sm:$0xff]
      %v604 = vld [vmem:[%s597 + $0x8] sm:$0xff]
      %v605 = vld [vmem:[%s1] sm:$0xff]
      %v606 = vld [vmem:[%s1 + $0x8] sm:$0xff]
      %v607 = vld [vmem:[%s1 + $0x10] sm:$0xff]
      %v608 = vld [vmem:[%s1 + $0x18] sm:$0xff]
      %v609 = vld [vmem:[%s1 + $0x20] sm:$0xff]
      %v610 = vld [vmem:[%s1 + $0x28] sm:$0xff]
      %v611 = vld [vmem:[%s2] sm:$0x1]
      %v613 = vlaneseq
      %v614 = vshrl.u32 %v613, 7
      %v615 = vsub.s32 0, %v614
      %v616 = vrot.slane %v611, %v615
      %vm618 = vcmask 392192
      %v620 = vsel %vm618, %v603, 0
      %v623 = vsel %vm618, %v604, 0
      %625 = vmatprep.subr.mxu0 0.0
      %626 = vmatpush1.msra.mxu0 0.0
      %627 = vmatprep.subr.mxu0 0.0
      %628 = vmatpush1.msra.mxu0 0.0
      %629 = vmatprep.subr.mxu0 0.0
      %630 = vmatpush1.msra.mxu0 0.0
      %631 = vmatprep.subr.mxu0 0.0
      %632 = vmatpush1.msra.mxu0 0.0
      %633 = vmatprep.subr.mxu0 0.0
      %634 = vmatpush1.msra.mxu0 0.0
      %635 = vmatprep.subr.mxu0 0.0
      %636 = vmatpush1.msra.mxu0 0.0
      %637 = vmatprep.subr.mxu0 0.0
      %638 = vmatpush1.msra.mxu0 0.0
      %639 = vmatprep.subr.mxu0 0.0
      %640 = vmatpush1.msra.mxu0 0.0
      %641 = vmatprep.subr.mxu0 0.0
      %642 = vmatpush1.msra.mxu0 0.0
      %643 = vmatprep.subr.mxu0 0.0
      %644 = vmatpush1.msra.mxu0 0.0
      %645 = vmatprep.subr.mxu0 0.0
      %646 = vmatpush1.msra.mxu0 %v610
      %647 = vmatprep.subr.mxu0 0.0
      %648 = vmatpush1.msra.mxu0 %v609
      %649 = vmatprep.subr.mxu0 0.0
      %650 = vmatpush1.msra.mxu0 %v608
      %651 = vmatprep.subr.mxu0 0.0
      %652 = vmatpush1.msra.mxu0 %v607
      %653 = vmatprep.subr.mxu0 0.0
      %654 = vmatpush1.msra.mxu0 %v606
      %655 = vmatprep.subr.mxu0 0.0
      %656 = vmatpush1.msra.mxu0 %v605
      %657 = vmatprep.subr.mxu0 0.0
      %658 = vmatpush2.msra.mxu0 0.0
      %659 = vmatprep.subr.mxu0 0.0
      %660 = vmatpush2.msra.mxu0 0.0
      %661 = vmatprep.subr.mxu0 0.0
      %662 = vmatpush2.msra.mxu0 0.0
      %663 = vmatprep.subr.mxu0 0.0
      %664 = vmatpush2.msra.mxu0 0.0
      %665 = vmatprep.subr.mxu0 0.0
      %666 = vmatpush2.msra.mxu0 0.0
      %667 = vmatprep.subr.mxu0 0.0
      %668 = vmatpush2.msra.mxu0 0.0
      %669 = vmatprep.subr.mxu0 0.0
      %670 = vmatpush2.msra.mxu0 0.0
      %671 = vmatprep.subr.mxu0 0.0
      %672 = vmatpush2.msra.mxu0 0.0
      %673 = vmatprep.subr.mxu0 0.0
      %674 = vmatpush2.msra.mxu0 0.0
      %675 = vmatprep.subr.mxu0 0.0
      %676 = vmatpush2.msra.mxu0 0.0
      %677 = vmatprep.subr.mxu0 0.0
      %678 = vmatpush2.msra.mxu0 0.0
      %679 = vmatprep.subr.mxu0 0.0
      %680 = vmatpush2.msra.mxu0 0.0
      %681 = vmatprep.subr.mxu0 0.0
      %682 = vmatpush2.msra.mxu0 0.0
      %683 = vmatprep.subr.mxu0 0.0
      %684 = vmatpush2.msra.mxu0 0.0
      %685 = vmatprep.subr.mxu0 0.0
      %686 = vmatpush2.msra.mxu0 0.0
      %687 = vmatprep.subr.mxu0 0.0
      %688 = vmatpush2.msra.mxu0 0.0
      %689 = vmatprep.mubr.f32.mxu0 0.0
      %690 = vmatmul.mubr.f32.gmra.mxu0 %v620
      %v691 = vpop.f32.mrf.mxu0
      %v692 = vadd.f32 %v616, %v691
      %v693 = vpop.f32.mrf.mxu0
      %694 = vmatprep.mubr.f32.mxu0 0.0
      %695 = vmatmul.mubr.f32.gmra.mxu0 %v623
      %v696 = vpop.f32.mrf.mxu0
      %v697 = vadd.f32 %v616, %v696
      %v698 = vpop.f32.mrf.mxu0
      %699 = vdwg.mxu0
      %v700 = vld [vmem:[%s3] sm:$0x1]
      %v701 = vld [vmem:[%s4] sm:$0x1]
      %v702 = vadd.f32 %v700, %v701
      %vm703 = vcmask 253952
      %704 = vst.msk [vmem:[#allocation2] sm:$0x1] %vm703, %v702
      %v705 = vld [vmem:[%s4 + $0x1] sm:$0xff]
      %v706 = vld [vmem:[%s4 + $0x9] sm:$0xff]
      %v707 = vadd.f32 %v692, %v705
      %v708 = vadd.f32 %v697, %v706
      %vm709 = vcmask 261120
      %710 = vst.msk [vmem:[#allocation2 + $0x1] sm:$0xff] %vm709, %v707
      %711 = vst.msk [vmem:[#allocation2 + $0x9] sm:$0xff] %vm709, %v708
      %v712 = vld [vmem:[#allocation2] sm:$0xff]
      %v713 = vld [vmem:[#allocation2 + $0x8] sm:$0xff]
      %v714 = vld [vmem:[#allocation2 + $0x10] sm:$0x1]
      %v715 = vld [vmem:[%s5] sm:$0x1]
      %v716 = vld [vmem:[%s6] sm:$0x1]
      %v717 = vsel %vm709, %v712, 0.0
      %718 = vadd.xlane.f32.xlu0 %v717
      %v719 = vpop.xlane.xlu0 %718
      %v720 = vsel %vm709, %v713, 0.0
      %721 = vadd.xlane.f32.xlu0 %v720
      %v722 = vpop.xlane.xlu0 %721
      %v723 = vsel %vm703, %v714, 0.0
      %724 = vadd.xlane.f32.xlu0 %v723
      %v725 = vpop.xlane.xlu0 %724
      %v726 = vrcp.pop 32.0
      %v727 = vmul.f32 %v719, %v726
      %v728 = vmul.f32 %v722, %v726
      %v729 = vmul.f32 %v725, %v726
      %v730 = vsub.f32 %v712, %v727
      %v731 = vsub.f32 %v713, %v728
      %v732 = vsub.f32 %v714, %v729
      %v733 = vmul.f32 %v730, %v730
      %v734 = vmul.f32 %v731, %v731
      %v735 = vmul.f32 %v732, %v732
      %v736 = vsel %vm709, %v733, 0.0
      %737 = vadd.xlane.f32.xlu0 %v736
      %v738 = vpop.xlane.xlu0 %737
      %v739 = vsel %vm709, %v734, 0.0
      %740 = vadd.xlane.f32.xlu0 %v739
      %v741 = vpop.xlane.xlu0 %740
      %v742 = vsel %vm703, %v735, 0.0
      %743 = vadd.xlane.f32.xlu0 %v742
      %v744 = vpop.xlane.xlu0 %743
      %v745 = vmul.f32 %v738, %v726
      %v746 = vmul.f32 %v741, %v726
      %v747 = vmul.f32 %v744, %v726
      %v748 = vadd.f32 %v745, 1e-06
      %v749 = vadd.f32 %v746, 1e-06
      %v750 = vadd.f32 %v747, 1e-06
      %v751 = vrsqrt.pop %v748
      %v752 = vrsqrt.pop %v749
      %v753 = vrsqrt.pop %v750
      %v754 = vmul.f32 %v730, %v751
      %v755 = vmul.f32 %v731, %v752
      %v756 = vmul.f32 %v732, %v753
      %v758 = vlaneseq
      %v759 = vshrl.u32 %v758, 7
      %v760 = vsub.s32 0, %v759
      %v761 = vrot.slane %v715, %v760
      %v763 = vmul.f32 %v754, %v761
      %v764 = vmul.f32 %v755, %v761
      %v765 = vmul.f32 %v756, %v761
      %v767 = vlaneseq
      %v768 = vshrl.u32 %v767, 7
      %v769 = vsub.s32 0, %v768
      %v770 = vrot.slane %v716, %v769
      %v772 = vadd.f32 %v763, %v770
      %v773 = vadd.f32 %v764, %v770
      %v774 = vadd.f32 %v765, %v770
      %v775 = vld [vmem:[%s7] sm:$0xff]
      %v776 = vld [vmem:[%s7 + $0x8] sm:$0xff]
      %v777 = vld [vmem:[%s7 + $0x10] sm:$0xff]
      %v778 = vld [vmem:[%s7 + $0x18] sm:$0xff]
      %v779 = vld [vmem:[%s8] sm:$0x1]
      %v781 = vlaneseq
      %v782 = vshrl.u32 %v781, 7
      %v783 = vsub.s32 0, %v782
      %v784 = vrot.slane %v779, %v783
      %v787 = vsel %vm709, %v772, 0
      %v790 = vsel %vm709, %v773, 0
      %v793 = vsel %vm709, %v774, 0
      %795 = vmatprep.subr.mxu0 0.0
      %796 = vmatpush1.msra.mxu0 0.0
      %797 = vmatprep.subr.mxu0 0.0
      %798 = vmatpush1.msra.mxu0 0.0
      %799 = vmatprep.subr.mxu0 0.0
      %800 = vmatpush1.msra.mxu0 0.0
      %801 = vmatprep.subr.mxu0 0.0
      %802 = vmatpush1.msra.mxu0 0.0
      %803 = vmatprep.subr.mxu0 0.0
      %804 = vmatpush1.msra.mxu0 0.0
      %805 = vmatprep.subr.mxu0 0.0
      %806 = vmatpush1.msra.mxu0 0.0
      %807 = vmatprep.subr.mxu0 0.0
      %808 = vmatpush1.msra.mxu0 0.0
      %809 = vmatprep.subr.mxu0 0.0
      %810 = vmatpush1.msra.mxu0 0.0
      %811 = vmatprep.subr.mxu0 0.0
      %812 = vmatpush1.msra.mxu0 0.0
      %813 = vmatprep.subr.mxu0 0.0
      %814 = vmatpush1.msra.mxu0 0.0
      %815 = vmatprep.subr.mxu0 0.0
      %816 = vmatpush1.msra.mxu0 0.0
      %817 = vmatprep.subr.mxu0 0.0
      %818 = vmatpush1.msra.mxu0 0.0
      %819 = vmatprep.subr.mxu0 0.0
      %820 = vmatpush1.msra.mxu0 %v778
      %821 = vmatprep.subr.mxu0 0.0
      %822 = vmatpush1.msra.mxu0 %v777
      %823 = vmatprep.subr.mxu0 0.0
      %824 = vmatpush1.msra.mxu0 %v776
      %825 = vmatprep.subr.mxu0 0.0
      %826 = vmatpush1.msra.mxu0 %v775
      %827 = vmatprep.subr.mxu0 0.0
      %828 = vmatpush2.msra.mxu0 0.0
      %829 = vmatprep.subr.mxu0 0.0
      %830 = vmatpush2.msra.mxu0 0.0
      %831 = vmatprep.subr.mxu0 0.0
      %832 = vmatpush2.msra.mxu0 0.0
      %833 = vmatprep.subr.mxu0 0.0
      %834 = vmatpush2.msra.mxu0 0.0
      %835 = vmatprep.subr.mxu0 0.0
      %836 = vmatpush2.msra.mxu0 0.0
      %837 = vmatprep.subr.mxu0 0.0
      %838 = vmatpush2.msra.mxu0 0.0
      %839 = vmatprep.subr.mxu0 0.0
      %840 = vmatpush2.msra.mxu0 0.0
      %841 = vmatprep.subr.mxu0 0.0
      %842 = vmatpush2.msra.mxu0 0.0
      %843 = vmatprep.subr.mxu0 0.0
      %844 = vmatpush2.msra.mxu0 0.0
      %845 = vmatprep.subr.mxu0 0.0
      %846 = vmatpush2.msra.mxu0 0.0
      %847 = vmatprep.subr.mxu0 0.0
      %848 = vmatpush2.msra.mxu0 0.0
      %849 = vmatprep.subr.mxu0 0.0
      %850 = vmatpush2.msra.mxu0 0.0
      %851 = vmatprep.subr.mxu0 0.0
      %852 = vmatpush2.msra.mxu0 0.0
      %853 = vmatprep.subr.mxu0 0.0
      %854 = vmatpush2.msra.mxu0 0.0
      %855 = vmatprep.subr.mxu0 0.0
      %856 = vmatpush2.msra.mxu0 0.0
      %857 = vmatprep.subr.mxu0 0.0
      %858 = vmatpush2.msra.mxu0 0.0
      %859 = vmatprep.mubr.f32.mxu0 0.0
      %860 = vmatmul.mubr.f32.gmra.mxu0 %v787
      %v861 = vpop.f32.mrf.mxu0
      %v862 = vadd.f32 %v784, %v861
      %v863 = vpop.f32.mrf.mxu0
      %864 = vmatprep.mubr.f32.mxu0 0.0
      %865 = vmatmul.mubr.f32.gmra.mxu0 %v790
      %v866 = vpop.f32.mrf.mxu0
      %v867 = vadd.f32 %v784, %v866
      %v868 = vpop.f32.mrf.mxu0
      %869 = vmatprep.mubr.f32.mxu0 0.0
      %870 = vmatmul.mubr.f32.gmra.mxu0 %v793
      %v871 = vpop.f32.mrf.mxu0
      %v872 = vadd.f32 %v784, %v871
      %v873 = vpop.f32.mrf.mxu0
      %874 = vdwg.mxu0
      %878 = vrot.lane.b32.xlu0 %v862, 96
      %v879 = vpop.permute.xlu0 %878
      %880 = vrot.lane.b32.xlu0 %v867, 96
      %v881 = vpop.permute.xlu0 %880
      %882 = vrot.lane.b32.xlu0 %v872, 96
      %v883 = vpop.permute.xlu0 %882
      %vm884 = vcmask 64512
      %v885 = vsel %vm884, %v862, 0
      %v887 = vsel %vm884, %v867, 0
      %v889 = vsel %vm884, %v872, 0
      %v891 = vsel %vm884, %v879, 0
      %v893 = vsel %vm884, %v881, 0
      %v895 = vsel %vm884, %v883, 0
      %897 = vmatprep.subr.mxu0 0.0
      %898 = vmatpush1.xpose.msra.mxu0 0.0
      %899 = vmatprep.subr.mxu0 0.0
      %900 = vmatpush1.xpose.msra.mxu0 0.0
      %901 = vmatprep.subr.mxu0 0.0
      %902 = vmatpush1.xpose.msra.mxu0 0.0
      %903 = vmatprep.subr.mxu0 0.0
      %904 = vmatpush1.xpose.msra.mxu0 0.0
      %905 = vmatprep.subr.mxu0 0.0
      %906 = vmatpush1.xpose.msra.mxu0 0.0
      %907 = vmatprep.subr.mxu0 0.0
      %908 = vmatpush1.xpose.msra.mxu0 0.0
      %909 = vmatprep.subr.mxu0 0.0
      %910 = vmatpush1.xpose.msra.mxu0 0.0
      %911 = vmatprep.subr.mxu0 0.0
      %912 = vmatpush1.xpose.msra.mxu0 0.0
      %913 = vmatprep.subr.mxu0 0.0
      %914 = vmatpush1.xpose.msra.mxu0 0.0
      %915 = vmatprep.subr.mxu0 0.0
      %916 = vmatpush1.xpose.msra.mxu0 0.0
      %917 = vmatprep.subr.mxu0 0.0
      %918 = vmatpush1.xpose.msra.mxu0 0.0
      %919 = vmatprep.subr.mxu0 0.0
      %920 = vmatpush1.xpose.msra.mxu0 0.0
      %921 = vmatprep.subr.mxu0 0.0
      %922 = vmatpush1.xpose.msra.mxu0 0.0
      %923 = vmatprep.subr.mxu0 0.0
      %924 = vmatpush1.xpose.msra.mxu0 %v895
      %925 = vmatprep.subr.mxu0 0.0
      %926 = vmatpush1.xpose.msra.mxu0 %v893
      %927 = vmatprep.subr.mxu0 0.0
      %928 = vmatpush1.xpose.msra.mxu0 %v891
      %929 = vmatprep.subr.mxu0 0.0
      %930 = vmatpush2.xpose.msra.mxu0 0.0
      %931 = vmatprep.subr.mxu0 0.0
      %932 = vmatpush2.xpose.msra.mxu0 0.0
      %933 = vmatprep.subr.mxu0 0.0
      %934 = vmatpush2.xpose.msra.mxu0 0.0
      %935 = vmatprep.subr.mxu0 0.0
      %936 = vmatpush2.xpose.msra.mxu0 0.0
      %937 = vmatprep.subr.mxu0 0.0
      %938 = vmatpush2.xpose.msra.mxu0 0.0
      %939 = vmatprep.subr.mxu0 0.0
      %940 = vmatpush2.xpose.msra.mxu0 0.0
      %941 = vmatprep.subr.mxu0 0.0
      %942 = vmatpush2.xpose.msra.mxu0 0.0
      %943 = vmatprep.subr.mxu0 0.0
      %944 = vmatpush2.xpose.msra.mxu0 0.0
      %945 = vmatprep.subr.mxu0 0.0
      %946 = vmatpush2.xpose.msra.mxu0 0.0
      %947 = vmatprep.subr.mxu0 0.0
      %948 = vmatpush2.xpose.msra.mxu0 0.0
      %949 = vmatprep.subr.mxu0 0.0
      %950 = vmatpush2.xpose.msra.mxu0 0.0
      %951 = vmatprep.subr.mxu0 0.0
      %952 = vmatpush2.xpose.msra.mxu0 0.0
      %953 = vmatprep.subr.mxu0 0.0
      %954 = vmatpush2.xpose.msra.mxu0 0.0
      %955 = vmatprep.subr.mxu0 0.0
      %956 = vmatpush2.xpose.msra.mxu0 0.0
      %957 = vmatprep.subr.mxu0 0.0
      %958 = vmatpush2.xpose.msra.mxu0 0.0
      %959 = vmatprep.subr.mxu0 0.0
      %960 = vmatpush2.xpose.msra.mxu0 0.0
      %961 = vmatprep.mubr.f32.mxu0 0.0
      %962 = vmatmul.mubr.f32.gmra.mxu0 %v885
      %v963 = vpop.f32.mrf.mxu0
      %v964 = vadd.f32 0.0, %v963
      %v965 = vpop.f32.mrf.mxu0
      %966 = vmatprep.mubr.f32.mxu0 0.0
      %967 = vmatmul.mubr.f32.gmra.mxu0 %v887
      %v968 = vpop.f32.mrf.mxu0
      %v969 = vadd.f32 0.0, %v968
      %v970 = vpop.f32.mrf.mxu0
      %971 = vmatprep.mubr.f32.mxu0 0.0
      %972 = vmatmul.mubr.f32.gmra.mxu0 %v889
      %v973 = vpop.f32.mrf.mxu0
      %v974 = vadd.f32 0.0, %v973
      %v975 = vpop.f32.mrf.mxu0
      %976 = vdwg.mxu0
      %v977 = vmul.f32 %v964, 0.35355338
      %v978 = vmul.f32 %v969, 0.35355338
      %v979 = vmul.f32 %v974, 0.35355338
      %vm980 = vcmask 138240
      %v981 = vsel %vm980, %v977, -inf
      %982 = vmax.xlane.f32.xlu0 %v981
      %v983 = vpop.xlane.xlu0 %982
      %v984 = vsel %vm980, %v978, -inf
      %985 = vmax.xlane.f32.xlu0 %v984
      %v986 = vpop.xlane.xlu0 %985
      %vm987 = vcmask 131072
      %v988 = vsel %vm987, %v979, -inf
      %989 = vmax.xlane.f32.xlu0 %v988
      %v990 = vpop.xlane.xlu0 %989
      %v991 = vsub.f32 %v977, %v983
      %v992 = vsub.f32 %v978, %v986
      %v993 = vsub.f32 %v979, %v990
      %v994 = vmul.f32 %v991, 1.442695
      %v995 = vpow.pop %v994
      %v996 = vmul.f32 %v992, 1.442695
      %v997 = vpow.pop %v996
      %v998 = vmul.f32 %v993, 1.442695
      %v999 = vpow.pop %v998
      %v1000 = vsel %vm980, %v995, 0.0
      %1001 = vadd.xlane.f32.xlu0 %v1000
      %v1002 = vpop.xlane.xlu0 %1001
      %v1003 = vsel %vm980, %v997, 0.0
      %1004 = vadd.xlane.f32.xlu0 %v1003
      %v1005 = vpop.xlane.xlu0 %1004
      %v1006 = vsel %vm987, %v999, 0.0
      %1007 = vadd.xlane.f32.xlu0 %v1006
      %v1008 = vpop.xlane.xlu0 %1007
      %v1009 = vrcp.pop %v1002
      %v1010 = vrcp.pop %v1005
      %v1011 = vrcp.pop %v1008
      %v1012 = vmul.f32 %v995, %v1009
      %v1013 = vmul.f32 %v997, %v1010
      %v1014 = vmul.f32 %v999, %v1011
      %1015 = vrot.lane.b32.xlu0 %v862, 64
      %v1016 = vpop.permute.xlu0 %1015
      %1017 = vrot.lane.b32.xlu0 %v867, 64
      %v1018 = vpop.permute.xlu0 %1017
      %1019 = vrot.lane.b32.xlu0 %v872, 64
      %v1020 = vpop.permute.xlu0 %1019
      %v1024 = vsel %vm980, %v1012, 0
      %v1027 = vsel %vm980, %v1013, 0
      %v1030 = vsel %vm980, %v1014, 0
      %vm1032 = vcmask 1040384
      %v1033 = vsel %vm1032, %v1020, 0
      %1035 = vmatprep.subr.mxu0 0.0
      %1036 = vmatpush1.msra.mxu0 0.0
      %1037 = vmatprep.subr.mxu0 0.0
      %1038 = vmatpush1.msra.mxu0 0.0
      %1039 = vmatprep.subr.mxu0 0.0
      %1040 = vmatpush1.msra.mxu0 0.0
      %1041 = vmatprep.subr.mxu0 0.0
      %1042 = vmatpush1.msra.mxu0 0.0
      %1043 = vmatprep.subr.mxu0 0.0
      %1044 = vmatpush1.msra.mxu0 0.0
      %1045 = vmatprep.subr.mxu0 0.0
      %1046 = vmatpush1.msra.mxu0 0.0
      %1047 = vmatprep.subr.mxu0 0.0
      %1048 = vmatpush1.msra.mxu0 0.0
      %1049 = vmatprep.subr.mxu0 0.0
      %1050 = vmatpush1.msra.mxu0 0.0
      %1051 = vmatprep.subr.mxu0 0.0
      %1052 = vmatpush1.msra.mxu0 0.0
      %1053 = vmatprep.subr.mxu0 0.0
      %1054 = vmatpush1.msra.mxu0 0.0
      %1055 = vmatprep.subr.mxu0 0.0
      %1056 = vmatpush1.msra.mxu0 0.0
      %1057 = vmatprep.subr.mxu0 0.0
      %1058 = vmatpush1.msra.mxu0 0.0
      %1059 = vmatprep.subr.mxu0 0.0
      %1060 = vmatpush1.msra.mxu0 0.0
      %1061 = vmatprep.subr.mxu0 0.0
      %1062 = vmatpush1.msra.mxu0 %v1033
      %1063 = vmatprep.subr.mxu0 0.0
      %1064 = vmatpush1.msra.mxu0 %v1018
      %1065 = vmatprep.subr.mxu0 0.0
      %1066 = vmatpush1.msra.mxu0 %v1016
      %1067 = vmatprep.subr.mxu0 0.0
      %1068 = vmatpush2.msra.mxu0 0.0
      %1069 = vmatprep.subr.mxu0 0.0
      %1070 = vmatpush2.msra.mxu0 0.0
      %1071 = vmatprep.subr.mxu0 0.0
      %1072 = vmatpush2.msra.mxu0 0.0
      %1073 = vmatprep.subr.mxu0 0.0
      %1074 = vmatpush2.msra.mxu0 0.0
      %1075 = vmatprep.subr.mxu0 0.0
      %1076 = vmatpush2.msra.mxu0 0.0
      %1077 = vmatprep.subr.mxu0 0.0
      %1078 = vmatpush2.msra.mxu0 0.0
      %1079 = vmatprep.subr.mxu0 0.0
      %1080 = vmatpush2.msra.mxu0 0.0
      %1081 = vmatprep.subr.mxu0 0.0
      %1082 = vmatpush2.msra.mxu0 0.0
      %1083 = vmatprep.subr.mxu0 0.0
      %1084 = vmatpush2.msra.mxu0 0.0
      %1085 = vmatprep.subr.mxu0 0.0
      %1086 = vmatpush2.msra.mxu0 0.0
      %1087 = vmatprep.subr.mxu0 0.0
      %1088 = vmatpush2.msra.mxu0 0.0
      %1089 = vmatprep.subr.mxu0 0.0
      %1090 = vmatpush2.msra.mxu0 0.0
      %1091 = vmatprep.subr.mxu0 0.0
      %1092 = vmatpush2.msra.mxu0 0.0
      %1093 = vmatprep.subr.mxu0 0.0
      %1094 = vmatpush2.msra.mxu0 0.0
      %1095 = vmatprep.subr.mxu0 0.0
      %1096 = vmatpush2.msra.mxu0 0.0
      %1097 = vmatprep.subr.mxu0 0.0
      %1098 = vmatpush2.msra.mxu0 0.0
      %1099 = vmatprep.mubr.f32.mxu0 0.0
      %1100 = vmatmul.mubr.f32.gmra.mxu0 %v1024
      %v1101 = vpop.f32.mrf.mxu0
      %v1102 = vadd.f32 0.0, %v1101
      %v1103 = vpop.f32.mrf.mxu0
      %1104 = vmatprep.mubr.f32.mxu0 0.0
      %1105 = vmatmul.mubr.f32.gmra.mxu0 %v1027
      %v1106 = vpop.f32.mrf.mxu0
      %v1107 = vadd.f32 0.0, %v1106
      %v1108 = vpop.f32.mrf.mxu0
      %1109 = vmatprep.mubr.f32.mxu0 0.0
      %1110 = vmatmul.mubr.f32.gmra.mxu0 %v1030
      %v1111 = vpop.f32.mrf.mxu0
      %v1112 = vadd.f32 0.0, %v1111
      %v1113 = vpop.f32.mrf.mxu0
      %1114 = vdwg.mxu0
      %1115 = vrot.lane.b32.xlu0 %v862, 120
      %v1116 = vpop.permute.xlu0 %1115
      %1117 = vrot.lane.b32.xlu0 %v867, 120
      %v1118 = vpop.permute.xlu0 %1117
      %1119 = vrot.lane.b32.xlu0 %v872, 120
      %v1120 = vpop.permute.xlu0 %1119
      %1121 = vrot.lane.b32.xlu0 %v862, 88
      %v1122 = vpop.permute.xlu0 %1121
      %1123 = vrot.lane.b32.xlu0 %v867, 88
      %v1124 = vpop.permute.xlu0 %1123
      %1125 = vrot.lane.b32.xlu0 %v872, 88
      %v1126 = vpop.permute.xlu0 %1125
      %v1127 = vsel %vm884, %v1116, 0
      %v1129 = vsel %vm884, %v1118, 0
      %v1131 = vsel %vm884, %v1120, 0
      %v1133 = vsel %vm884, %v1122, 0
      %v1135 = vsel %vm884, %v1124, 0
      %v1137 = vsel %vm884, %v1126, 0
      %1139 = vmatprep.subr.mxu0 0.0
      %1140 = vmatpush1.xpose.msra.mxu0 0.0
      %1141 = vmatprep.subr.mxu0 0.0
      %1142 = vmatpush1.xpose.msra.mxu0 0.0
      %1143 = vmatprep.subr.mxu0 0.0
      %1144 = vmatpush1.xpose.msra.mxu0 0.0
      %1145 = vmatprep.subr.mxu0 0.0
      %1146 = vmatpush1.xpose.msra.mxu0 0.0
      %1147 = vmatprep.subr.mxu0 0.0
      %1148 = vmatpush1.xpose.msra.mxu0 0.0
      %1149 = vmatprep.subr.mxu0 0.0
      %1150 = vmatpush1.xpose.msra.mxu0 0.0
      %1151 = vmatprep.subr.mxu0 0.0
      %1152 = vmatpush1.xpose.msra.mxu0 0.0
      %1153 = vmatprep.subr.mxu0 0.0
      %1154 = vmatpush1.xpose.msra.mxu0 0.0
      %1155 = vmatprep.subr.mxu0 0.0
      %1156 = vmatpush1.xpose.msra.mxu0 0.0
      %1157 = vmatprep.subr.mxu0 0.0
      %1158 = vmatpush1.xpose.msra.mxu0 0.0
      %1159 = vmatprep.subr.mxu0 0.0
      %1160 = vmatpush1.xpose.msra.mxu0 0.0
      %1161 = vmatprep.subr.mxu0 0.0
      %1162 = vmatpush1.xpose.msra.mxu0 0.0
      %1163 = vmatprep.subr.mxu0 0.0
      %1164 = vmatpush1.xpose.msra.mxu0 0.0
      %1165 = vmatprep.subr.mxu0 0.0
      %1166 = vmatpush1.xpose.msra.mxu0 %v1137
      %1167 = vmatprep.subr.mxu0 0.0
      %1168 = vmatpush1.xpose.msra.mxu0 %v1135
      %1169 = vmatprep.subr.mxu0 0.0
      %1170 = vmatpush1.xpose.msra.mxu0 %v1133
      %1171 = vmatprep.subr.mxu0 0.0
      %1172 = vmatpush2.xpose.msra.mxu0 0.0
      %1173 = vmatprep.subr.mxu0 0.0
      %1174 = vmatpush2.xpose.msra.mxu0 0.0
      %1175 = vmatprep.subr.mxu0 0.0
      %1176 = vmatpush2.xpose.msra.mxu0 0.0
      %1177 = vmatprep.subr.mxu0 0.0
      %1178 = vmatpush2.xpose.msra.mxu0 0.0
      %1179 = vmatprep.subr.mxu0 0.0
      %1180 = vmatpush2.xpose.msra.mxu0 0.0
      %1181 = vmatprep.subr.mxu0 0.0
      %1182 = vmatpush2.xpose.msra.mxu0 0.0
      %1183 = vmatprep.subr.mxu0 0.0
      %1184 = vmatpush2.xpose.msra.mxu0 0.0
      %1185 = vmatprep.subr.mxu0 0.0
      %1186 = vmatpush2.xpose.msra.mxu0 0.0
      %1187 = vmatprep.subr.mxu0 0.0
      %1188 = vmatpush2.xpose.msra.mxu0 0.0
      %1189 = vmatprep.subr.mxu0 0.0
      %1190 = vmatpush2.xpose.msra.mxu0 0.0
      %1191 = vmatprep.subr.mxu0 0.0
      %1192 = vmatpush2.xpose.msra.mxu0 0.0
      %1193 = vmatprep.subr.mxu0 0.0
      %1194 = vmatpush2.xpose.msra.mxu0 0.0
      %1195 = vmatprep.subr.mxu0 0.0
      %1196 = vmatpush2.xpose.msra.mxu0 0.0
      %1197 = vmatprep.subr.mxu0 0.0
      %1198 = vmatpush2.xpose.msra.mxu0 0.0
      %1199 = vmatprep.subr.mxu0 0.0
      %1200 = vmatpush2.xpose.msra.mxu0 0.0
      %1201 = vmatprep.subr.mxu0 0.0
      %1202 = vmatpush2.xpose.msra.mxu0 0.0
      %1203 = vmatprep.mubr.f32.mxu0 0.0
      %1204 = vmatmul.mubr.f32.gmra.mxu0 %v1127
      %v1205 = vpop.f32.mrf.mxu0
      %v1206 = vadd.f32 0.0, %v1205
      %v1207 = vpop.f32.mrf.mxu0
      %1208 = vmatprep.mubr.f32.mxu0 0.0
      %1209 = vmatmul.mubr.f32.gmra.mxu0 %v1129
      %v1210 = vpop.f32.mrf.mxu0
      %v1211 = vadd.f32 0.0, %v1210
      %v1212 = vpop.f32.mrf.mxu0
      %1213 = vmatprep.mubr.f32.mxu0 0.0
      %1214 = vmatmul.mubr.f32.gmra.mxu0 %v1131
      %v1215 = vpop.f32.mrf.mxu0
      %v1216 = vadd.f32 0.0, %v1215
      %v1217 = vpop.f32.mrf.mxu0
      %1218 = vdwg.mxu0
      %v1219 = vmul.f32 %v1206, 0.35355338
      %v1220 = vmul.f32 %v1211, 0.35355338
      %v1221 = vmul.f32 %v1216, 0.35355338
      %v1222 = vsel %vm980, %v1219, -inf
      %1223 = vmax.xlane.f32.xlu0 %v1222
      %v1224 = vpop.xlane.xlu0 %1223
      %v1225 = vsel %vm980, %v1220, -inf
      %1226 = vmax.xlane.f32.xlu0 %v1225
      %v1227 = vpop.xlane.xlu0 %1226
      %v1228 = vsel %vm987, %v1221, -inf
      %1229 = vmax.xlane.f32.xlu0 %v1228
      %v1230 = vpop.xlane.xlu0 %1229
      %v1231 = vsub.f32 %v1219, %v1224
      %v1232 = vsub.f32 %v1220, %v1227
      %v1233 = vsub.f32 %v1221, %v1230
      %v1234 = vmul.f32 %v1231, 1.442695
      %v1235 = vpow.pop %v1234
      %v1236 = vmul.f32 %v1232, 1.442695
      %v1237 = vpow.pop %v1236
      %v1238 = vmul.f32 %v1233, 1.442695
      %v1239 = vpow.pop %v1238
      %v1240 = vsel %vm980, %v1235, 0.0
      %1241 = vadd.xlane.f32.xlu0 %v1240
      %v1242 = vpop.xlane.xlu0 %1241
      %v1243 = vsel %vm980, %v1237, 0.0
      %1244 = vadd.xlane.f32.xlu0 %v1243
      %v1245 = vpop.xlane.xlu0 %1244
      %v1246 = vsel %vm987, %v1239, 0.0
      %1247 = vadd.xlane.f32.xlu0 %v1246
      %v1248 = vpop.xlane.xlu0 %1247
      %v1249 = vrcp.pop %v1242
      %v1250 = vrcp.pop %v1245
      %v1251 = vrcp.pop %v1248
      %v1252 = vmul.f32 %v1235, %v1249
      %v1253 = vmul.f32 %v1237, %v1250
      %v1254 = vmul.f32 %v1239, %v1251
      %1255 = vrot.lane.b32.xlu0 %v862, 56
      %v1256 = vpop.permute.xlu0 %1255
      %1257 = vrot.lane.b32.xlu0 %v867, 56
      %v1258 = vpop.permute.xlu0 %1257
      %1259 = vrot.lane.b32.xlu0 %v872, 56
      %v1260 = vpop.permute.xlu0 %1259
      %v1264 = vsel %vm980, %v1252, 0
      %v1267 = vsel %vm980, %v1253, 0
      %v1270 = vsel %vm980, %v1254, 0
      %v1272 = vsel %vm1032, %v1260, 0
      %1274 = vmatprep.subr.mxu0 0.0
      %1275 = vmatpush1.msra.mxu0 0.0
      %1276 = vmatprep.subr.mxu0 0.0
      %1277 = vmatpush1.msra.mxu0 0.0
      %1278 = vmatprep.subr.mxu0 0.0
      %1279 = vmatpush1.msra.mxu0 0.0
      %1280 = vmatprep.subr.mxu0 0.0
      %1281 = vmatpush1.msra.mxu0 0.0
      %1282 = vmatprep.subr.mxu0 0.0
      %1283 = vmatpush1.msra.mxu0 0.0
      %1284 = vmatprep.subr.mxu0 0.0
      %1285 = vmatpush1.msra.mxu0 0.0
      %1286 = vmatprep.subr.mxu0 0.0
      %1287 = vmatpush1.msra.mxu0 0.0
      %1288 = vmatprep.subr.mxu0 0.0
      %1289 = vmatpush1.msra.mxu0 0.0
      %1290 = vmatprep.subr.mxu0 0.0
      %1291 = vmatpush1.msra.mxu0 0.0
      %1292 = vmatprep.subr.mxu0 0.0
      %1293 = vmatpush1.msra.mxu0 0.0
      %1294 = vmatprep.subr.mxu0 0.0
      %1295 = vmatpush1.msra.mxu0 0.0
      %1296 = vmatprep.subr.mxu0 0.0
      %1297 = vmatpush1.msra.mxu0 0.0
      %1298 = vmatprep.subr.mxu0 0.0
      %1299 = vmatpush1.msra.mxu0 0.0
      %1300 = vmatprep.subr.mxu0 0.0
      %1301 = vmatpush1.msra.mxu0 %v1272
      %1302 = vmatprep.subr.mxu0 0.0
      %1303 = vmatpush1.msra.mxu0 %v1258
      %1304 = vmatprep.subr.mxu0 0.0
      %1305 = vmatpush1.msra.mxu0 %v1256
      %1306 = vmatprep.subr.mxu0 0.0
      %1307 = vmatpush2.msra.mxu0 0.0
      %1308 = vmatprep.subr.mxu0 0.0
      %1309 = vmatpush2.msra.mxu0 0.0
      %1310 = vmatprep.subr.mxu0 0.0
      %1311 = vmatpush2.msra.mxu0 0.0
      %1312 = vmatprep.subr.mxu0 0.0
      %1313 = vmatpush2.msra.mxu0 0.0
      %1314 = vmatprep.subr.mxu0 0.0
      %1315 = vmatpush2.msra.mxu0 0.0
      %1316 = vmatprep.subr.mxu0 0.0
      %1317 = vmatpush2.msra.mxu0 0.0
      %1318 = vmatprep.subr.mxu0 0.0
      %1319 = vmatpush2.msra.mxu0 0.0
      %1320 = vmatprep.subr.mxu0 0.0
      %1321 = vmatpush2.msra.mxu0 0.0
      %1322 = vmatprep.subr.mxu0 0.0
      %1323 = vmatpush2.msra.mxu0 0.0
      %1324 = vmatprep.subr.mxu0 0.0
      %1325 = vmatpush2.msra.mxu0 0.0
      %1326 = vmatprep.subr.mxu0 0.0
      %1327 = vmatpush2.msra.mxu0 0.0
      %1328 = vmatprep.subr.mxu0 0.0
      %1329 = vmatpush2.msra.mxu0 0.0
      %1330 = vmatprep.subr.mxu0 0.0
      %1331 = vmatpush2.msra.mxu0 0.0
      %1332 = vmatprep.subr.mxu0 0.0
      %1333 = vmatpush2.msra.mxu0 0.0
      %1334 = vmatprep.subr.mxu0 0.0
      %1335 = vmatpush2.msra.mxu0 0.0
      %1336 = vmatprep.subr.mxu0 0.0
      %1337 = vmatpush2.msra.mxu0 0.0
      %1338 = vmatprep.mubr.f32.mxu0 0.0
      %1339 = vmatmul.mubr.f32.gmra.mxu0 %v1264
      %v1340 = vpop.f32.mrf.mxu0
      %v1341 = vadd.f32 0.0, %v1340
      %v1342 = vpop.f32.mrf.mxu0
      %1343 = vmatprep.mubr.f32.mxu0 0.0
      %1344 = vmatmul.mubr.f32.gmra.mxu0 %v1267
      %v1345 = vpop.f32.mrf.mxu0
      %v1346 = vadd.f32 0.0, %v1345
      %v1347 = vpop.f32.mrf.mxu0
      %1348 = vmatprep.mubr.f32.mxu0 0.0
      %1349 = vmatmul.mubr.f32.gmra.mxu0 %v1270
      %v1350 = vpop.f32.mrf.mxu0
      %v1351 = vadd.f32 0.0, %v1350
      %v1352 = vpop.f32.mrf.mxu0
      %1353 = vdwg.mxu0
      %1354 = vrot.lane.b32.xlu0 %v862, 112
      %v1355 = vpop.permute.xlu0 %1354
      %1356 = vrot.lane.b32.xlu0 %v867, 112
      %v1357 = vpop.permute.xlu0 %1356
      %1358 = vrot.lane.b32.xlu0 %v872, 112
      %v1359 = vpop.permute.xlu0 %1358
      %1360 = vrot.lane.b32.xlu0 %v862, 80
      %v1361 = vpop.permute.xlu0 %1360
      %1362 = vrot.lane.b32.xlu0 %v867, 80
      %v1363 = vpop.permute.xlu0 %1362
      %1364 = vrot.lane.b32.xlu0 %v872, 80
      %v1365 = vpop.permute.xlu0 %1364
      %v1366 = vsel %vm884, %v1355, 0
      %v1368 = vsel %vm884, %v1357, 0
      %v1370 = vsel %vm884, %v1359, 0
      %v1372 = vsel %vm884, %v1361, 0
      %v1374 = vsel %vm884, %v1363, 0
      %v1376 = vsel %vm884, %v1365, 0
      %1378 = vmatprep.subr.mxu0 0.0
      %1379 = vmatpush1.xpose.msra.mxu0 0.0
      %1380 = vmatprep.subr.mxu0 0.0
      %1381 = vmatpush1.xpose.msra.mxu0 0.0
      %1382 = vmatprep.subr.mxu0 0.0
      %1383 = vmatpush1.xpose.msra.mxu0 0.0
      %1384 = vmatprep.subr.mxu0 0.0
      %1385 = vmatpush1.xpose.msra.mxu0 0.0
      %1386 = vmatprep.subr.mxu0 0.0
      %1387 = vmatpush1.xpose.msra.mxu0 0.0
      %1388 = vmatprep.subr.mxu0 0.0
      %1389 = vmatpush1.xpose.msra.mxu0 0.0
      %1390 = vmatprep.subr.mxu0 0.0
      %1391 = vmatpush1.xpose.msra.mxu0 0.0
      %1392 = vmatprep.subr.mxu0 0.0
      %1393 = vmatpush1.xpose.msra.mxu0 0.0
      %1394 = vmatprep.subr.mxu0 0.0
      %1395 = vmatpush1.xpose.msra.mxu0 0.0
      %1396 = vmatprep.subr.mxu0 0.0
      %1397 = vmatpush1.xpose.msra.mxu0 0.0
      %1398 = vmatprep.subr.mxu0 0.0
      %1399 = vmatpush1.xpose.msra.mxu0 0.0
      %1400 = vmatprep.subr.mxu0 0.0
      %1401 = vmatpush1.xpose.msra.mxu0 0.0
      %1402 = vmatprep.subr.mxu0 0.0
      %1403 = vmatpush1.xpose.msra.mxu0 0.0
      %1404 = vmatprep.subr.mxu0 0.0
      %1405 = vmatpush1.xpose.msra.mxu0 %v1376
      %1406 = vmatprep.subr.mxu0 0.0
      %1407 = vmatpush1.xpose.msra.mxu0 %v1374
      %1408 = vmatprep.subr.mxu0 0.0
      %1409 = vmatpush1.xpose.msra.mxu0 %v1372
      %1410 = vmatprep.subr.mxu0 0.0
      %1411 = vmatpush2.xpose.msra.mxu0 0.0
      %1412 = vmatprep.subr.mxu0 0.0
      %1413 = vmatpush2.xpose.msra.mxu0 0.0
      %1414 = vmatprep.subr.mxu0 0.0
      %1415 = vmatpush2.xpose.msra.mxu0 0.0
      %1416 = vmatprep.subr.mxu0 0.0
      %1417 = vmatpush2.xpose.msra.mxu0 0.0
      %1418 = vmatprep.subr.mxu0 0.0
      %1419 = vmatpush2.xpose.msra.mxu0 0.0
      %1420 = vmatprep.subr.mxu0 0.0
      %1421 = vmatpush2.xpose.msra.mxu0 0.0
      %1422 = vmatprep.subr.mxu0 0.0
      %1423 = vmatpush2.xpose.msra.mxu0 0.0
      %1424 = vmatprep.subr.mxu0 0.0
      %1425 = vmatpush2.xpose.msra.mxu0 0.0
      %1426 = vmatprep.subr.mxu0 0.0
      %1427 = vmatpush2.xpose.msra.mxu0 0.0
      %1428 = vmatprep.subr.mxu0 0.0
      %1429 = vmatpush2.xpose.msra.mxu0 0.0
      %1430 = vmatprep.subr.mxu0 0.0
      %1431 = vmatpush2.xpose.msra.mxu0 0.0
      %1432 = vmatprep.subr.mxu0 0.0
      %1433 = vmatpush2.xpose.msra.mxu0 0.0
      %1434 = vmatprep.subr.mxu0 0.0
      %1435 = vmatpush2.xpose.msra.mxu0 0.0
      %1436 = vmatprep.subr.mxu0 0.0
      %1437 = vmatpush2.xpose.msra.mxu0 0.0
      %1438 = vmatprep.subr.mxu0 0.0
      %1439 = vmatpush2.xpose.msra.mxu0 0.0
      %1440 = vmatprep.subr.mxu0 0.0
      %1441 = vmatpush2.xpose.msra.mxu0 0.0
      %1442 = vmatprep.mubr.f32.mxu0 0.0
      %1443 = vmatmul.mubr.f32.gmra.mxu0 %v1366
      %v1444 = vpop.f32.mrf.mxu0
      %v1445 = vadd.f32 0.0, %v1444
      %v1446 = vpop.f32.mrf.mxu0
      %1447 = vmatprep.mubr.f32.mxu0 0.0
      %1448 = vmatmul.mubr.f32.gmra.mxu0 %v1368
      %v1449 = vpop.f32.mrf.mxu0
      %v1450 = vadd.f32 0.0, %v1449
      %v1451 = vpop.f32.mrf.mxu0
      %1452 = vmatprep.mubr.f32.mxu0 0.0
      %1453 = vmatmul.mubr.f32.gmra.mxu0 %v1370
      %v1454 = vpop.f32.mrf.mxu0
      %v1455 = vadd.f32 0.0, %v1454
      %v1456 = vpop.f32.mrf.mxu0
      %1457 = vdwg.mxu0
      %v1458 = vmul.f32 %v1445, 0.35355338
      %v1459 = vmul.f32 %v1450, 0.35355338
      %v1460 = vmul.f32 %v1455, 0.35355338
      %v1461 = vsel %vm980, %v1458, -inf
      %1462 = vmax.xlane.f32.xlu0 %v1461
      %v1463 = vpop.xlane.xlu0 %1462
      %v1464 = vsel %vm980, %v1459, -inf
      %1465 = vmax.xlane.f32.xlu0 %v1464
      %v1466 = vpop.xlane.xlu0 %1465
      %v1467 = vsel %vm987, %v1460, -inf
      %1468 = vmax.xlane.f32.xlu0 %v1467
      %v1469 = vpop.xlane.xlu0 %1468
      %v1470 = vsub.f32 %v1458, %v1463
      %v1471 = vsub.f32 %v1459, %v1466
      %v1472 = vsub.f32 %v1460, %v1469
      %v1473 = vmul.f32 %v1470, 1.442695
      %v1474 = vpow.pop %v1473
      %v1475 = vmul.f32 %v1471, 1.442695
      %v1476 = vpow.pop %v1475
      %v1477 = vmul.f32 %v1472, 1.442695
      %v1478 = vpow.pop %v1477
      %v1479 = vsel %vm980, %v1474, 0.0
      %1480 = vadd.xlane.f32.xlu0 %v1479
      %v1481 = vpop.xlane.xlu0 %1480
      %v1482 = vsel %vm980, %v1476, 0.0
      %1483 = vadd.xlane.f32.xlu0 %v1482
      %v1484 = vpop.xlane.xlu0 %1483
      %v1485 = vsel %vm987, %v1478, 0.0
      %1486 = vadd.xlane.f32.xlu0 %v1485
      %v1487 = vpop.xlane.xlu0 %1486
      %v1488 = vrcp.pop %v1481
      %v1489 = vrcp.pop %v1484
      %v1490 = vrcp.pop %v1487
      %v1491 = vmul.f32 %v1474, %v1488
      %v1492 = vmul.f32 %v1476, %v1489
      %v1493 = vmul.f32 %v1478, %v1490
      %1494 = vrot.lane.b32.xlu0 %v862, 48
      %v1495 = vpop.permute.xlu0 %1494
      %1496 = vrot.lane.b32.xlu0 %v867, 48
      %v1497 = vpop.permute.xlu0 %1496
      %1498 = vrot.lane.b32.xlu0 %v872, 48
      %v1499 = vpop.permute.xlu0 %1498
      %v1503 = vsel %vm980, %v1491, 0
      %v1506 = vsel %vm980, %v1492, 0
      %v1509 = vsel %vm980, %v1493, 0
      %v1511 = vsel %vm1032, %v1499, 0
      %1513 = vmatprep.subr.mxu0 0.0
      %1514 = vmatpush1.msra.mxu0 0.0
      %1515 = vmatprep.subr.mxu0 0.0
      %1516 = vmatpush1.msra.mxu0 0.0
      %1517 = vmatprep.subr.mxu0 0.0
      %1518 = vmatpush1.msra.mxu0 0.0
      %1519 = vmatprep.subr.mxu0 0.0
      %1520 = vmatpush1.msra.mxu0 0.0
      %1521 = vmatprep.subr.mxu0 0.0
      %1522 = vmatpush1.msra.mxu0 0.0
      %1523 = vmatprep.subr.mxu0 0.0
      %1524 = vmatpush1.msra.mxu0 0.0
      %1525 = vmatprep.subr.mxu0 0.0
      %1526 = vmatpush1.msra.mxu0 0.0
      %1527 = vmatprep.subr.mxu0 0.0
      %1528 = vmatpush1.msra.mxu0 0.0
      %1529 = vmatprep.subr.mxu0 0.0
      %1530 = vmatpush1.msra.mxu0 0.0
      %1531 = vmatprep.subr.mxu0 0.0
      %1532 = vmatpush1.msra.mxu0 0.0
      %1533 = vmatprep.subr.mxu0 0.0
      %1534 = vmatpush1.msra.mxu0 0.0
      %1535 = vmatprep.subr.mxu0 0.0
      %1536 = vmatpush1.msra.mxu0 0.0
      %1537 = vmatprep.subr.mxu0 0.0
      %1538 = vmatpush1.msra.mxu0 0.0
      %1539 = vmatprep.subr.mxu0 0.0
      %1540 = vmatpush1.msra.mxu0 %v1511
      %1541 = vmatprep.subr.mxu0 0.0
      %1542 = vmatpush1.msra.mxu0 %v1497
      %1543 = vmatprep.subr.mxu0 0.0
      %1544 = vmatpush1.msra.mxu0 %v1495
      %1545 = vmatprep.subr.mxu0 0.0
      %1546 = vmatpush2.msra.mxu0 0.0
      %1547 = vmatprep.subr.mxu0 0.0
      %1548 = vmatpush2.msra.mxu0 0.0
      %1549 = vmatprep.subr.mxu0 0.0
      %1550 = vmatpush2.msra.mxu0 0.0
      %1551 = vmatprep.subr.mxu0 0.0
      %1552 = vmatpush2.msra.mxu0 0.0
      %1553 = vmatprep.subr.mxu0 0.0
      %1554 = vmatpush2.msra.mxu0 0.0
      %1555 = vmatprep.subr.mxu0 0.0
      %1556 = vmatpush2.msra.mxu0 0.0
      %1557 = vmatprep.subr.mxu0 0.0
      %1558 = vmatpush2.msra.mxu0 0.0
      %1559 = vmatprep.subr.mxu0 0.0
      %1560 = vmatpush2.msra.mxu0 0.0
      %1561 = vmatprep.subr.mxu0 0.0
      %1562 = vmatpush2.msra.mxu0 0.0
      %1563 = vmatprep.subr.mxu0 0.0
      %1564 = vmatpush2.msra.mxu0 0.0
      %1565 = vmatprep.subr.mxu0 0.0
      %1566 = vmatpush2.msra.mxu0 0.0
      %1567 = vmatprep.subr.mxu0 0.0
      %1568 = vmatpush2.msra.mxu0 0.0
      %1569 = vmatprep.subr.mxu0 0.0
      %1570 = vmatpush2.msra.mxu0 0.0
      %1571 = vmatprep.subr.mxu0 0.0
      %1572 = vmatpush2.msra.mxu0 0.0
      %1573 = vmatprep.subr.mxu0 0.0
      %1574 = vmatpush2.msra.mxu0 0.0
      %1575 = vmatprep.subr.mxu0 0.0
      %1576 = vmatpush2.msra.mxu0 0.0
      %1577 = vmatprep.mubr.f32.mxu0 0.0
      %1578 = vmatmul.mubr.f32.gmra.mxu0 %v1503
      %v1579 = vpop.f32.mrf.mxu0
      %v1580 = vadd.f32 0.0, %v1579
      %v1581 = vpop.f32.mrf.mxu0
      %1582 = vmatprep.mubr.f32.mxu0 0.0
      %1583 = vmatmul.mubr.f32.gmra.mxu0 %v1506
      %v1584 = vpop.f32.mrf.mxu0
      %v1585 = vadd.f32 0.0, %v1584
      %v1586 = vpop.f32.mrf.mxu0
      %1587 = vmatprep.mubr.f32.mxu0 0.0
      %1588 = vmatmul.mubr.f32.gmra.mxu0 %v1509
      %v1589 = vpop.f32.mrf.mxu0
      %v1590 = vadd.f32 0.0, %v1589
      %v1591 = vpop.f32.mrf.mxu0
      %1592 = vdwg.mxu0
      %1593 = vrot.lane.b32.xlu0 %v862, 104
      %v1594 = vpop.permute.xlu0 %1593
      %1595 = vrot.lane.b32.xlu0 %v867, 104
      %v1596 = vpop.permute.xlu0 %1595
      %1597 = vrot.lane.b32.xlu0 %v872, 104
      %v1598 = vpop.permute.xlu0 %1597
      %1599 = vrot.lane.b32.xlu0 %v862, 72
      %v1600 = vpop.permute.xlu0 %1599
      %1601 = vrot.lane.b32.xlu0 %v867, 72
      %v1602 = vpop.permute.xlu0 %1601
      %1603 = vrot.lane.b32.xlu0 %v872, 72
      %v1604 = vpop.permute.xlu0 %1603
      %v1605 = vsel %vm884, %v1594, 0
      %v1607 = vsel %vm884, %v1596, 0
      %v1609 = vsel %vm884, %v1598, 0
      %v1611 = vsel %vm884, %v1600, 0
      %v1613 = vsel %vm884, %v1602, 0
      %v1615 = vsel %vm884, %v1604, 0
      %1617 = vmatprep.subr.mxu0 0.0
      %1618 = vmatpush1.xpose.msra.mxu0 0.0
      %1619 = vmatprep.subr.mxu0 0.0
      %1620 = vmatpush1.xpose.msra.mxu0 0.0
      %1621 = vmatprep.subr.mxu0 0.0
      %1622 = vmatpush1.xpose.msra.mxu0 0.0
      %1623 = vmatprep.subr.mxu0 0.0
      %1624 = vmatpush1.xpose.msra.mxu0 0.0
      %1625 = vmatprep.subr.mxu0 0.0
      %1626 = vmatpush1.xpose.msra.mxu0 0.0
      %1627 = vmatprep.subr.mxu0 0.0
      %1628 = vmatpush1.xpose.msra.mxu0 0.0
      %1629 = vmatprep.subr.mxu0 0.0
      %1630 = vmatpush1.xpose.msra.mxu0 0.0
      %1631 = vmatprep.subr.mxu0 0.0
      %1632 = vmatpush1.xpose.msra.mxu0 0.0
      %1633 = vmatprep.subr.mxu0 0.0
      %1634 = vmatpush1.xpose.msra.mxu0 0.0
      %1635 = vmatprep.subr.mxu0 0.0
      %1636 = vmatpush1.xpose.msra.mxu0 0.0
      %1637 = vmatprep.subr.mxu0 0.0
      %1638 = vmatpush1.xpose.msra.mxu0 0.0
      %1639 = vmatprep.subr.mxu0 0.0
      %1640 = vmatpush1.xpose.msra.mxu0 0.0
      %1641 = vmatprep.subr.mxu0 0.0
      %1642 = vmatpush1.xpose.msra.mxu0 0.0
      %1643 = vmatprep.subr.mxu0 0.0
      %1644 = vmatpush1.xpose.msra.mxu0 %v1615
      %1645 = vmatprep.subr.mxu0 0.0
      %1646 = vmatpush1.xpose.msra.mxu0 %v1613
      %1647 = vmatprep.subr.mxu0 0.0
      %1648 = vmatpush1.xpose.msra.mxu0 %v1611
      %1649 = vmatprep.subr.mxu0 0.0
      %1650 = vmatpush2.xpose.msra.mxu0 0.0
      %1651 = vmatprep.subr.mxu0 0.0
      %1652 = vmatpush2.xpose.msra.mxu0 0.0
      %1653 = vmatprep.subr.mxu0 0.0
      %1654 = vmatpush2.xpose.msra.mxu0 0.0
      %1655 = vmatprep.subr.mxu0 0.0
      %1656 = vmatpush2.xpose.msra.mxu0 0.0
      %1657 = vmatprep.subr.mxu0 0.0
      %1658 = vmatpush2.xpose.msra.mxu0 0.0
      %1659 = vmatprep.subr.mxu0 0.0
      %1660 = vmatpush2.xpose.msra.mxu0 0.0
      %1661 = vmatprep.subr.mxu0 0.0
      %1662 = vmatpush2.xpose.msra.mxu0 0.0
      %1663 = vmatprep.subr.mxu0 0.0
      %1664 = vmatpush2.xpose.msra.mxu0 0.0
      %1665 = vmatprep.subr.mxu0 0.0
      %1666 = vmatpush2.xpose.msra.mxu0 0.0
      %1667 = vmatprep.subr.mxu0 0.0
      %1668 = vmatpush2.xpose.msra.mxu0 0.0
      %1669 = vmatprep.subr.mxu0 0.0
      %1670 = vmatpush2.xpose.msra.mxu0 0.0
      %1671 = vmatprep.subr.mxu0 0.0
      %1672 = vmatpush2.xpose.msra.mxu0 0.0
      %1673 = vmatprep.subr.mxu0 0.0
      %1674 = vmatpush2.xpose.msra.mxu0 0.0
      %1675 = vmatprep.subr.mxu0 0.0
      %1676 = vmatpush2.xpose.msra.mxu0 0.0
      %1677 = vmatprep.subr.mxu0 0.0
      %1678 = vmatpush2.xpose.msra.mxu0 0.0
      %1679 = vmatprep.subr.mxu0 0.0
      %1680 = vmatpush2.xpose.msra.mxu0 0.0
      %1681 = vmatprep.mubr.f32.mxu0 0.0
      %1682 = vmatmul.mubr.f32.gmra.mxu0 %v1605
      %v1683 = vpop.f32.mrf.mxu0
      %v1684 = vadd.f32 0.0, %v1683
      %v1685 = vpop.f32.mrf.mxu0
      %1686 = vmatprep.mubr.f32.mxu0 0.0
      %1687 = vmatmul.mubr.f32.gmra.mxu0 %v1607
      %v1688 = vpop.f32.mrf.mxu0
      %v1689 = vadd.f32 0.0, %v1688
      %v1690 = vpop.f32.mrf.mxu0
      %1691 = vmatprep.mubr.f32.mxu0 0.0
      %1692 = vmatmul.mubr.f32.gmra.mxu0 %v1609
      %v1693 = vpop.f32.mrf.mxu0
      %v1694 = vadd.f32 0.0, %v1693
      %v1695 = vpop.f32.mrf.mxu0
      %1696 = vdwg.mxu0
      %v1697 = vmul.f32 %v1684, 0.35355338
      %v1698 = vmul.f32 %v1689, 0.35355338
      %v1699 = vmul.f32 %v1694, 0.35355338
      %v1700 = vsel %vm980, %v1697, -inf
      %1701 = vmax.xlane.f32.xlu0 %v1700
      %v1702 = vpop.xlane.xlu0 %1701
      %v1703 = vsel %vm980, %v1698, -inf
      %1704 = vmax.xlane.f32.xlu0 %v1703
      %v1705 = vpop.xlane.xlu0 %1704
      %v1706 = vsel %vm987, %v1699, -inf
      %1707 = vmax.xlane.f32.xlu0 %v1706
      %v1708 = vpop.xlane.xlu0 %1707
      %v1709 = vsub.f32 %v1697, %v1702
      %v1710 = vsub.f32 %v1698, %v1705
      %v1711 = vsub.f32 %v1699, %v1708
      %v1712 = vmul.f32 %v1709, 1.442695
      %v1713 = vpow.pop %v1712
      %v1714 = vmul.f32 %v1710, 1.442695
      %v1715 = vpow.pop %v1714
      %v1716 = vmul.f32 %v1711, 1.442695
      %v1717 = vpow.pop %v1716
      %v1718 = vsel %vm980, %v1713, 0.0
      %1719 = vadd.xlane.f32.xlu0 %v1718
      %v1720 = vpop.xlane.xlu0 %1719
      %v1721 = vsel %vm980, %v1715, 0.0
      %1722 = vadd.xlane.f32.xlu0 %v1721
      %v1723 = vpop.xlane.xlu0 %1722
      %v1724 = vsel %vm987, %v1717, 0.0
      %1725 = vadd.xlane.f32.xlu0 %v1724
      %v1726 = vpop.xlane.xlu0 %1725
      %v1727 = vrcp.pop %v1720
      %v1728 = vrcp.pop %v1723
      %v1729 = vrcp.pop %v1726
      %v1730 = vmul.f32 %v1713, %v1727
      %v1731 = vmul.f32 %v1715, %v1728
      %v1732 = vmul.f32 %v1717, %v1729
      %1733 = vrot.lane.b32.xlu0 %v862, 40
      %v1734 = vpop.permute.xlu0 %1733
      %1735 = vrot.lane.b32.xlu0 %v867, 40
      %v1736 = vpop.permute.xlu0 %1735
      %1737 = vrot.lane.b32.xlu0 %v872, 40
      %v1738 = vpop.permute.xlu0 %1737
      %v1742 = vsel %vm980, %v1730, 0
      %v1745 = vsel %vm980, %v1731, 0
      %v1748 = vsel %vm980, %v1732, 0
      %v1750 = vsel %vm1032, %v1738, 0
      %1752 = vmatprep.subr.mxu0 0.0
      %1753 = vmatpush1.msra.mxu0 0.0
      %1754 = vmatprep.subr.mxu0 0.0
      %1755 = vmatpush1.msra.mxu0 0.0
      %1756 = vmatprep.subr.mxu0 0.0
      %1757 = vmatpush1.msra.mxu0 0.0
      %1758 = vmatprep.subr.mxu0 0.0
      %1759 = vmatpush1.msra.mxu0 0.0
      %1760 = vmatprep.subr.mxu0 0.0
      %1761 = vmatpush1.msra.mxu0 0.0
      %1762 = vmatprep.subr.mxu0 0.0
      %1763 = vmatpush1.msra.mxu0 0.0
      %1764 = vmatprep.subr.mxu0 0.0
      %1765 = vmatpush1.msra.mxu0 0.0
      %1766 = vmatprep.subr.mxu0 0.0
      %1767 = vmatpush1.msra.mxu0 0.0
      %1768 = vmatprep.subr.mxu0 0.0
      %1769 = vmatpush1.msra.mxu0 0.0
      %1770 = vmatprep.subr.mxu0 0.0
      %1771 = vmatpush1.msra.mxu0 0.0
      %1772 = vmatprep.subr.mxu0 0.0
      %1773 = vmatpush1.msra.mxu0 0.0
      %1774 = vmatprep.subr.mxu0 0.0
      %1775 = vmatpush1.msra.mxu0 0.0
      %1776 = vmatprep.subr.mxu0 0.0
      %1777 = vmatpush1.msra.mxu0 0.0
      %1778 = vmatprep.subr.mxu0 0.0
      %1779 = vmatpush1.msra.mxu0 %v1750
      %1780 = vmatprep.subr.mxu0 0.0
      %1781 = vmatpush1.msra.mxu0 %v1736
      %1782 = vmatprep.subr.mxu0 0.0
      %1783 = vmatpush1.msra.mxu0 %v1734
      %1784 = vmatprep.subr.mxu0 0.0
      %1785 = vmatpush2.msra.mxu0 0.0
      %1786 = vmatprep.subr.mxu0 0.0
      %1787 = vmatpush2.msra.mxu0 0.0
      %1788 = vmatprep.subr.mxu0 0.0
      %1789 = vmatpush2.msra.mxu0 0.0
      %1790 = vmatprep.subr.mxu0 0.0
      %1791 = vmatpush2.msra.mxu0 0.0
      %1792 = vmatprep.subr.mxu0 0.0
      %1793 = vmatpush2.msra.mxu0 0.0
      %1794 = vmatprep.subr.mxu0 0.0
      %1795 = vmatpush2.msra.mxu0 0.0
      %1796 = vmatprep.subr.mxu0 0.0
      %1797 = vmatpush2.msra.mxu0 0.0
      %1798 = vmatprep.subr.mxu0 0.0
      %1799 = vmatpush2.msra.mxu0 0.0
      %1800 = vmatprep.subr.mxu0 0.0
      %1801 = vmatpush2.msra.mxu0 0.0
      %1802 = vmatprep.subr.mxu0 0.0
      %1803 = vmatpush2.msra.mxu0 0.0
      %1804 = vmatprep.subr.mxu0 0.0
      %1805 = vmatpush2.msra.mxu0 0.0
      %1806 = vmatprep.subr.mxu0 0.0
      %1807 = vmatpush2.msra.mxu0 0.0
      %1808 = vmatprep.subr.mxu0 0.0
      %1809 = vmatpush2.msra.mxu0 0.0
      %1810 = vmatprep.subr.mxu0 0.0
      %1811 = vmatpush2.msra.mxu0 0.0
      %1812 = vmatprep.subr.mxu0 0.0
      %1813 = vmatpush2.msra.mxu0 0.0
      %1814 = vmatprep.subr.mxu0 0.0
      %1815 = vmatpush2.msra.mxu0 0.0
      %1816 = vmatprep.mubr.f32.mxu0 0.0
      %1817 = vmatmul.mubr.f32.gmra.mxu0 %v1742
      %v1818 = vpop.f32.mrf.mxu0
      %v1819 = vadd.f32 0.0, %v1818
      %v1820 = vpop.f32.mrf.mxu0
      %1821 = vmatprep.mubr.f32.mxu0 0.0
      %1822 = vmatmul.mubr.f32.gmra.mxu0 %v1745
      %v1823 = vpop.f32.mrf.mxu0
      %v1824 = vadd.f32 0.0, %v1823
      %v1825 = vpop.f32.mrf.mxu0
      %1826 = vmatprep.mubr.f32.mxu0 0.0
      %1827 = vmatmul.mubr.f32.gmra.mxu0 %v1748
      %v1828 = vpop.f32.mrf.mxu0
      %v1829 = vadd.f32 0.0, %v1828
      %v1830 = vpop.f32.mrf.mxu0
      %1831 = vdwg.mxu0
      %1835 = vrot.lane.b32.xlu0 %v1341, 8
      %v1836 = vpop.permute.xlu0 %1835
      %1837 = vrot.lane.b32.xlu0 %v1346, 8
      %v1838 = vpop.permute.xlu0 %1837
      %1839 = vrot.lane.b32.xlu0 %v1351, 8
      %v1840 = vpop.permute.xlu0 %1839
      %1847 = vrot.lane.b32.xlu0 %v1580, 16
      %v1848 = vpop.permute.xlu0 %1847
      %1849 = vrot.lane.b32.xlu0 %v1585, 16
      %v1850 = vpop.permute.xlu0 %1849
      %1851 = vrot.lane.b32.xlu0 %v1590, 16
      %v1852 = vpop.permute.xlu0 %1851
      %1859 = vrot.lane.b32.xlu0 %v1819, 24
      %v1860 = vpop.permute.xlu0 %1859
      %1861 = vrot.lane.b32.xlu0 %v1824, 24
      %v1862 = vpop.permute.xlu0 %1861
      %1863 = vrot.lane.b32.xlu0 %v1829, 24
      %v1864 = vpop.permute.xlu0 %1863
      %v1868 = vsel %vm884, %v1102, %v1836
      %v1869 = vsel %vm884, %v1107, %v1838
      %v1870 = vsel %vm884, %v1112, %v1840
      %vm1871 = vcmask 130048
      %v1872 = vsel %vm1871, %v1868, %v1848
      %v1873 = vsel %vm1871, %v1869, %v1850
      %v1874 = vsel %vm1871, %v1870, %v1852
      %vm1875 = vcmask 195584
      %v1876 = vsel %vm1875, %v1872, %v1860
      %v1877 = vsel %vm1875, %v1873, %v1862
      %v1878 = vsel %vm1875, %v1874, %v1864
      %v1879 = vld [vmem:[%s9] sm:$0xff]
      %v1880 = vld [vmem:[%s9 + $0x8] sm:$0xff]
      %v1881 = vld [vmem:[%s9 + $0x10] sm:$0xff]
      %v1882 = vld [vmem:[%s9 + $0x18] sm:$0xff]
      %v1883 = vld [vmem:[%s10] sm:$0x1]
      %v1885 = vlaneseq
      %v1886 = vshrl.u32 %v1885, 7
      %v1887 = vsub.s32 0, %v1886
      %v1888 = vrot.slane %v1883, %v1887
      %v1891 = vsel %vm709, %v1876, 0
      %v1894 = vsel %vm709, %v1877, 0
      %v1897 = vsel %vm709, %v1878, 0
      %1899 = vmatprep.subr.mxu0 0.0
      %1900 = vmatpush1.msra.mxu0 0.0
      %1901 = vmatprep.subr.mxu0 0.0
      %1902 = vmatpush1.msra.mxu0 0.0
      %1903 = vmatprep.subr.mxu0 0.0
      %1904 = vmatpush1.msra.mxu0 0.0
      %1905 = vmatprep.subr.mxu0 0.0
      %1906 = vmatpush1.msra.mxu0 0.0
      %1907 = vmatprep.subr.mxu0 0.0
      %1908 = vmatpush1.msra.mxu0 0.0
      %1909 = vmatprep.subr.mxu0 0.0
      %1910 = vmatpush1.msra.mxu0 0.0
      %1911 = vmatprep.subr.mxu0 0.0
      %1912 = vmatpush1.msra.mxu0 0.0
      %1913 = vmatprep.subr.mxu0 0.0
      %1914 = vmatpush1.msra.mxu0 0.0
      %1915 = vmatprep.subr.mxu0 0.0
      %1916 = vmatpush1.msra.mxu0 0.0
      %1917 = vmatprep.subr.mxu0 0.0
      %1918 = vmatpush1.msra.mxu0 0.0
      %1919 = vmatprep.subr.mxu0 0.0
      %1920 = vmatpush1.msra.mxu0 0.0
      %1921 = vmatprep.subr.mxu0 0.0
      %1922 = vmatpush1.msra.mxu0 0.0
      %1923 = vmatprep.subr.mxu0 0.0
      %1924 = vmatpush1.msra.mxu0 %v1882
      %1925 = vmatprep.subr.mxu0 0.0
      %1926 = vmatpush1.msra.mxu0 %v1881
      %1927 = vmatprep.subr.mxu0 0.0
      %1928 = vmatpush1.msra.mxu0 %v1880
      %1929 = vmatprep.subr.mxu0 0.0
      %1930 = vmatpush1.msra.mxu0 %v1879
      %1931 = vmatprep.subr.mxu0 0.0
      %1932 = vmatpush2.msra.mxu0 0.0
      %1933 = vmatprep.subr.mxu0 0.0
      %1934 = vmatpush2.msra.mxu0 0.0
      %1935 = vmatprep.subr.mxu0 0.0
      %1936 = vmatpush2.msra.mxu0 0.0
      %1937 = vmatprep.subr.mxu0 0.0
      %1938 = vmatpush2.msra.mxu0 0.0
      %1939 = vmatprep.subr.mxu0 0.0
      %1940 = vmatpush2.msra.mxu0 0.0
      %1941 = vmatprep.subr.mxu0 0.0
      %1942 = vmatpush2.msra.mxu0 0.0
      %1943 = vmatprep.subr.mxu0 0.0
      %1944 = vmatpush2.msra.mxu0 0.0
      %1945 = vmatprep.subr.mxu0 0.0
      %1946 = vmatpush2.msra.mxu0 0.0
      %1947 = vmatprep.subr.mxu0 0.0
      %1948 = vmatpush2.msra.mxu0 0.0
      %1949 = vmatprep.subr.mxu0 0.0
      %1950 = vmatpush2.msra.mxu0 0.0
      %1951 = vmatprep.subr.mxu0 0.0
      %1952 = vmatpush2.msra.mxu0 0.0
      %1953 = vmatprep.subr.mxu0 0.0
      %1954 = vmatpush2.msra.mxu0 0.0
      %1955 = vmatprep.subr.mxu0 0.0
      %1956 = vmatpush2.msra.mxu0 0.0
      %1957 = vmatprep.subr.mxu0 0.0
      %1958 = vmatpush2.msra.mxu0 0.0
      %1959 = vmatprep.subr.mxu0 0.0
      %1960 = vmatpush2.msra.mxu0 0.0
      %1961 = vmatprep.subr.mxu0 0.0
      %1962 = vmatpush2.msra.mxu0 0.0
      %1963 = vmatprep.mubr.f32.mxu0 0.0
      %1964 = vmatmul.mubr.f32.gmra.mxu0 %v1891
      %v1965 = vpop.f32.mrf.mxu0
      %v1966 = vadd.f32 %v1888, %v1965
      %v1967 = vpop.f32.mrf.mxu0
      %1968 = vmatprep.mubr.f32.mxu0 0.0
      %1969 = vmatmul.mubr.f32.gmra.mxu0 %v1894
      %v1970 = vpop.f32.mrf.mxu0
      %v1971 = vadd.f32 %v1888, %v1970
      %v1972 = vpop.f32.mrf.mxu0
      %1973 = vmatprep.mubr.f32.mxu0 0.0
      %1974 = vmatmul.mubr.f32.gmra.mxu0 %v1897
      %v1975 = vpop.f32.mrf.mxu0
      %v1976 = vadd.f32 %v1888, %v1975
      %v1977 = vpop.f32.mrf.mxu0
      %1978 = vdwg.mxu0
      %v1979 = vadd.f32 %v712, %v1966
      %v1980 = vadd.f32 %v713, %v1971
      %v1981 = vadd.f32 %v714, %v1976
      %v1982 = vld [vmem:[%s11] sm:$0x1]
      %v1983 = vld [vmem:[%s12] sm:$0x1]
      %v1984 = vsel %vm709, %v1979, 0.0
      %1985 = vadd.xlane.f32.xlu0 %v1984
      %v1986 = vpop.xlane.xlu0 %1985
      %v1987 = vsel %vm709, %v1980, 0.0
      %1988 = vadd.xlane.f32.xlu0 %v1987
      %v1989 = vpop.xlane.xlu0 %1988
      %v1990 = vsel %vm703, %v1981, 0.0
      %1991 = vadd.xlane.f32.xlu0 %v1990
      %v1992 = vpop.xlane.xlu0 %1991
      %v1993 = vmul.f32 %v1986, %v726
      %v1994 = vmul.f32 %v1989, %v726
      %v1995 = vmul.f32 %v1992, %v726
      %v1996 = vsub.f32 %v1979, %v1993
      %v1997 = vsub.f32 %v1980, %v1994
      %v1998 = vsub.f32 %v1981, %v1995
      %v1999 = vmul.f32 %v1996, %v1996
      %v2000 = vmul.f32 %v1997, %v1997
      %v2001 = vmul.f32 %v1998, %v1998
      %v2002 = vsel %vm709, %v1999, 0.0
      %2003 = vadd.xlane.f32.xlu0 %v2002
      %v2004 = vpop.xlane.xlu0 %2003
      %v2005 = vsel %vm709, %v2000, 0.0
      %2006 = vadd.xlane.f32.xlu0 %v2005
      %v2007 = vpop.xlane.xlu0 %2006
      %v2008 = vsel %vm703, %v2001, 0.0
      %2009 = vadd.xlane.f32.xlu0 %v2008
      %v2010 = vpop.xlane.xlu0 %2009
      %v2011 = vmul.f32 %v2004, %v726
      %v2012 = vmul.f32 %v2007, %v726
      %v2013 = vmul.f32 %v2010, %v726
      %v2014 = vadd.f32 %v2011, 1e-06
      %v2015 = vadd.f32 %v2012, 1e-06
      %v2016 = vadd.f32 %v2013, 1e-06
      %v2017 = vrsqrt.pop %v2014
      %v2018 = vrsqrt.pop %v2015
      %v2019 = vrsqrt.pop %v2016
      %v2020 = vmul.f32 %v1996, %v2017
      %v2021 = vmul.f32 %v1997, %v2018
      %v2022 = vmul.f32 %v1998, %v2019
      %v2024 = vlaneseq
      %v2025 = vshrl.u32 %v2024, 7
      %v2026 = vsub.s32 0, %v2025
      %v2027 = vrot.slane %v1982, %v2026
      %v2029 = vmul.f32 %v2020, %v2027
      %v2030 = vmul.f32 %v2021, %v2027
      %v2031 = vmul.f32 %v2022, %v2027
      %v2033 = vlaneseq
      %v2034 = vshrl.u32 %v2033, 7
      %v2035 = vsub.s32 0, %v2034
      %v2036 = vrot.slane %v1983, %v2035
      %v2038 = vadd.f32 %v2029, %v2036
      %v2039 = vadd.f32 %v2030, %v2036
      %v2040 = vadd.f32 %v2031, %v2036
      %v2041 = vld [vmem:[%s13] sm:$0xff]
      %v2042 = vld [vmem:[%s13 + $0x8] sm:$0xff]
      %v2043 = vld [vmem:[%s13 + $0x10] sm:$0xff]
      %v2044 = vld [vmem:[%s13 + $0x18] sm:$0xff]
      %v2045 = vld [vmem:[%s14] sm:$0x1]
      %v2047 = vlaneseq
      %v2048 = vshrl.u32 %v2047, 7
      %v2049 = vsub.s32 0, %v2048
      %v2050 = vrot.slane %v2045, %v2049
      %v2053 = vsel %vm709, %v2038, 0
      %v2056 = vsel %vm709, %v2039, 0
      %v2059 = vsel %vm709, %v2040, 0
      %2061 = vmatprep.subr.mxu0 0.0
      %2062 = vmatpush1.msra.mxu0 0.0
      %2063 = vmatprep.subr.mxu0 0.0
      %2064 = vmatpush1.msra.mxu0 0.0
      %2065 = vmatprep.subr.mxu0 0.0
      %2066 = vmatpush1.msra.mxu0 0.0
      %2067 = vmatprep.subr.mxu0 0.0
      %2068 = vmatpush1.msra.mxu0 0.0
      %2069 = vmatprep.subr.mxu0 0.0
      %2070 = vmatpush1.msra.mxu0 0.0
      %2071 = vmatprep.subr.mxu0 0.0
      %2072 = vmatpush1.msra.mxu0 0.0
      %2073 = vmatprep.subr.mxu0 0.0
      %2074 = vmatpush1.msra.mxu0 0.0
      %2075 = vmatprep.subr.mxu0 0.0
      %2076 = vmatpush1.msra.mxu0 0.0
      %2077 = vmatprep.subr.mxu0 0.0
      %2078 = vmatpush1.msra.mxu0 0.0
      %2079 = vmatprep.subr.mxu0 0.0
      %2080 = vmatpush1.msra.mxu0 0.0
      %2081 = vmatprep.subr.mxu0 0.0
      %2082 = vmatpush1.msra.mxu0 0.0
      %2083 = vmatprep.subr.mxu0 0.0
      %2084 = vmatpush1.msra.mxu0 0.0
      %2085 = vmatprep.subr.mxu0 0.0
      %2086 = vmatpush1.msra.mxu0 %v2044
      %2087 = vmatprep.subr.mxu0 0.0
      %2088 = vmatpush1.msra.mxu0 %v2043
      %2089 = vmatprep.subr.mxu0 0.0
      %2090 = vmatpush1.msra.mxu0 %v2042
      %2091 = vmatprep.subr.mxu0 0.0
      %2092 = vmatpush1.msra.mxu0 %v2041
      %2093 = vmatprep.subr.mxu0 0.0
      %2094 = vmatpush2.msra.mxu0 0.0
      %2095 = vmatprep.subr.mxu0 0.0
      %2096 = vmatpush2.msra.mxu0 0.0
      %2097 = vmatprep.subr.mxu0 0.0
      %2098 = vmatpush2.msra.mxu0 0.0
      %2099 = vmatprep.subr.mxu0 0.0
      %2100 = vmatpush2.msra.mxu0 0.0
      %2101 = vmatprep.subr.mxu0 0.0
      %2102 = vmatpush2.msra.mxu0 0.0
      %2103 = vmatprep.subr.mxu0 0.0
      %2104 = vmatpush2.msra.mxu0 0.0
      %2105 = vmatprep.subr.mxu0 0.0
      %2106 = vmatpush2.msra.mxu0 0.0
      %2107 = vmatprep.subr.mxu0 0.0
      %2108 = vmatpush2.msra.mxu0 0.0
      %2109 = vmatprep.subr.mxu0 0.0
      %2110 = vmatpush2.msra.mxu0 0.0
      %2111 = vmatprep.subr.mxu0 0.0
      %2112 = vmatpush2.msra.mxu0 0.0
      %2113 = vmatprep.subr.mxu0 0.0
      %2114 = vmatpush2.msra.mxu0 0.0
      %2115 = vmatprep.subr.mxu0 0.0
      %2116 = vmatpush2.msra.mxu0 0.0
      %2117 = vmatprep.subr.mxu0 0.0
      %2118 = vmatpush2.msra.mxu0 0.0
      %2119 = vmatprep.subr.mxu0 0.0
      %2120 = vmatpush2.msra.mxu0 0.0
      %2121 = vmatprep.subr.mxu0 0.0
      %2122 = vmatpush2.msra.mxu0 0.0
      %2123 = vmatprep.subr.mxu0 0.0
      %2124 = vmatpush2.msra.mxu0 0.0
      %2125 = vmatprep.mubr.f32.mxu0 0.0
      %2126 = vmatmul.mubr.f32.gmra.mxu0 %v2053
      %v2127 = vpop.f32.mrf.mxu0
      %v2128 = vadd.f32 %v2050, %v2127
      %v2129 = vpop.f32.mrf.mxu0
      %2130 = vmatprep.mubr.f32.mxu0 0.0
      %2131 = vmatmul.mubr.f32.gmra.mxu0 %v2056
      %v2132 = vpop.f32.mrf.mxu0
      %v2133 = vadd.f32 %v2050, %v2132
      %v2134 = vpop.f32.mrf.mxu0
      %2135 = vmatprep.mubr.f32.mxu0 0.0
      %2136 = vmatmul.mubr.f32.gmra.mxu0 %v2059
      %v2137 = vpop.f32.mrf.mxu0
      %v2138 = vadd.f32 %v2050, %v2137
      %v2139 = vpop.f32.mrf.mxu0
      %2140 = vdwg.mxu0
      %v2141 = vmul.f32 %v2128, 0.5
      %v2142 = vmul.f32 %v2133, 0.5
      %v2143 = vmul.f32 %v2138, 0.5
      %v2144 = vmul.f32 %v2128, 0.70710677
      %v2145 = vmul.f32 %v2133, 0.70710677
      %v2146 = vmul.f32 %v2138, 0.70710677
      %v2147 = vand.u32 2147483647, %v2144
      %v2148 = vand.u32 2147483647, %v2145
      %v2149 = vand.u32 2147483647, %v2146
      %v2150 = vmul.f32 %v2147, 0.3275911
      %v2151 = vmul.f32 %v2148, 0.3275911
      %v2152 = vmul.f32 %v2149, 0.3275911
      %v2153 = vadd.f32 %v2150, 1.0
      %v2154 = vadd.f32 %v2151, 1.0
      %v2155 = vadd.f32 %v2152, 1.0
      %v2156 = vrcp.pop %v2153
      %v2157 = vrcp.pop %v2154
      %v2158 = vrcp.pop %v2155
      %v2159 = vmul.f32 %v2156, 1.0614054
      %v2160 = vmul.f32 %v2157, 1.0614054
      %v2161 = vmul.f32 %v2158, 1.0614054
      %v2162 = vadd.f32 %v2159, -1.4531521
      %v2163 = vadd.f32 %v2160, -1.4531521
      %v2164 = vadd.f32 %v2161, -1.4531521
      %v2165 = vmul.f32 %v2162, %v2156
      %v2166 = vmul.f32 %v2163, %v2157
      %v2167 = vmul.f32 %v2164, %v2158
      %v2168 = vadd.f32 %v2165, 1.4214138
      %v2169 = vadd.f32 %v2166, 1.4214138
      %v2170 = vadd.f32 %v2167, 1.4214138
      %v2171 = vmul.f32 %v2168, %v2156
      %v2172 = vmul.f32 %v2169, %v2157
      %v2173 = vmul.f32 %v2170, %v2158
      %v2174 = vadd.f32 %v2171, -0.28449672
      %v2175 = vadd.f32 %v2172, -0.28449672
      %v2176 = vadd.f32 %v2173, -0.28449672
      %v2177 = vmul.f32 %v2174, %v2156
      %v2178 = vmul.f32 %v2175, %v2157
      %v2179 = vmul.f32 %v2176, %v2158
      %v2180 = vadd.f32 %v2177, 0.2548296
      %v2181 = vadd.f32 %v2178, 0.2548296
      %v2182 = vadd.f32 %v2179, 0.2548296
      %v2183 = vmul.f32 %v2180, %v2156
      %v2184 = vmul.f32 %v2181, %v2157
      %v2185 = vmul.f32 %v2182, %v2158
      %v2186 = vsub.f32 0.0, %v2147
      %v2187 = vsub.f32 0.0, %v2148
      %v2188 = vsub.f32 0.0, %v2149
      %v2189 = vmul.f32 %v2186, %v2147
      %v2190 = vmul.f32 %v2187, %v2148
      %v2191 = vmul.f32 %v2188, %v2149
      %v2192 = vmul.f32 %v2189, 1.442695
      %v2193 = vpow.pop %v2192
      %v2194 = vmul.f32 %v2190, 1.442695
      %v2195 = vpow.pop %v2194
      %v2196 = vmul.f32 %v2191, 1.442695
      %v2197 = vpow.pop %v2196
      %v2198 = vmul.f32 %v2183, %v2193
      %v2199 = vmul.f32 %v2184, %v2195
      %v2200 = vmul.f32 %v2185, %v2197
      %v2201 = vsub.f32 1.0, %v2198
      %v2202 = vsub.f32 1.0, %v2199
      %v2203 = vsub.f32 1.0, %v2200
      %vm2204 = vcmp.ge.f32.partialorder %v2144, 0.0
      %vm2205 = vcmp.ge.f32.partialorder %v2145, 0.0
      %vm2206 = vcmp.ge.f32.partialorder %v2146, 0.0
      %v2207 = vsub.f32 0.0, %v2201
      %v2208 = vsub.f32 0.0, %v2202
      %v2209 = vsub.f32 0.0, %v2203
      %v2210 = vsel %vm2204, %v2201, %v2207
      %v2211 = vsel %vm2205, %v2202, %v2208
      %v2212 = vsel %vm2206, %v2203, %v2209
      %v2213 = vadd.f32 %v2210, 1.0
      %v2214 = vadd.f32 %v2211, 1.0
      %v2215 = vadd.f32 %v2212, 1.0
      %v2216 = vmul.f32 %v2141, %v2213
      %v2217 = vmul.f32 %v2142, %v2214
      %v2218 = vmul.f32 %v2143, %v2215
      %v2219 = vld [vmem:[%s15] sm:$0xff]
      %v2220 = vld [vmem:[%s15 + $0x8] sm:$0xff]
      %v2221 = vld [vmem:[%s15 + $0x10] sm:$0xff]
      %v2222 = vld [vmem:[%s15 + $0x18] sm:$0xff]
      %v2223 = vld [vmem:[%s15 + $0x20] sm:$0xff]
      %v2224 = vld [vmem:[%s15 + $0x28] sm:$0xff]
      %v2225 = vld [vmem:[%s15 + $0x30] sm:$0xff]
      %v2226 = vld [vmem:[%s15 + $0x38] sm:$0xff]
      %v2227 = vld [vmem:[%s16] sm:$0x1]
      %v2229 = vlaneseq
      %v2230 = vshrl.u32 %v2229, 7
      %v2231 = vsub.s32 0, %v2230
      %v2232 = vrot.slane %v2227, %v2231
      %vm2234 = vcmask 523264
      %v2236 = vsel %vm2234, %v2216, 0
      %v2239 = vsel %vm2234, %v2217, 0
      %v2242 = vsel %vm2234, %v2218, 0
      %2244 = vmatprep.subr.mxu0 0.0
      %2245 = vmatpush1.msra.mxu0 0.0
      %2246 = vmatprep.subr.mxu0 0.0
      %2247 = vmatpush1.msra.mxu0 0.0
      %2248 = vmatprep.subr.mxu0 0.0
      %2249 = vmatpush1.msra.mxu0 0.0
      %2250 = vmatprep.subr.mxu0 0.0
      %2251 = vmatpush1.msra.mxu0 0.0
      %2252 = vmatprep.subr.mxu0 0.0
      %2253 = vmatpush1.msra.mxu0 0.0
      %2254 = vmatprep.subr.mxu0 0.0
      %2255 = vmatpush1.msra.mxu0 0.0
      %2256 = vmatprep.subr.mxu0 0.0
      %2257 = vmatpush1.msra.mxu0 0.0
      %2258 = vmatprep.subr.mxu0 0.0
      %2259 = vmatpush1.msra.mxu0 0.0
      %2260 = vmatprep.subr.mxu0 0.0
      %2261 = vmatpush1.msra.mxu0 %v2226
      %2262 = vmatprep.subr.mxu0 0.0
      %2263 = vmatpush1.msra.mxu0 %v2225
      %2264 = vmatprep.subr.mxu0 0.0
      %2265 = vmatpush1.msra.mxu0 %v2224
      %2266 = vmatprep.subr.mxu0 0.0
      %2267 = vmatpush1.msra.mxu0 %v2223
      %2268 = vmatprep.subr.mxu0 0.0
      %2269 = vmatpush1.msra.mxu0 %v2222
      %2270 = vmatprep.subr.mxu0 0.0
      %2271 = vmatpush1.msra.mxu0 %v2221
      %2272 = vmatprep.subr.mxu0 0.0
      %2273 = vmatpush1.msra.mxu0 %v2220
      %2274 = vmatprep.subr.mxu0 0.0
      %2275 = vmatpush1.msra.mxu0 %v2219
      %2276 = vmatprep.subr.mxu0 0.0
      %2277 = vmatpush2.msra.mxu0 0.0
      %2278 = vmatprep.subr.mxu0 0.0
      %2279 = vmatpush2.msra.mxu0 0.0
      %2280 = vmatprep.subr.mxu0 0.0
      %2281 = vmatpush2.msra.mxu0 0.0
      %2282 = vmatprep.subr.mxu0 0.0
      %2283 = vmatpush2.msra.mxu0 0.0
      %2284 = vmatprep.subr.mxu0 0.0
      %2285 = vmatpush2.msra.mxu0 0.0
      %2286 = vmatprep.subr.mxu0 0.0
      %2287 = vmatpush2.msra.mxu0 0.0
      %2288 = vmatprep.subr.mxu0 0.0
      %2289 = vmatpush2.msra.mxu0 0.0
      %2290 = vmatprep.subr.mxu0 0.0
      %2291 = vmatpush2.msra.mxu0 0.0
      %2292 = vmatprep.subr.mxu0 0.0
      %2293 = vmatpush2.msra.mxu0 0.0
      %2294 = vmatprep.subr.mxu0 0.0
      %2295 = vmatpush2.msra.mxu0 0.0
      %2296 = vmatprep.subr.mxu0 0.0
      %2297 = vmatpush2.msra.mxu0 0.0
      %2298 = vmatprep.subr.mxu0 0.0
      %2299 = vmatpush2.msra.mxu0 0.0
      %2300 = vmatprep.subr.mxu0 0.0
      %2301 = vmatpush2.msra.mxu0 0.0
      %2302 = vmatprep.subr.mxu0 0.0
      %2303 = vmatpush2.msra.mxu0 0.0
      %2304 = vmatprep.subr.mxu0 0.0
      %2305 = vmatpush2.msra.mxu0 0.0
      %2306 = vmatprep.subr.mxu0 0.0
      %2307 = vmatpush2.msra.mxu0 0.0
      %2308 = vmatprep.mubr.f32.mxu0 0.0
      %2309 = vmatmul.mubr.f32.gmra.mxu0 %v2236
      %v2310 = vpop.f32.mrf.mxu0
      %v2311 = vadd.f32 %v2232, %v2310
      %v2312 = vpop.f32.mrf.mxu0
      %2313 = vmatprep.mubr.f32.mxu0 0.0
      %2314 = vmatmul.mubr.f32.gmra.mxu0 %v2239
      %v2315 = vpop.f32.mrf.mxu0
      %v2316 = vadd.f32 %v2232, %v2315
      %v2317 = vpop.f32.mrf.mxu0
      %2318 = vmatprep.mubr.f32.mxu0 0.0
      %2319 = vmatmul.mubr.f32.gmra.mxu0 %v2242
      %v2320 = vpop.f32.mrf.mxu0
      %v2321 = vadd.f32 %v2232, %v2320
      %v2322 = vpop.f32.mrf.mxu0
      %2323 = vdwg.mxu0
      %v2324 = vadd.f32 %v1979, %v2311
      %v2325 = vadd.f32 %v1980, %v2316
      %v2326 = vadd.f32 %v1981, %v2321
      %2327 = vst.msk [vmem:[#allocation2] sm:$0xff] %vm709, %v2324
      %2328 = vst.msk [vmem:[#allocation2 + $0x8] sm:$0xff] %vm709, %v2325
      %2329 = vst.msk [vmem:[#allocation2 + $0x10] sm:$0x1] %vm703, %v2326
      %v2330 = vld [vmem:[#allocation2] sm:$0xff]
      %v2331 = vld [vmem:[#allocation2 + $0x8] sm:$0xff]
      %v2332 = vld [vmem:[#allocation2 + $0x10] sm:$0x1]
      %s2333 = scalar_lea.vmem %s5, 1
      %v2334 = vld [vmem:[%s2333] sm:$0x1]
      %s2335 = scalar_lea.vmem %s6, 1
      %v2336 = vld [vmem:[%s2335] sm:$0x1]
      %v2337 = vsel %vm709, %v2330, 0.0
      %2338 = vadd.xlane.f32.xlu0 %v2337
      %v2339 = vpop.xlane.xlu0 %2338
      %v2340 = vsel %vm709, %v2331, 0.0
      %2341 = vadd.xlane.f32.xlu0 %v2340
      %v2342 = vpop.xlane.xlu0 %2341
      %v2343 = vsel %vm703, %v2332, 0.0
      %2344 = vadd.xlane.f32.xlu0 %v2343
      %v2345 = vpop.xlane.xlu0 %2344
      %v2346 = vmul.f32 %v2339, %v726
      %v2347 = vmul.f32 %v2342, %v726
      %v2348 = vmul.f32 %v2345, %v726
      %v2349 = vsub.f32 %v2330, %v2346
      %v2350 = vsub.f32 %v2331, %v2347
      %v2351 = vsub.f32 %v2332, %v2348
      %v2352 = vmul.f32 %v2349, %v2349
      %v2353 = vmul.f32 %v2350, %v2350
      %v2354 = vmul.f32 %v2351, %v2351
      %v2355 = vsel %vm709, %v2352, 0.0
      %2356 = vadd.xlane.f32.xlu0 %v2355
      %v2357 = vpop.xlane.xlu0 %2356
      %v2358 = vsel %vm709, %v2353, 0.0
      %2359 = vadd.xlane.f32.xlu0 %v2358
      %v2360 = vpop.xlane.xlu0 %2359
      %v2361 = vsel %vm703, %v2354, 0.0
      %2362 = vadd.xlane.f32.xlu0 %v2361
      %v2363 = vpop.xlane.xlu0 %2362
      %v2364 = vmul.f32 %v2357, %v726
      %v2365 = vmul.f32 %v2360, %v726
      %v2366 = vmul.f32 %v2363, %v726
      %v2367 = vadd.f32 %v2364, 1e-06
      %v2368 = vadd.f32 %v2365, 1e-06
      %v2369 = vadd.f32 %v2366, 1e-06
      %v2370 = vrsqrt.pop %v2367
      %v2371 = vrsqrt.pop %v2368
      %v2372 = vrsqrt.pop %v2369
      %v2373 = vmul.f32 %v2349, %v2370
      %v2374 = vmul.f32 %v2350, %v2371
      %v2375 = vmul.f32 %v2351, %v2372
      %v2377 = vlaneseq
      %v2378 = vshrl.u32 %v2377, 7
      %v2379 = vsub.s32 0, %v2378
      %v2380 = vrot.slane %v2334, %v2379
      %v2382 = vmul.f32 %v2373, %v2380
      %v2383 = vmul.f32 %v2374, %v2380
      %v2384 = vmul.f32 %v2375, %v2380
      %v2386 = vlaneseq
      %v2387 = vshrl.u32 %v2386, 7
      %v2388 = vsub.s32 0, %v2387
      %v2389 = vrot.slane %v2336, %v2388
      %v2391 = vadd.f32 %v2382, %v2389
      %v2392 = vadd.f32 %v2383, %v2389
      %v2393 = vadd.f32 %v2384, %v2389
      %s2394 = scalar_lea.vmem %s7, 32
      %v2395 = vld [vmem:[%s2394] sm:$0xff]
      %v2396 = vld [vmem:[%s2394 + $0x8] sm:$0xff]
      %v2397 = vld [vmem:[%s2394 + $0x10] sm:$0xff]
      %v2398 = vld [vmem:[%s2394 + $0x18] sm:$0xff]
      %s2399 = scalar_lea.vmem %s8, 1
      %v2400 = vld [vmem:[%s2399] sm:$0x1]
      %v2402 = vlaneseq
      %v2403 = vshrl.u32 %v2402, 7
      %v2404 = vsub.s32 0, %v2403
      %v2405 = vrot.slane %v2400, %v2404
      %v2408 = vsel %vm709, %v2391, 0
      %v2411 = vsel %vm709, %v2392, 0
      %v2414 = vsel %vm709, %v2393, 0
      %2416 = vmatprep.subr.mxu0 0.0
      %2417 = vmatpush1.msra.mxu0 0.0
      %2418 = vmatprep.subr.mxu0 0.0
      %2419 = vmatpush1.msra.mxu0 0.0
      %2420 = vmatprep.subr.mxu0 0.0
      %2421 = vmatpush1.msra.mxu0 0.0
      %2422 = vmatprep.subr.mxu0 0.0
      %2423 = vmatpush1.msra.mxu0 0.0
      %2424 = vmatprep.subr.mxu0 0.0
      %2425 = vmatpush1.msra.mxu0 0.0
      %2426 = vmatprep.subr.mxu0 0.0
      %2427 = vmatpush1.msra.mxu0 0.0
      %2428 = vmatprep.subr.mxu0 0.0
      %2429 = vmatpush1.msra.mxu0 0.0
      %2430 = vmatprep.subr.mxu0 0.0
      %2431 = vmatpush1.msra.mxu0 0.0
      %2432 = vmatprep.subr.mxu0 0.0
      %2433 = vmatpush1.msra.mxu0 0.0
      %2434 = vmatprep.subr.mxu0 0.0
      %2435 = vmatpush1.msra.mxu0 0.0
      %2436 = vmatprep.subr.mxu0 0.0
      %2437 = vmatpush1.msra.mxu0 0.0
      %2438 = vmatprep.subr.mxu0 0.0
      %2439 = vmatpush1.msra.mxu0 0.0
      %2440 = vmatprep.subr.mxu0 0.0
      %2441 = vmatpush1.msra.mxu0 %v2398
      %2442 = vmatprep.subr.mxu0 0.0
      %2443 = vmatpush1.msra.mxu0 %v2397
      %2444 = vmatprep.subr.mxu0 0.0
      %2445 = vmatpush1.msra.mxu0 %v2396
      %2446 = vmatprep.subr.mxu0 0.0
      %2447 = vmatpush1.msra.mxu0 %v2395
      %2448 = vmatprep.subr.mxu0 0.0
      %2449 = vmatpush2.msra.mxu0 0.0
      %2450 = vmatprep.subr.mxu0 0.0
      %2451 = vmatpush2.msra.mxu0 0.0
      %2452 = vmatprep.subr.mxu0 0.0
      %2453 = vmatpush2.msra.mxu0 0.0
      %2454 = vmatprep.subr.mxu0 0.0
      %2455 = vmatpush2.msra.mxu0 0.0
      %2456 = vmatprep.subr.mxu0 0.0
      %2457 = vmatpush2.msra.mxu0 0.0
      %2458 = vmatprep.subr.mxu0 0.0
      %2459 = vmatpush2.msra.mxu0 0.0
      %2460 = vmatprep.subr.mxu0 0.0
      %2461 = vmatpush2.msra.mxu0 0.0
      %2462 = vmatprep.subr.mxu0 0.0
      %2463 = vmatpush2.msra.mxu0 0.0
      %2464 = vmatprep.subr.mxu0 0.0
      %2465 = vmatpush2.msra.mxu0 0.0
      %2466 = vmatprep.subr.mxu0 0.0
      %2467 = vmatpush2.msra.mxu0 0.0
      %2468 = vmatprep.subr.mxu0 0.0
      %2469 = vmatpush2.msra.mxu0 0.0
      %2470 = vmatprep.subr.mxu0 0.0
      %2471 = vmatpush2.msra.mxu0 0.0
      %2472 = vmatprep.subr.mxu0 0.0
      %2473 = vmatpush2.msra.mxu0 0.0
      %2474 = vmatprep.subr.mxu0 0.0
      %2475 = vmatpush2.msra.mxu0 0.0
      %2476 = vmatprep.subr.mxu0 0.0
      %2477 = vmatpush2.msra.mxu0 0.0
      %2478 = vmatprep.subr.mxu0 0.0
      %2479 = vmatpush2.msra.mxu0 0.0
      %2480 = vmatprep.mubr.f32.mxu0 0.0
      %2481 = vmatmul.mubr.f32.gmra.mxu0 %v2408
      %v2482 = vpop.f32.mrf.mxu0
      %v2483 = vadd.f32 %v2405, %v2482
      %v2484 = vpop.f32.mrf.mxu0
      %2485 = vmatprep.mubr.f32.mxu0 0.0
      %2486 = vmatmul.mubr.f32.gmra.mxu0 %v2411
      %v2487 = vpop.f32.mrf.mxu0
      %v2488 = vadd.f32 %v2405, %v2487
      %v2489 = vpop.f32.mrf.mxu0
      %2490 = vmatprep.mubr.f32.mxu0 0.0
      %2491 = vmatmul.mubr.f32.gmra.mxu0 %v2414
      %v2492 = vpop.f32.mrf.mxu0
      %v2493 = vadd.f32 %v2405, %v2492
      %v2494 = vpop.f32.mrf.mxu0
      %2495 = vdwg.mxu0
      %2499 = vrot.lane.b32.xlu0 %v2483, 96
      %v2500 = vpop.permute.xlu0 %2499
      %2501 = vrot.lane.b32.xlu0 %v2488, 96
      %v2502 = vpop.permute.xlu0 %2501
      %2503 = vrot.lane.b32.xlu0 %v2493, 96
      %v2504 = vpop.permute.xlu0 %2503
      %v2505 = vsel %vm884, %v2483, 0
      %v2507 = vsel %vm884, %v2488, 0
      %v2509 = vsel %vm884, %v2493, 0
      %v2511 = vsel %vm884, %v2500, 0
      %v2513 = vsel %vm884, %v2502, 0
      %v2515 = vsel %vm884, %v2504, 0
      %2517 = vmatprep.subr.mxu0 0.0
      %2518 = vmatpush1.xpose.msra.mxu0 0.0
      %2519 = vmatprep.subr.mxu0 0.0
      %2520 = vmatpush1.xpose.msra.mxu0 0.0
      %2521 = vmatprep.subr.mxu0 0.0
      %2522 = vmatpush1.xpose.msra.mxu0 0.0
      %2523 = vmatprep.subr.mxu0 0.0
      %2524 = vmatpush1.xpose.msra.mxu0 0.0
      %2525 = vmatprep.subr.mxu0 0.0
      %2526 = vmatpush1.xpose.msra.mxu0 0.0
      %2527 = vmatprep.subr.mxu0 0.0
      %2528 = vmatpush1.xpose.msra.mxu0 0.0
      %2529 = vmatprep.subr.mxu0 0.0
      %2530 = vmatpush1.xpose.msra.mxu0 0.0
      %2531 = vmatprep.subr.mxu0 0.0
      %2532 = vmatpush1.xpose.msra.mxu0 0.0
      %2533 = vmatprep.subr.mxu0 0.0
      %2534 = vmatpush1.xpose.msra.mxu0 0.0
      %2535 = vmatprep.subr.mxu0 0.0
      %2536 = vmatpush1.xpose.msra.mxu0 0.0
      %2537 = vmatprep.subr.mxu0 0.0
      %2538 = vmatpush1.xpose.msra.mxu0 0.0
      %2539 = vmatprep.subr.mxu0 0.0
      %2540 = vmatpush1.xpose.msra.mxu0 0.0
      %2541 = vmatprep.subr.mxu0 0.0
      %2542 = vmatpush1.xpose.msra.mxu0 0.0
      %2543 = vmatprep.subr.mxu0 0.0
      %2544 = vmatpush1.xpose.msra.mxu0 %v2515
      %2545 = vmatprep.subr.mxu0 0.0
      %2546 = vmatpush1.xpose.msra.mxu0 %v2513
      %2547 = vmatprep.subr.mxu0 0.0
      %2548 = vmatpush1.xpose.msra.mxu0 %v2511
      %2549 = vmatprep.subr.mxu0 0.0
      %2550 = vmatpush2.xpose.msra.mxu0 0.0
      %2551 = vmatprep.subr.mxu0 0.0
      %2552 = vmatpush2.xpose.msra.mxu0 0.0
      %2553 = vmatprep.subr.mxu0 0.0
      %2554 = vmatpush2.xpose.msra.mxu0 0.0
      %2555 = vmatprep.subr.mxu0 0.0
      %2556 = vmatpush2.xpose.msra.mxu0 0.0
      %2557 = vmatprep.subr.mxu0 0.0
      %2558 = vmatpush2.xpose.msra.mxu0 0.0
      %2559 = vmatprep.subr.mxu0 0.0
      %2560 = vmatpush2.xpose.msra.mxu0 0.0
      %2561 = vmatprep.subr.mxu0 0.0
      %2562 = vmatpush2.xpose.msra.mxu0 0.0
      %2563 = vmatprep.subr.mxu0 0.0
      %2564 = vmatpush2.xpose.msra.mxu0 0.0
      %2565 = vmatprep.subr.mxu0 0.0
      %2566 = vmatpush2.xpose.msra.mxu0 0.0
      %2567 = vmatprep.subr.mxu0 0.0
      %2568 = vmatpush2.xpose.msra.mxu0 0.0
      %2569 = vmatprep.subr.mxu0 0.0
      %2570 = vmatpush2.xpose.msra.mxu0 0.0
      %2571 = vmatprep.subr.mxu0 0.0
      %2572 = vmatpush2.xpose.msra.mxu0 0.0
      %2573 = vmatprep.subr.mxu0 0.0
      %2574 = vmatpush2.xpose.msra.mxu0 0.0
      %2575 = vmatprep.subr.mxu0 0.0
      %2576 = vmatpush2.xpose.msra.mxu0 0.0
      %2577 = vmatprep.subr.mxu0 0.0
      %2578 = vmatpush2.xpose.msra.mxu0 0.0
      %2579 = vmatprep.subr.mxu0 0.0
      %2580 = vmatpush2.xpose.msra.mxu0 0.0
      %2581 = vmatprep.mubr.f32.mxu0 0.0
      %2582 = vmatmul.mubr.f32.gmra.mxu0 %v2505
      %v2583 = vpop.f32.mrf.mxu0
      %v2584 = vadd.f32 0.0, %v2583
      %v2585 = vpop.f32.mrf.mxu0
      %2586 = vmatprep.mubr.f32.mxu0 0.0
      %2587 = vmatmul.mubr.f32.gmra.mxu0 %v2507
      %v2588 = vpop.f32.mrf.mxu0
      %v2589 = vadd.f32 0.0, %v2588
      %v2590 = vpop.f32.mrf.mxu0
      %2591 = vmatprep.mubr.f32.mxu0 0.0
      %2592 = vmatmul.mubr.f32.gmra.mxu0 %v2509
      %v2593 = vpop.f32.mrf.mxu0
      %v2594 = vadd.f32 0.0, %v2593
      %v2595 = vpop.f32.mrf.mxu0
      %2596 = vdwg.mxu0
      %v2597 = vmul.f32 %v2584, 0.35355338
      %v2598 = vmul.f32 %v2589, 0.35355338
      %v2599 = vmul.f32 %v2594, 0.35355338
      %v2600 = vsel %vm980, %v2597, -inf
      %2601 = vmax.xlane.f32.xlu0 %v2600
      %v2602 = vpop.xlane.xlu0 %2601
      %v2603 = vsel %vm980, %v2598, -inf
      %2604 = vmax.xlane.f32.xlu0 %v2603
      %v2605 = vpop.xlane.xlu0 %2604
      %v2606 = vsel %vm987, %v2599, -inf
      %2607 = vmax.xlane.f32.xlu0 %v2606
      %v2608 = vpop.xlane.xlu0 %2607
      %v2609 = vsub.f32 %v2597, %v2602
      %v2610 = vsub.f32 %v2598, %v2605
      %v2611 = vsub.f32 %v2599, %v2608
      %v2612 = vmul.f32 %v2609, 1.442695
      %v2613 = vpow.pop %v2612
      %v2614 = vmul.f32 %v2610, 1.442695
      %v2615 = vpow.pop %v2614
      %v2616 = vmul.f32 %v2611, 1.442695
      %v2617 = vpow.pop %v2616
      %v2618 = vsel %vm980, %v2613, 0.0
      %2619 = vadd.xlane.f32.xlu0 %v2618
      %v2620 = vpop.xlane.xlu0 %2619
      %v2621 = vsel %vm980, %v2615, 0.0
      %2622 = vadd.xlane.f32.xlu0 %v2621
      %v2623 = vpop.xlane.xlu0 %2622
      %v2624 = vsel %vm987, %v2617, 0.0
      %2625 = vadd.xlane.f32.xlu0 %v2624
      %v2626 = vpop.xlane.xlu0 %2625
      %v2627 = vrcp.pop %v2620
      %v2628 = vrcp.pop %v2623
      %v2629 = vrcp.pop %v2626
      %v2630 = vmul.f32 %v2613, %v2627
      %v2631 = vmul.f32 %v2615, %v2628
      %v2632 = vmul.f32 %v2617, %v2629
      %2633 = vrot.lane.b32.xlu0 %v2483, 64
      %v2634 = vpop.permute.xlu0 %2633
      %2635 = vrot.lane.b32.xlu0 %v2488, 64
      %v2636 = vpop.permute.xlu0 %2635
      %2637 = vrot.lane.b32.xlu0 %v2493, 64
      %v2638 = vpop.permute.xlu0 %2637
      %v2642 = vsel %vm980, %v2630, 0
      %v2645 = vsel %vm980, %v2631, 0
      %v2648 = vsel %vm980, %v2632, 0
      %v2650 = vsel %vm1032, %v2638, 0
      %2652 = vmatprep.subr.mxu0 0.0
      %2653 = vmatpush1.msra.mxu0 0.0
      %2654 = vmatprep.subr.mxu0 0.0
      %2655 = vmatpush1.msra.mxu0 0.0
      %2656 = vmatprep.subr.mxu0 0.0
      %2657 = vmatpush1.msra.mxu0 0.0
      %2658 = vmatprep.subr.mxu0 0.0
      %2659 = vmatpush1.msra.mxu0 0.0
      %2660 = vmatprep.subr.mxu0 0.0
      %2661 = vmatpush1.msra.mxu0 0.0
      %2662 = vmatprep.subr.mxu0 0.0
      %2663 = vmatpush1.msra.mxu0 0.0
      %2664 = vmatprep.subr.mxu0 0.0
      %2665 = vmatpush1.msra.mxu0 0.0
      %2666 = vmatprep.subr.mxu0 0.0
      %2667 = vmatpush1.msra.mxu0 0.0
      %2668 = vmatprep.subr.mxu0 0.0
      %2669 = vmatpush1.msra.mxu0 0.0
      %2670 = vmatprep.subr.mxu0 0.0
      %2671 = vmatpush1.msra.mxu0 0.0
      %2672 = vmatprep.subr.mxu0 0.0
      %2673 = vmatpush1.msra.mxu0 0.0
      %2674 = vmatprep.subr.mxu0 0.0
      %2675 = vmatpush1.msra.mxu0 0.0
      %2676 = vmatprep.subr.mxu0 0.0
      %2677 = vmatpush1.msra.mxu0 0.0
      %2678 = vmatprep.subr.mxu0 0.0
      %2679 = vmatpush1.msra.mxu0 %v2650
      %2680 = vmatprep.subr.mxu0 0.0
      %2681 = vmatpush1.msra.mxu0 %v2636
      %2682 = vmatprep.subr.mxu0 0.0
      %2683 = vmatpush1.msra.mxu0 %v2634
      %2684 = vmatprep.subr.mxu0 0.0
      %2685 = vmatpush2.msra.mxu0 0.0
      %2686 = vmatprep.subr.mxu0 0.0
      %2687 = vmatpush2.msra.mxu0 0.0
      %2688 = vmatprep.subr.mxu0 0.0
      %2689 = vmatpush2.msra.mxu0 0.0
      %2690 = vmatprep.subr.mxu0 0.0
      %2691 = vmatpush2.msra.mxu0 0.0
      %2692 = vmatprep.subr.mxu0 0.0
      %2693 = vmatpush2.msra.mxu0 0.0
      %2694 = vmatprep.subr.mxu0 0.0
      %2695 = vmatpush2.msra.mxu0 0.0
      %2696 = vmatprep.subr.mxu0 0.0
      %2697 = vmatpush2.msra.mxu0 0.0
      %2698 = vmatprep.subr.mxu0 0.0
      %2699 = vmatpush2.msra.mxu0 0.0
      %2700 = vmatprep.subr.mxu0 0.0
      %2701 = vmatpush2.msra.mxu0 0.0
      %2702 = vmatprep.subr.mxu0 0.0
      %2703 = vmatpush2.msra.mxu0 0.0
      %2704 = vmatprep.subr.mxu0 0.0
      %2705 = vmatpush2.msra.mxu0 0.0
      %2706 = vmatprep.subr.mxu0 0.0
      %2707 = vmatpush2.msra.mxu0 0.0
      %2708 = vmatprep.subr.mxu0 0.0
      %2709 = vmatpush2.msra.mxu0 0.0
      %2710 = vmatprep.subr.mxu0 0.0
      %2711 = vmatpush2.msra.mxu0 0.0
      %2712 = vmatprep.subr.mxu0 0.0
      %2713 = vmatpush2.msra.mxu0 0.0
      %2714 = vmatprep.subr.mxu0 0.0
      %2715 = vmatpush2.msra.mxu0 0.0
      %2716 = vmatprep.mubr.f32.mxu0 0.0
      %2717 = vmatmul.mubr.f32.gmra.mxu0 %v2642
      %v2718 = vpop.f32.mrf.mxu0
      %v2719 = vadd.f32 0.0, %v2718
      %v2720 = vpop.f32.mrf.mxu0
      %2721 = vmatprep.mubr.f32.mxu0 0.0
      %2722 = vmatmul.mubr.f32.gmra.mxu0 %v2645
      %v2723 = vpop.f32.mrf.mxu0
      %v2724 = vadd.f32 0.0, %v2723
      %v2725 = vpop.f32.mrf.mxu0
      %2726 = vmatprep.mubr.f32.mxu0 0.0
      %2727 = vmatmul.mubr.f32.gmra.mxu0 %v2648
      %v2728 = vpop.f32.mrf.mxu0
      %v2729 = vadd.f32 0.0, %v2728
      %v2730 = vpop.f32.mrf.mxu0
      %2731 = vdwg.mxu0
      %2732 = vrot.lane.b32.xlu0 %v2483, 120
      %v2733 = vpop.permute.xlu0 %2732
      %2734 = vrot.lane.b32.xlu0 %v2488, 120
      %v2735 = vpop.permute.xlu0 %2734
      %2736 = vrot.lane.b32.xlu0 %v2493, 120
      %v2737 = vpop.permute.xlu0 %2736
      %2738 = vrot.lane.b32.xlu0 %v2483, 88
      %v2739 = vpop.permute.xlu0 %2738
      %2740 = vrot.lane.b32.xlu0 %v2488, 88
      %v2741 = vpop.permute.xlu0 %2740
      %2742 = vrot.lane.b32.xlu0 %v2493, 88
      %v2743 = vpop.permute.xlu0 %2742
      %v2744 = vsel %vm884, %v2733, 0
      %v2746 = vsel %vm884, %v2735, 0
      %v2748 = vsel %vm884, %v2737, 0
      %v2750 = vsel %vm884, %v2739, 0
      %v2752 = vsel %vm884, %v2741, 0
      %v2754 = vsel %vm884, %v2743, 0
      %2756 = vmatprep.subr.mxu0 0.0
      %2757 = vmatpush1.xpose.msra.mxu0 0.0
      %2758 = vmatprep.subr.mxu0 0.0
      %2759 = vmatpush1.xpose.msra.mxu0 0.0
      %2760 = vmatprep.subr.mxu0 0.0
      %2761 = vmatpush1.xpose.msra.mxu0 0.0
      %2762 = vmatprep.subr.mxu0 0.0
      %2763 = vmatpush1.xpose.msra.mxu0 0.0
      %2764 = vmatprep.subr.mxu0 0.0
      %2765 = vmatpush1.xpose.msra.mxu0 0.0
      %2766 = vmatprep.subr.mxu0 0.0
      %2767 = vmatpush1.xpose.msra.mxu0 0.0
      %2768 = vmatprep.subr.mxu0 0.0
      %2769 = vmatpush1.xpose.msra.mxu0 0.0
      %2770 = vmatprep.subr.mxu0 0.0
      %2771 = vmatpush1.xpose.msra.mxu0 0.0
      %2772 = vmatprep.subr.mxu0 0.0
      %2773 = vmatpush1.xpose.msra.mxu0 0.0
      %2774 = vmatprep.subr.mxu0 0.0
      %2775 = vmatpush1.xpose.msra.mxu0 0.0
      %2776 = vmatprep.subr.mxu0 0.0
      %2777 = vmatpush1.xpose.msra.mxu0 0.0
      %2778 = vmatprep.subr.mxu0 0.0
      %2779 = vmatpush1.xpose.msra.mxu0 0.0
      %2780 = vmatprep.subr.mxu0 0.0
      %2781 = vmatpush1.xpose.msra.mxu0 0.0
      %2782 = vmatprep.subr.mxu0 0.0
      %2783 = vmatpush1.xpose.msra.mxu0 %v2754
      %2784 = vmatprep.subr.mxu0 0.0
      %2785 = vmatpush1.xpose.msra.mxu0 %v2752
      %2786 = vmatprep.subr.mxu0 0.0
      %2787 = vmatpush1.xpose.msra.mxu0 %v2750
      %2788 = vmatprep.subr.mxu0 0.0
      %2789 = vmatpush2.xpose.msra.mxu0 0.0
      %2790 = vmatprep.subr.mxu0 0.0
      %2791 = vmatpush2.xpose.msra.mxu0 0.0
      %2792 = vmatprep.subr.mxu0 0.0
      %2793 = vmatpush2.xpose.msra.mxu0 0.0
      %2794 = vmatprep.subr.mxu0 0.0
      %2795 = vmatpush2.xpose.msra.mxu0 0.0
      %2796 = vmatprep.subr.mxu0 0.0
      %2797 = vmatpush2.xpose.msra.mxu0 0.0
      %2798 = vmatprep.subr.mxu0 0.0
      %2799 = vmatpush2.xpose.msra.mxu0 0.0
      %2800 = vmatprep.subr.mxu0 0.0
      %2801 = vmatpush2.xpose.msra.mxu0 0.0
      %2802 = vmatprep.subr.mxu0 0.0
      %2803 = vmatpush2.xpose.msra.mxu0 0.0
      %2804 = vmatprep.subr.mxu0 0.0
      %2805 = vmatpush2.xpose.msra.mxu0 0.0
      %2806 = vmatprep.subr.mxu0 0.0
      %2807 = vmatpush2.xpose.msra.mxu0 0.0
      %2808 = vmatprep.subr.mxu0 0.0
      %2809 = vmatpush2.xpose.msra.mxu0 0.0
      %2810 = vmatprep.subr.mxu0 0.0
      %2811 = vmatpush2.xpose.msra.mxu0 0.0
      %2812 = vmatprep.subr.mxu0 0.0
      %2813 = vmatpush2.xpose.msra.mxu0 0.0
      %2814 = vmatprep.subr.mxu0 0.0
      %2815 = vmatpush2.xpose.msra.mxu0 0.0
      %2816 = vmatprep.subr.mxu0 0.0
      %2817 = vmatpush2.xpose.msra.mxu0 0.0
      %2818 = vmatprep.subr.mxu0 0.0
      %2819 = vmatpush2.xpose.msra.mxu0 0.0
      %2820 = vmatprep.mubr.f32.mxu0 0.0
      %2821 = vmatmul.mubr.f32.gmra.mxu0 %v2744
      %v2822 = vpop.f32.mrf.mxu0
      %v2823 = vadd.f32 0.0, %v2822
      %v2824 = vpop.f32.mrf.mxu0
      %2825 = vmatprep.mubr.f32.mxu0 0.0
      %2826 = vmatmul.mubr.f32.gmra.mxu0 %v2746
      %v2827 = vpop.f32.mrf.mxu0
      %v2828 = vadd.f32 0.0, %v2827
      %v2829 = vpop.f32.mrf.mxu0
      %2830 = vmatprep.mubr.f32.mxu0 0.0
      %2831 = vmatmul.mubr.f32.gmra.mxu0 %v2748
      %v2832 = vpop.f32.mrf.mxu0
      %v2833 = vadd.f32 0.0, %v2832
      %v2834 = vpop.f32.mrf.mxu0
      %2835 = vdwg.mxu0
      %v2836 = vmul.f32 %v2823, 0.35355338
      %v2837 = vmul.f32 %v2828, 0.35355338
      %v2838 = vmul.f32 %v2833, 0.35355338
      %v2839 = vsel %vm980, %v2836, -inf
      %2840 = vmax.xlane.f32.xlu0 %v2839
      %v2841 = vpop.xlane.xlu0 %2840
      %v2842 = vsel %vm980, %v2837, -inf
      %2843 = vmax.xlane.f32.xlu0 %v2842
      %v2844 = vpop.xlane.xlu0 %2843
      %v2845 = vsel %vm987, %v2838, -inf
      %2846 = vmax.xlane.f32.xlu0 %v2845
      %v2847 = vpop.xlane.xlu0 %2846
      %v2848 = vsub.f32 %v2836, %v2841
      %v2849 = vsub.f32 %v2837, %v2844
      %v2850 = vsub.f32 %v2838, %v2847
      %v2851 = vmul.f32 %v2848, 1.442695
      %v2852 = vpow.pop %v2851
      %v2853 = vmul.f32 %v2849, 1.442695
      %v2854 = vpow.pop %v2853
      %v2855 = vmul.f32 %v2850, 1.442695
      %v2856 = vpow.pop %v2855
      %v2857 = vsel %vm980, %v2852, 0.0
      %2858 = vadd.xlane.f32.xlu0 %v2857
      %v2859 = vpop.xlane.xlu0 %2858
      %v2860 = vsel %vm980, %v2854, 0.0
      %2861 = vadd.xlane.f32.xlu0 %v2860
      %v2862 = vpop.xlane.xlu0 %2861
      %v2863 = vsel %vm987, %v2856, 0.0
      %2864 = vadd.xlane.f32.xlu0 %v2863
      %v2865 = vpop.xlane.xlu0 %2864
      %v2866 = vrcp.pop %v2859
      %v2867 = vrcp.pop %v2862
      %v2868 = vrcp.pop %v2865
      %v2869 = vmul.f32 %v2852, %v2866
      %v2870 = vmul.f32 %v2854, %v2867
      %v2871 = vmul.f32 %v2856, %v2868
      %2872 = vrot.lane.b32.xlu0 %v2483, 56
      %v2873 = vpop.permute.xlu0 %2872
      %2874 = vrot.lane.b32.xlu0 %v2488, 56
      %v2875 = vpop.permute.xlu0 %2874
      %2876 = vrot.lane.b32.xlu0 %v2493, 56
      %v2877 = vpop.permute.xlu0 %2876
      %v2881 = vsel %vm980, %v2869, 0
      %v2884 = vsel %vm980, %v2870, 0
      %v2887 = vsel %vm980, %v2871, 0
      %v2889 = vsel %vm1032, %v2877, 0
      %2891 = vmatprep.subr.mxu0 0.0
      %2892 = vmatpush1.msra.mxu0 0.0
      %2893 = vmatprep.subr.mxu0 0.0
      %2894 = vmatpush1.msra.mxu0 0.0
      %2895 = vmatprep.subr.mxu0 0.0
      %2896 = vmatpush1.msra.mxu0 0.0
      %2897 = vmatprep.subr.mxu0 0.0
      %2898 = vmatpush1.msra.mxu0 0.0
      %2899 = vmatprep.subr.mxu0 0.0
      %2900 = vmatpush1.msra.mxu0 0.0
      %2901 = vmatprep.subr.mxu0 0.0
      %2902 = vmatpush1.msra.mxu0 0.0
      %2903 = vmatprep.subr.mxu0 0.0
      %2904 = vmatpush1.msra.mxu0 0.0
      %2905 = vmatprep.subr.mxu0 0.0
      %2906 = vmatpush1.msra.mxu0 0.0
      %2907 = vmatprep.subr.mxu0 0.0
      %2908 = vmatpush1.msra.mxu0 0.0
      %2909 = vmatprep.subr.mxu0 0.0
      %2910 = vmatpush1.msra.mxu0 0.0
      %2911 = vmatprep.subr.mxu0 0.0
      %2912 = vmatpush1.msra.mxu0 0.0
      %2913 = vmatprep.subr.mxu0 0.0
      %2914 = vmatpush1.msra.mxu0 0.0
      %2915 = vmatprep.subr.mxu0 0.0
      %2916 = vmatpush1.msra.mxu0 0.0
      %2917 = vmatprep.subr.mxu0 0.0
      %2918 = vmatpush1.msra.mxu0 %v2889
      %2919 = vmatprep.subr.mxu0 0.0
      %2920 = vmatpush1.msra.mxu0 %v2875
      %2921 = vmatprep.subr.mxu0 0.0
      %2922 = vmatpush1.msra.mxu0 %v2873
      %2923 = vmatprep.subr.mxu0 0.0
      %2924 = vmatpush2.msra.mxu0 0.0
      %2925 = vmatprep.subr.mxu0 0.0
      %2926 = vmatpush2.msra.mxu0 0.0
      %2927 = vmatprep.subr.mxu0 0.0
      %2928 = vmatpush2.msra.mxu0 0.0
      %2929 = vmatprep.subr.mxu0 0.0
      %2930 = vmatpush2.msra.mxu0 0.0
      %2931 = vmatprep.subr.mxu0 0.0
      %2932 = vmatpush2.msra.mxu0 0.0
      %2933 = vmatprep.subr.mxu0 0.0
      %2934 = vmatpush2.msra.mxu0 0.0
      %2935 = vmatprep.subr.mxu0 0.0
      %2936 = vmatpush2.msra.mxu0 0.0
      %2937 = vmatprep.subr.mxu0 0.0
      %2938 = vmatpush2.msra.mxu0 0.0
      %2939 = vmatprep.subr.mxu0 0.0
      %2940 = vmatpush2.msra.mxu0 0.0
      %2941 = vmatprep.subr.mxu0 0.0
      %2942 = vmatpush2.msra.mxu0 0.0
      %2943 = vmatprep.subr.mxu0 0.0
      %2944 = vmatpush2.msra.mxu0 0.0
      %2945 = vmatprep.subr.mxu0 0.0
      %2946 = vmatpush2.msra.mxu0 0.0
      %2947 = vmatprep.subr.mxu0 0.0
      %2948 = vmatpush2.msra.mxu0 0.0
      %2949 = vmatprep.subr.mxu0 0.0
      %2950 = vmatpush2.msra.mxu0 0.0
      %2951 = vmatprep.subr.mxu0 0.0
      %2952 = vmatpush2.msra.mxu0 0.0
      %2953 = vmatprep.subr.mxu0 0.0
      %2954 = vmatpush2.msra.mxu0 0.0
      %2955 = vmatprep.mubr.f32.mxu0 0.0
      %2956 = vmatmul.mubr.f32.gmra.mxu0 %v2881
      %v2957 = vpop.f32.mrf.mxu0
      %v2958 = vadd.f32 0.0, %v2957
      %v2959 = vpop.f32.mrf.mxu0
      %2960 = vmatprep.mubr.f32.mxu0 0.0
      %2961 = vmatmul.mubr.f32.gmra.mxu0 %v2884
      %v2962 = vpop.f32.mrf.mxu0
      %v2963 = vadd.f32 0.0, %v2962
      %v2964 = vpop.f32.mrf.mxu0
      %2965 = vmatprep.mubr.f32.mxu0 0.0
      %2966 = vmatmul.mubr.f32.gmra.mxu0 %v2887
      %v2967 = vpop.f32.mrf.mxu0
      %v2968 = vadd.f32 0.0, %v2967
      %v2969 = vpop.f32.mrf.mxu0
      %2970 = vdwg.mxu0
      %2971 = vrot.lane.b32.xlu0 %v2483, 112
      %v2972 = vpop.permute.xlu0 %2971
      %2973 = vrot.lane.b32.xlu0 %v2488, 112
      %v2974 = vpop.permute.xlu0 %2973
      %2975 = vrot.lane.b32.xlu0 %v2493, 112
      %v2976 = vpop.permute.xlu0 %2975
      %2977 = vrot.lane.b32.xlu0 %v2483, 80
      %v2978 = vpop.permute.xlu0 %2977
      %2979 = vrot.lane.b32.xlu0 %v2488, 80
      %v2980 = vpop.permute.xlu0 %2979
      %2981 = vrot.lane.b32.xlu0 %v2493, 80
      %v2982 = vpop.permute.xlu0 %2981
      %v2983 = vsel %vm884, %v2972, 0
      %v2985 = vsel %vm884, %v2974, 0
      %v2987 = vsel %vm884, %v2976, 0
      %v2989 = vsel %vm884, %v2978, 0
      %v2991 = vsel %vm884, %v2980, 0
      %v2993 = vsel %vm884, %v2982, 0
      %2995 = vmatprep.subr.mxu0 0.0
      %2996 = vmatpush1.xpose.msra.mxu0 0.0
      %2997 = vmatprep.subr.mxu0 0.0
      %2998 = vmatpush1.xpose.msra.mxu0 0.0
      %2999 = vmatprep.subr.mxu0 0.0
      %3000 = vmatpush1.xpose.msra.mxu0 0.0
      %3001 = vmatprep.subr.mxu0 0.0
      %3002 = vmatpush1.xpose.msra.mxu0 0.0
      %3003 = vmatprep.subr.mxu0 0.0
      %3004 = vmatpush1.xpose.msra.mxu0 0.0
      %3005 = vmatprep.subr.mxu0 0.0
      %3006 = vmatpush1.xpose.msra.mxu0 0.0
      %3007 = vmatprep.subr.mxu0 0.0
      %3008 = vmatpush1.xpose.msra.mxu0 0.0
      %3009 = vmatprep.subr.mxu0 0.0
      %3010 = vmatpush1.xpose.msra.mxu0 0.0
      %3011 = vmatprep.subr.mxu0 0.0
      %3012 = vmatpush1.xpose.msra.mxu0 0.0
      %3013 = vmatprep.subr.mxu0 0.0
      %3014 = vmatpush1.xpose.msra.mxu0 0.0
      %3015 = vmatprep.subr.mxu0 0.0
      %3016 = vmatpush1.xpose.msra.mxu0 0.0
      %3017 = vmatprep.subr.mxu0 0.0
      %3018 = vmatpush1.xpose.msra.mxu0 0.0
      %3019 = vmatprep.subr.mxu0 0.0
      %3020 = vmatpush1.xpose.msra.mxu0 0.0
      %3021 = vmatprep.subr.mxu0 0.0
      %3022 = vmatpush1.xpose.msra.mxu0 %v2993
      %3023 = vmatprep.subr.mxu0 0.0
      %3024 = vmatpush1.xpose.msra.mxu0 %v2991
      %3025 = vmatprep.subr.mxu0 0.0
      %3026 = vmatpush1.xpose.msra.mxu0 %v2989
      %3027 = vmatprep.subr.mxu0 0.0
      %3028 = vmatpush2.xpose.msra.mxu0 0.0
      %3029 = vmatprep.subr.mxu0 0.0
      %3030 = vmatpush2.xpose.msra.mxu0 0.0
      %3031 = vmatprep.subr.mxu0 0.0
      %3032 = vmatpush2.xpose.msra.mxu0 0.0
      %3033 = vmatprep.subr.mxu0 0.0
      %3034 = vmatpush2.xpose.msra.mxu0 0.0
      %3035 = vmatprep.subr.mxu0 0.0
      %3036 = vmatpush2.xpose.msra.mxu0 0.0
      %3037 = vmatprep.subr.mxu0 0.0
      %3038 = vmatpush2.xpose.msra.mxu0 0.0
      %3039 = vmatprep.subr.mxu0 0.0
      %3040 = vmatpush2.xpose.msra.mxu0 0.0
      %3041 = vmatprep.subr.mxu0 0.0
      %3042 = vmatpush2.xpose.msra.mxu0 0.0
      %3043 = vmatprep.subr.mxu0 0.0
      %3044 = vmatpush2.xpose.msra.mxu0 0.0
      %3045 = vmatprep.subr.mxu0 0.0
      %3046 = vmatpush2.xpose.msra.mxu0 0.0
      %3047 = vmatprep.subr.mxu0 0.0
      %3048 = vmatpush2.xpose.msra.mxu0 0.0
      %3049 = vmatprep.subr.mxu0 0.0
      %3050 = vmatpush2.xpose.msra.mxu0 0.0
      %3051 = vmatprep.subr.mxu0 0.0
      %3052 = vmatpush2.xpose.msra.mxu0 0.0
      %3053 = vmatprep.subr.mxu0 0.0
      %3054 = vmatpush2.xpose.msra.mxu0 0.0
      %3055 = vmatprep.subr.mxu0 0.0
      %3056 = vmatpush2.xpose.msra.mxu0 0.0
      %3057 = vmatprep.subr.mxu0 0.0
      %3058 = vmatpush2.xpose.msra.mxu0 0.0
      %3059 = vmatprep.mubr.f32.mxu0 0.0
      %3060 = vmatmul.mubr.f32.gmra.mxu0 %v2983
      %v3061 = vpop.f32.mrf.mxu0
      %v3062 = vadd.f32 0.0, %v3061
      %v3063 = vpop.f32.mrf.mxu0
      %3064 = vmatprep.mubr.f32.mxu0 0.0
      %3065 = vmatmul.mubr.f32.gmra.mxu0 %v2985
      %v3066 = vpop.f32.mrf.mxu0
      %v3067 = vadd.f32 0.0, %v3066
      %v3068 = vpop.f32.mrf.mxu0
      %3069 = vmatprep.mubr.f32.mxu0 0.0
      %3070 = vmatmul.mubr.f32.gmra.mxu0 %v2987
      %v3071 = vpop.f32.mrf.mxu0
      %v3072 = vadd.f32 0.0, %v3071
      %v3073 = vpop.f32.mrf.mxu0
      %3074 = vdwg.mxu0
      %v3075 = vmul.f32 %v3062, 0.35355338
      %v3076 = vmul.f32 %v3067, 0.35355338
      %v3077 = vmul.f32 %v3072, 0.35355338
      %v3078 = vsel %vm980, %v3075, -inf
      %3079 = vmax.xlane.f32.xlu0 %v3078
      %v3080 = vpop.xlane.xlu0 %3079
      %v3081 = vsel %vm980, %v3076, -inf
      %3082 = vmax.xlane.f32.xlu0 %v3081
      %v3083 = vpop.xlane.xlu0 %3082
      %v3084 = vsel %vm987, %v3077, -inf
      %3085 = vmax.xlane.f32.xlu0 %v3084
      %v3086 = vpop.xlane.xlu0 %3085
      %v3087 = vsub.f32 %v3075, %v3080
      %v3088 = vsub.f32 %v3076, %v3083
      %v3089 = vsub.f32 %v3077, %v3086
      %v3090 = vmul.f32 %v3087, 1.442695
      %v3091 = vpow.pop %v3090
      %v3092 = vmul.f32 %v3088, 1.442695
      %v3093 = vpow.pop %v3092
      %v3094 = vmul.f32 %v3089, 1.442695
      %v3095 = vpow.pop %v3094
      %v3096 = vsel %vm980, %v3091, 0.0
      %3097 = vadd.xlane.f32.xlu0 %v3096
      %v3098 = vpop.xlane.xlu0 %3097
      %v3099 = vsel %vm980, %v3093, 0.0
      %3100 = vadd.xlane.f32.xlu0 %v3099
      %v3101 = vpop.xlane.xlu0 %3100
      %v3102 = vsel %vm987, %v3095, 0.0
      %3103 = vadd.xlane.f32.xlu0 %v3102
      %v3104 = vpop.xlane.xlu0 %3103
      %v3105 = vrcp.pop %v3098
      %v3106 = vrcp.pop %v3101
      %v3107 = vrcp.pop %v3104
      %v3108 = vmul.f32 %v3091, %v3105
      %v3109 = vmul.f32 %v3093, %v3106
      %v3110 = vmul.f32 %v3095, %v3107
      %3111 = vrot.lane.b32.xlu0 %v2483, 48
      %v3112 = vpop.permute.xlu0 %3111
      %3113 = vrot.lane.b32.xlu0 %v2488, 48
      %v3114 = vpop.permute.xlu0 %3113
      %3115 = vrot.lane.b32.xlu0 %v2493, 48
      %v3116 = vpop.permute.xlu0 %3115
      %v3120 = vsel %vm980, %v3108, 0
      %v3123 = vsel %vm980, %v3109, 0
      %v3126 = vsel %vm980, %v3110, 0
      %v3128 = vsel %vm1032, %v3116, 0
      %3130 = vmatprep.subr.mxu0 0.0
      %3131 = vmatpush1.msra.mxu0 0.0
      %3132 = vmatprep.subr.mxu0 0.0
      %3133 = vmatpush1.msra.mxu0 0.0
      %3134 = vmatprep.subr.mxu0 0.0
      %3135 = vmatpush1.msra.mxu0 0.0
      %3136 = vmatprep.subr.mxu0 0.0
      %3137 = vmatpush1.msra.mxu0 0.0
      %3138 = vmatprep.subr.mxu0 0.0
      %3139 = vmatpush1.msra.mxu0 0.0
      %3140 = vmatprep.subr.mxu0 0.0
      %3141 = vmatpush1.msra.mxu0 0.0
      %3142 = vmatprep.subr.mxu0 0.0
      %3143 = vmatpush1.msra.mxu0 0.0
      %3144 = vmatprep.subr.mxu0 0.0
      %3145 = vmatpush1.msra.mxu0 0.0
      %3146 = vmatprep.subr.mxu0 0.0
      %3147 = vmatpush1.msra.mxu0 0.0
      %3148 = vmatprep.subr.mxu0 0.0
      %3149 = vmatpush1.msra.mxu0 0.0
      %3150 = vmatprep.subr.mxu0 0.0
      %3151 = vmatpush1.msra.mxu0 0.0
      %3152 = vmatprep.subr.mxu0 0.0
      %3153 = vmatpush1.msra.mxu0 0.0
      %3154 = vmatprep.subr.mxu0 0.0
      %3155 = vmatpush1.msra.mxu0 0.0
      %3156 = vmatprep.subr.mxu0 0.0
      %3157 = vmatpush1.msra.mxu0 %v3128
      %3158 = vmatprep.subr.mxu0 0.0
      %3159 = vmatpush1.msra.mxu0 %v3114
      %3160 = vmatprep.subr.mxu0 0.0
      %3161 = vmatpush1.msra.mxu0 %v3112
      %3162 = vmatprep.subr.mxu0 0.0
      %3163 = vmatpush2.msra.mxu0 0.0
      %3164 = vmatprep.subr.mxu0 0.0
      %3165 = vmatpush2.msra.mxu0 0.0
      %3166 = vmatprep.subr.mxu0 0.0
      %3167 = vmatpush2.msra.mxu0 0.0
      %3168 = vmatprep.subr.mxu0 0.0
      %3169 = vmatpush2.msra.mxu0 0.0
      %3170 = vmatprep.subr.mxu0 0.0
      %3171 = vmatpush2.msra.mxu0 0.0
      %3172 = vmatprep.subr.mxu0 0.0
      %3173 = vmatpush2.msra.mxu0 0.0
      %3174 = vmatprep.subr.mxu0 0.0
      %3175 = vmatpush2.msra.mxu0 0.0
      %3176 = vmatprep.subr.mxu0 0.0
      %3177 = vmatpush2.msra.mxu0 0.0
      %3178 = vmatprep.subr.mxu0 0.0
      %3179 = vmatpush2.msra.mxu0 0.0
      %3180 = vmatprep.subr.mxu0 0.0
      %3181 = vmatpush2.msra.mxu0 0.0
      %3182 = vmatprep.subr.mxu0 0.0
      %3183 = vmatpush2.msra.mxu0 0.0
      %3184 = vmatprep.subr.mxu0 0.0
      %3185 = vmatpush2.msra.mxu0 0.0
      %3186 = vmatprep.subr.mxu0 0.0
      %3187 = vmatpush2.msra.mxu0 0.0
      %3188 = vmatprep.subr.mxu0 0.0
      %3189 = vmatpush2.msra.mxu0 0.0
      %3190 = vmatprep.subr.mxu0 0.0
      %3191 = vmatpush2.msra.mxu0 0.0
      %3192 = vmatprep.subr.mxu0 0.0
      %3193 = vmatpush2.msra.mxu0 0.0
      %3194 = vmatprep.mubr.f32.mxu0 0.0
      %3195 = vmatmul.mubr.f32.gmra.mxu0 %v3120
      %v3196 = vpop.f32.mrf.mxu0
      %v3197 = vadd.f32 0.0, %v3196
      %v3198 = vpop.f32.mrf.mxu0
      %3199 = vmatprep.mubr.f32.mxu0 0.0
      %3200 = vmatmul.mubr.f32.gmra.mxu0 %v3123
      %v3201 = vpop.f32.mrf.mxu0
      %v3202 = vadd.f32 0.0, %v3201
      %v3203 = vpop.f32.mrf.mxu0
      %3204 = vmatprep.mubr.f32.mxu0 0.0
      %3205 = vmatmul.mubr.f32.gmra.mxu0 %v3126
      %v3206 = vpop.f32.mrf.mxu0
      %v3207 = vadd.f32 0.0, %v3206
      %v3208 = vpop.f32.mrf.mxu0
      %3209 = vdwg.mxu0
      %3210 = vrot.lane.b32.xlu0 %v2483, 104
      %v3211 = vpop.permute.xlu0 %3210
      %3212 = vrot.lane.b32.xlu0 %v2488, 104
      %v3213 = vpop.permute.xlu0 %3212
      %3214 = vrot.lane.b32.xlu0 %v2493, 104
      %v3215 = vpop.permute.xlu0 %3214
      %3216 = vrot.lane.b32.xlu0 %v2483, 72
      %v3217 = vpop.permute.xlu0 %3216
      %3218 = vrot.lane.b32.xlu0 %v2488, 72
      %v3219 = vpop.permute.xlu0 %3218
      %3220 = vrot.lane.b32.xlu0 %v2493, 72
      %v3221 = vpop.permute.xlu0 %3220
      %v3222 = vsel %vm884, %v3211, 0
      %v3224 = vsel %vm884, %v3213, 0
      %v3226 = vsel %vm884, %v3215, 0
      %v3228 = vsel %vm884, %v3217, 0
      %v3230 = vsel %vm884, %v3219, 0
      %v3232 = vsel %vm884, %v3221, 0
      %3234 = vmatprep.subr.mxu0 0.0
      %3235 = vmatpush1.xpose.msra.mxu0 0.0
      %3236 = vmatprep.subr.mxu0 0.0
      %3237 = vmatpush1.xpose.msra.mxu0 0.0
      %3238 = vmatprep.subr.mxu0 0.0
      %3239 = vmatpush1.xpose.msra.mxu0 0.0
      %3240 = vmatprep.subr.mxu0 0.0
      %3241 = vmatpush1.xpose.msra.mxu0 0.0
      %3242 = vmatprep.subr.mxu0 0.0
      %3243 = vmatpush1.xpose.msra.mxu0 0.0
      %3244 = vmatprep.subr.mxu0 0.0
      %3245 = vmatpush1.xpose.msra.mxu0 0.0
      %3246 = vmatprep.subr.mxu0 0.0
      %3247 = vmatpush1.xpose.msra.mxu0 0.0
      %3248 = vmatprep.subr.mxu0 0.0
      %3249 = vmatpush1.xpose.msra.mxu0 0.0
      %3250 = vmatprep.subr.mxu0 0.0
      %3251 = vmatpush1.xpose.msra.mxu0 0.0
      %3252 = vmatprep.subr.mxu0 0.0
      %3253 = vmatpush1.xpose.msra.mxu0 0.0
      %3254 = vmatprep.subr.mxu0 0.0
      %3255 = vmatpush1.xpose.msra.mxu0 0.0
      %3256 = vmatprep.subr.mxu0 0.0
      %3257 = vmatpush1.xpose.msra.mxu0 0.0
      %3258 = vmatprep.subr.mxu0 0.0
      %3259 = vmatpush1.xpose.msra.mxu0 0.0
      %3260 = vmatprep.subr.mxu0 0.0
      %3261 = vmatpush1.xpose.msra.mxu0 %v3232
      %3262 = vmatprep.subr.mxu0 0.0
      %3263 = vmatpush1.xpose.msra.mxu0 %v3230
      %3264 = vmatprep.subr.mxu0 0.0
      %3265 = vmatpush1.xpose.msra.mxu0 %v3228
      %3266 = vmatprep.subr.mxu0 0.0
      %3267 = vmatpush2.xpose.msra.mxu0 0.0
      %3268 = vmatprep.subr.mxu0 0.0
      %3269 = vmatpush2.xpose.msra.mxu0 0.0
      %3270 = vmatprep.subr.mxu0 0.0
      %3271 = vmatpush2.xpose.msra.mxu0 0.0
      %3272 = vmatprep.subr.mxu0 0.0
      %3273 = vmatpush2.xpose.msra.mxu0 0.0
      %3274 = vmatprep.subr.mxu0 0.0
      %3275 = vmatpush2.xpose.msra.mxu0 0.0
      %3276 = vmatprep.subr.mxu0 0.0
      %3277 = vmatpush2.xpose.msra.mxu0 0.0
      %3278 = vmatprep.subr.mxu0 0.0
      %3279 = vmatpush2.xpose.msra.mxu0 0.0
      %3280 = vmatprep.subr.mxu0 0.0
      %3281 = vmatpush2.xpose.msra.mxu0 0.0
      %3282 = vmatprep.subr.mxu0 0.0
      %3283 = vmatpush2.xpose.msra.mxu0 0.0
      %3284 = vmatprep.subr.mxu0 0.0
      %3285 = vmatpush2.xpose.msra.mxu0 0.0
      %3286 = vmatprep.subr.mxu0 0.0
      %3287 = vmatpush2.xpose.msra.mxu0 0.0
      %3288 = vmatprep.subr.mxu0 0.0
      %3289 = vmatpush2.xpose.msra.mxu0 0.0
      %3290 = vmatprep.subr.mxu0 0.0
      %3291 = vmatpush2.xpose.msra.mxu0 0.0
      %3292 = vmatprep.subr.mxu0 0.0
      %3293 = vmatpush2.xpose.msra.mxu0 0.0
      %3294 = vmatprep.subr.mxu0 0.0
      %3295 = vmatpush2.xpose.msra.mxu0 0.0
      %3296 = vmatprep.subr.mxu0 0.0
      %3297 = vmatpush2.xpose.msra.mxu0 0.0
      %3298 = vmatprep.mubr.f32.mxu0 0.0
      %3299 = vmatmul.mubr.f32.gmra.mxu0 %v3222
      %v3300 = vpop.f32.mrf.mxu0
      %v3301 = vadd.f32 0.0, %v3300
      %v3302 = vpop.f32.mrf.mxu0
      %3303 = vmatprep.mubr.f32.mxu0 0.0
      %3304 = vmatmul.mubr.f32.gmra.mxu0 %v3224
      %v3305 = vpop.f32.mrf.mxu0
      %v3306 = vadd.f32 0.0, %v3305
      %v3307 = vpop.f32.mrf.mxu0
      %3308 = vmatprep.mubr.f32.mxu0 0.0
      %3309 = vmatmul.mubr.f32.gmra.mxu0 %v3226
      %v3310 = vpop.f32.mrf.mxu0
      %v3311 = vadd.f32 0.0, %v3310
      %v3312 = vpop.f32.mrf.mxu0
      %3313 = vdwg.mxu0
      %v3314 = vmul.f32 %v3301, 0.35355338
      %v3315 = vmul.f32 %v3306, 0.35355338
      %v3316 = vmul.f32 %v3311, 0.35355338
      %v3317 = vsel %vm980, %v3314, -inf
      %3318 = vmax.xlane.f32.xlu0 %v3317
      %v3319 = vpop.xlane.xlu0 %3318
      %v3320 = vsel %vm980, %v3315, -inf
      %3321 = vmax.xlane.f32.xlu0 %v3320
      %v3322 = vpop.xlane.xlu0 %3321
      %v3323 = vsel %vm987, %v3316, -inf
      %3324 = vmax.xlane.f32.xlu0 %v3323
      %v3325 = vpop.xlane.xlu0 %3324
      %v3326 = vsub.f32 %v3314, %v3319
      %v3327 = vsub.f32 %v3315, %v3322
      %v3328 = vsub.f32 %v3316, %v3325
      %v3329 = vmul.f32 %v3326, 1.442695
      %v3330 = vpow.pop %v3329
      %v3331 = vmul.f32 %v3327, 1.442695
      %v3332 = vpow.pop %v3331
      %v3333 = vmul.f32 %v3328, 1.442695
      %v3334 = vpow.pop %v3333
      %v3335 = vsel %vm980, %v3330, 0.0
      %3336 = vadd.xlane.f32.xlu0 %v3335
      %v3337 = vpop.xlane.xlu0 %3336
      %v3338 = vsel %vm980, %v3332, 0.0
      %3339 = vadd.xlane.f32.xlu0 %v3338
      %v3340 = vpop.xlane.xlu0 %3339
      %v3341 = vsel %vm987, %v3334, 0.0
      %3342 = vadd.xlane.f32.xlu0 %v3341
      %v3343 = vpop.xlane.xlu0 %3342
      %v3344 = vrcp.pop %v3337
      %v3345 = vrcp.pop %v3340
      %v3346 = vrcp.pop %v3343
      %v3347 = vmul.f32 %v3330, %v3344
      %v3348 = vmul.f32 %v3332, %v3345
      %v3349 = vmul.f32 %v3334, %v3346
      %3350 = vrot.lane.b32.xlu0 %v2483, 40
      %v3351 = vpop.permute.xlu0 %3350
      %3352 = vrot.lane.b32.xlu0 %v2488, 40
      %v3353 = vpop.permute.xlu0 %3352
      %3354 = vrot.lane.b32.xlu0 %v2493, 40
      %v3355 = vpop.permute.xlu0 %3354
      %v3359 = vsel %vm980, %v3347, 0
      %v3362 = vsel %vm980, %v3348, 0
      %v3365 = vsel %vm980, %v3349, 0
      %v3367 = vsel %vm1032, %v3355, 0
      %3369 = vmatprep.subr.mxu0 0.0
      %3370 = vmatpush1.msra.mxu0 0.0
      %3371 = vmatprep.subr.mxu0 0.0
      %3372 = vmatpush1.msra.mxu0 0.0
      %3373 = vmatprep.subr.mxu0 0.0
      %3374 = vmatpush1.msra.mxu0 0.0
      %3375 = vmatprep.subr.mxu0 0.0
      %3376 = vmatpush1.msra.mxu0 0.0
      %3377 = vmatprep.subr.mxu0 0.0
      %3378 = vmatpush1.msra.mxu0 0.0
      %3379 = vmatprep.subr.mxu0 0.0
      %3380 = vmatpush1.msra.mxu0 0.0
      %3381 = vmatprep.subr.mxu0 0.0
      %3382 = vmatpush1.msra.mxu0 0.0
      %3383 = vmatprep.subr.mxu0 0.0
      %3384 = vmatpush1.msra.mxu0 0.0
      %3385 = vmatprep.subr.mxu0 0.0
      %3386 = vmatpush1.msra.mxu0 0.0
      %3387 = vmatprep.subr.mxu0 0.0
      %3388 = vmatpush1.msra.mxu0 0.0
      %3389 = vmatprep.subr.mxu0 0.0
      %3390 = vmatpush1.msra.mxu0 0.0
      %3391 = vmatprep.subr.mxu0 0.0
      %3392 = vmatpush1.msra.mxu0 0.0
      %3393 = vmatprep.subr.mxu0 0.0
      %3394 = vmatpush1.msra.mxu0 0.0
      %3395 = vmatprep.subr.mxu0 0.0
      %3396 = vmatpush1.msra.mxu0 %v3367
      %3397 = vmatprep.subr.mxu0 0.0
      %3398 = vmatpush1.msra.mxu0 %v3353
      %3399 = vmatprep.subr.mxu0 0.0
      %3400 = vmatpush1.msra.mxu0 %v3351
      %3401 = vmatprep.subr.mxu0 0.0
      %3402 = vmatpush2.msra.mxu0 0.0
      %3403 = vmatprep.subr.mxu0 0.0
      %3404 = vmatpush2.msra.mxu0 0.0
      %3405 = vmatprep.subr.mxu0 0.0
      %3406 = vmatpush2.msra.mxu0 0.0
      %3407 = vmatprep.subr.mxu0 0.0
      %3408 = vmatpush2.msra.mxu0 0.0
      %3409 = vmatprep.subr.mxu0 0.0
      %3410 = vmatpush2.msra.mxu0 0.0
      %3411 = vmatprep.subr.mxu0 0.0
      %3412 = vmatpush2.msra.mxu0 0.0
      %3413 = vmatprep.subr.mxu0 0.0
      %3414 = vmatpush2.msra.mxu0 0.0
      %3415 = vmatprep.subr.mxu0 0.0
      %3416 = vmatpush2.msra.mxu0 0.0
      %3417 = vmatprep.subr.mxu0 0.0
      %3418 = vmatpush2.msra.mxu0 0.0
      %3419 = vmatprep.subr.mxu0 0.0
      %3420 = vmatpush2.msra.mxu0 0.0
      %3421 = vmatprep.subr.mxu0 0.0
      %3422 = vmatpush2.msra.mxu0 0.0
      %3423 = vmatprep.subr.mxu0 0.0
      %3424 = vmatpush2.msra.mxu0 0.0
      %3425 = vmatprep.subr.mxu0 0.0
      %3426 = vmatpush2.msra.mxu0 0.0
      %3427 = vmatprep.subr.mxu0 0.0
      %3428 = vmatpush2.msra.mxu0 0.0
      %3429 = vmatprep.subr.mxu0 0.0
      %3430 = vmatpush2.msra.mxu0 0.0
      %3431 = vmatprep.subr.mxu0 0.0
      %3432 = vmatpush2.msra.mxu0 0.0
      %3433 = vmatprep.mubr.f32.mxu0 0.0
      %3434 = vmatmul.mubr.f32.gmra.mxu0 %v3359
      %v3435 = vpop.f32.mrf.mxu0
      %v3436 = vadd.f32 0.0, %v3435
      %v3437 = vpop.f32.mrf.mxu0
      %3438 = vmatprep.mubr.f32.mxu0 0.0
      %3439 = vmatmul.mubr.f32.gmra.mxu0 %v3362
      %v3440 = vpop.f32.mrf.mxu0
      %v3441 = vadd.f32 0.0, %v3440
      %v3442 = vpop.f32.mrf.mxu0
      %3443 = vmatprep.mubr.f32.mxu0 0.0
      %3444 = vmatmul.mubr.f32.gmra.mxu0 %v3365
      %v3445 = vpop.f32.mrf.mxu0
      %v3446 = vadd.f32 0.0, %v3445
      %v3447 = vpop.f32.mrf.mxu0
      %3448 = vdwg.mxu0
      %3452 = vrot.lane.b32.xlu0 %v2958, 8
      %v3453 = vpop.permute.xlu0 %3452
      %3454 = vrot.lane.b32.xlu0 %v2963, 8
      %v3455 = vpop.permute.xlu0 %3454
      %3456 = vrot.lane.b32.xlu0 %v2968, 8
      %v3457 = vpop.permute.xlu0 %3456
      %3464 = vrot.lane.b32.xlu0 %v3197, 16
      %v3465 = vpop.permute.xlu0 %3464
      %3466 = vrot.lane.b32.xlu0 %v3202, 16
      %v3467 = vpop.permute.xlu0 %3466
      %3468 = vrot.lane.b32.xlu0 %v3207, 16
      %v3469 = vpop.permute.xlu0 %3468
      %3476 = vrot.lane.b32.xlu0 %v3436, 24
      %v3477 = vpop.permute.xlu0 %3476
      %3478 = vrot.lane.b32.xlu0 %v3441, 24
      %v3479 = vpop.permute.xlu0 %3478
      %3480 = vrot.lane.b32.xlu0 %v3446, 24
      %v3481 = vpop.permute.xlu0 %3480
      %v3485 = vsel %vm884, %v2719, %v3453
      %v3486 = vsel %vm884, %v2724, %v3455
      %v3487 = vsel %vm884, %v2729, %v3457
      %v3488 = vsel %vm1871, %v3485, %v3465
      %v3489 = vsel %vm1871, %v3486, %v3467
      %v3490 = vsel %vm1871, %v3487, %v3469
      %v3491 = vsel %vm1875, %v3488, %v3477
      %v3492 = vsel %vm1875, %v3489, %v3479
      %v3493 = vsel %vm1875, %v3490, %v3481
      %s3494 = scalar_lea.vmem %s9, 32
      %v3495 = vld [vmem:[%s3494] sm:$0xff]
      %v3496 = vld [vmem:[%s3494 + $0x8] sm:$0xff]
      %v3497 = vld [vmem:[%s3494 + $0x10] sm:$0xff]
      %v3498 = vld [vmem:[%s3494 + $0x18] sm:$0xff]
      %s3499 = scalar_lea.vmem %s10, 1
      %v3500 = vld [vmem:[%s3499] sm:$0x1]
      %v3502 = vlaneseq
      %v3503 = vshrl.u32 %v3502, 7
      %v3504 = vsub.s32 0, %v3503
      %v3505 = vrot.slane %v3500, %v3504
      %v3508 = vsel %vm709, %v3491, 0
      %v3511 = vsel %vm709, %v3492, 0
      %v3514 = vsel %vm709, %v3493, 0
      %3516 = vmatprep.subr.mxu0 0.0
      %3517 = vmatpush1.msra.mxu0 0.0
      %3518 = vmatprep.subr.mxu0 0.0
      %3519 = vmatpush1.msra.mxu0 0.0
      %3520 = vmatprep.subr.mxu0 0.0
      %3521 = vmatpush1.msra.mxu0 0.0
      %3522 = vmatprep.subr.mxu0 0.0
      %3523 = vmatpush1.msra.mxu0 0.0
      %3524 = vmatprep.subr.mxu0 0.0
      %3525 = vmatpush1.msra.mxu0 0.0
      %3526 = vmatprep.subr.mxu0 0.0
      %3527 = vmatpush1.msra.mxu0 0.0
      %3528 = vmatprep.subr.mxu0 0.0
      %3529 = vmatpush1.msra.mxu0 0.0
      %3530 = vmatprep.subr.mxu0 0.0
      %3531 = vmatpush1.msra.mxu0 0.0
      %3532 = vmatprep.subr.mxu0 0.0
      %3533 = vmatpush1.msra.mxu0 0.0
      %3534 = vmatprep.subr.mxu0 0.0
      %3535 = vmatpush1.msra.mxu0 0.0
      %3536 = vmatprep.subr.mxu0 0.0
      %3537 = vmatpush1.msra.mxu0 0.0
      %3538 = vmatprep.subr.mxu0 0.0
      %3539 = vmatpush1.msra.mxu0 0.0
      %3540 = vmatprep.subr.mxu0 0.0
      %3541 = vmatpush1.msra.mxu0 %v3498
      %3542 = vmatprep.subr.mxu0 0.0
      %3543 = vmatpush1.msra.mxu0 %v3497
      %3544 = vmatprep.subr.mxu0 0.0
      %3545 = vmatpush1.msra.mxu0 %v3496
      %3546 = vmatprep.subr.mxu0 0.0
      %3547 = vmatpush1.msra.mxu0 %v3495
      %3548 = vmatprep.subr.mxu0 0.0
      %3549 = vmatpush2.msra.mxu0 0.0
      %3550 = vmatprep.subr.mxu0 0.0
      %3551 = vmatpush2.msra.mxu0 0.0
      %3552 = vmatprep.subr.mxu0 0.0
      %3553 = vmatpush2.msra.mxu0 0.0
      %3554 = vmatprep.subr.mxu0 0.0
      %3555 = vmatpush2.msra.mxu0 0.0
      %3556 = vmatprep.subr.mxu0 0.0
      %3557 = vmatpush2.msra.mxu0 0.0
      %3558 = vmatprep.subr.mxu0 0.0
      %3559 = vmatpush2.msra.mxu0 0.0
      %3560 = vmatprep.subr.mxu0 0.0
      %3561 = vmatpush2.msra.mxu0 0.0
      %3562 = vmatprep.subr.mxu0 0.0
      %3563 = vmatpush2.msra.mxu0 0.0
      %3564 = vmatprep.subr.mxu0 0.0
      %3565 = vmatpush2.msra.mxu0 0.0
      %3566 = vmatprep.subr.mxu0 0.0
      %3567 = vmatpush2.msra.mxu0 0.0
      %3568 = vmatprep.subr.mxu0 0.0
      %3569 = vmatpush2.msra.mxu0 0.0
      %3570 = vmatprep.subr.mxu0 0.0
      %3571 = vmatpush2.msra.mxu0 0.0
      %3572 = vmatprep.subr.mxu0 0.0
      %3573 = vmatpush2.msra.mxu0 0.0
      %3574 = vmatprep.subr.mxu0 0.0
      %3575 = vmatpush2.msra.mxu0 0.0
      %3576 = vmatprep.subr.mxu0 0.0
      %3577 = vmatpush2.msra.mxu0 0.0
      %3578 = vmatprep.subr.mxu0 0.0
      %3579 = vmatpush2.msra.mxu0 0.0
      %3580 = vmatprep.mubr.f32.mxu0 0.0
      %3581 = vmatmul.mubr.f32.gmra.mxu0 %v3508
      %v3582 = vpop.f32.mrf.mxu0
      %v3583 = vadd.f32 %v3505, %v3582
      %v3584 = vpop.f32.mrf.mxu0
      %3585 = vmatprep.mubr.f32.mxu0 0.0
      %3586 = vmatmul.mubr.f32.gmra.mxu0 %v3511
      %v3587 = vpop.f32.mrf.mxu0
      %v3588 = vadd.f32 %v3505, %v3587
      %v3589 = vpop.f32.mrf.mxu0
      %3590 = vmatprep.mubr.f32.mxu0 0.0
      %3591 = vmatmul.mubr.f32.gmra.mxu0 %v3514
      %v3592 = vpop.f32.mrf.mxu0
      %v3593 = vadd.f32 %v3505, %v3592
      %v3594 = vpop.f32.mrf.mxu0
      %3595 = vdwg.mxu0
      %v3596 = vadd.f32 %v2330, %v3583
      %v3597 = vadd.f32 %v2331, %v3588
      %v3598 = vadd.f32 %v2332, %v3593
      %s3599 = scalar_lea.vmem %s11, 1
      %v3600 = vld [vmem:[%s3599] sm:$0x1]
      %s3601 = scalar_lea.vmem %s12, 1
      %v3602 = vld [vmem:[%s3601] sm:$0x1]
      %v3603 = vsel %vm709, %v3596, 0.0
      %3604 = vadd.xlane.f32.xlu0 %v3603
      %v3605 = vpop.xlane.xlu0 %3604
      %v3606 = vsel %vm709, %v3597, 0.0
      %3607 = vadd.xlane.f32.xlu0 %v3606
      %v3608 = vpop.xlane.xlu0 %3607
      %v3609 = vsel %vm703, %v3598, 0.0
      %3610 = vadd.xlane.f32.xlu0 %v3609
      %v3611 = vpop.xlane.xlu0 %3610
      %v3612 = vmul.f32 %v3605, %v726
      %v3613 = vmul.f32 %v3608, %v726
      %v3614 = vmul.f32 %v3611, %v726
      %v3615 = vsub.f32 %v3596, %v3612
      %v3616 = vsub.f32 %v3597, %v3613
      %v3617 = vsub.f32 %v3598, %v3614
      %v3618 = vmul.f32 %v3615, %v3615
      %v3619 = vmul.f32 %v3616, %v3616
      %v3620 = vmul.f32 %v3617, %v3617
      %v3621 = vsel %vm709, %v3618, 0.0
      %3622 = vadd.xlane.f32.xlu0 %v3621
      %v3623 = vpop.xlane.xlu0 %3622
      %v3624 = vsel %vm709, %v3619, 0.0
      %3625 = vadd.xlane.f32.xlu0 %v3624
      %v3626 = vpop.xlane.xlu0 %3625
      %v3627 = vsel %vm703, %v3620, 0.0
      %3628 = vadd.xlane.f32.xlu0 %v3627
      %v3629 = vpop.xlane.xlu0 %3628
      %v3630 = vmul.f32 %v3623, %v726
      %v3631 = vmul.f32 %v3626, %v726
      %v3632 = vmul.f32 %v3629, %v726
      %v3633 = vadd.f32 %v3630, 1e-06
      %v3634 = vadd.f32 %v3631, 1e-06
      %v3635 = vadd.f32 %v3632, 1e-06
      %v3636 = vrsqrt.pop %v3633
      %v3637 = vrsqrt.pop %v3634
      %v3638 = vrsqrt.pop %v3635
      %v3639 = vmul.f32 %v3615, %v3636
      %v3640 = vmul.f32 %v3616, %v3637
      %v3641 = vmul.f32 %v3617, %v3638
      %v3643 = vlaneseq
      %v3644 = vshrl.u32 %v3643, 7
      %v3645 = vsub.s32 0, %v3644
      %v3646 = vrot.slane %v3600, %v3645
      %v3648 = vmul.f32 %v3639, %v3646
      %v3649 = vmul.f32 %v3640, %v3646
      %v3650 = vmul.f32 %v3641, %v3646
      %v3652 = vlaneseq
      %v3653 = vshrl.u32 %v3652, 7
      %v3654 = vsub.s32 0, %v3653
      %v3655 = vrot.slane %v3602, %v3654
      %v3657 = vadd.f32 %v3648, %v3655
      %v3658 = vadd.f32 %v3649, %v3655
      %v3659 = vadd.f32 %v3650, %v3655
      %s3660 = scalar_lea.vmem %s13, 32
      %v3661 = vld [vmem:[%s3660] sm:$0xff]
      %v3662 = vld [vmem:[%s3660 + $0x8] sm:$0xff]
      %v3663 = vld [vmem:[%s3660 + $0x10] sm:$0xff]
      %v3664 = vld [vmem:[%s3660 + $0x18] sm:$0xff]
      %s3665 = scalar_lea.vmem %s14, 1
      %v3666 = vld [vmem:[%s3665] sm:$0x1]
      %v3668 = vlaneseq
      %v3669 = vshrl.u32 %v3668, 7
      %v3670 = vsub.s32 0, %v3669
      %v3671 = vrot.slane %v3666, %v3670
      %v3674 = vsel %vm709, %v3657, 0
      %v3677 = vsel %vm709, %v3658, 0
      %v3680 = vsel %vm709, %v3659, 0
      %3682 = vmatprep.subr.mxu0 0.0
      %3683 = vmatpush1.msra.mxu0 0.0
      %3684 = vmatprep.subr.mxu0 0.0
      %3685 = vmatpush1.msra.mxu0 0.0
      %3686 = vmatprep.subr.mxu0 0.0
      %3687 = vmatpush1.msra.mxu0 0.0
      %3688 = vmatprep.subr.mxu0 0.0
      %3689 = vmatpush1.msra.mxu0 0.0
      %3690 = vmatprep.subr.mxu0 0.0
      %3691 = vmatpush1.msra.mxu0 0.0
      %3692 = vmatprep.subr.mxu0 0.0
      %3693 = vmatpush1.msra.mxu0 0.0
      %3694 = vmatprep.subr.mxu0 0.0
      %3695 = vmatpush1.msra.mxu0 0.0
      %3696 = vmatprep.subr.mxu0 0.0
      %3697 = vmatpush1.msra.mxu0 0.0
      %3698 = vmatprep.subr.mxu0 0.0
      %3699 = vmatpush1.msra.mxu0 0.0
      %3700 = vmatprep.subr.mxu0 0.0
      %3701 = vmatpush1.msra.mxu0 0.0
      %3702 = vmatprep.subr.mxu0 0.0
      %3703 = vmatpush1.msra.mxu0 0.0
      %3704 = vmatprep.subr.mxu0 0.0
      %3705 = vmatpush1.msra.mxu0 0.0
      %3706 = vmatprep.subr.mxu0 0.0
      %3707 = vmatpush1.msra.mxu0 %v3664
      %3708 = vmatprep.subr.mxu0 0.0
      %3709 = vmatpush1.msra.mxu0 %v3663
      %3710 = vmatprep.subr.mxu0 0.0
      %3711 = vmatpush1.msra.mxu0 %v3662
      %3712 = vmatprep.subr.mxu0 0.0
      %3713 = vmatpush1.msra.mxu0 %v3661
      %3714 = vmatprep.subr.mxu0 0.0
      %3715 = vmatpush2.msra.mxu0 0.0
      %3716 = vmatprep.subr.mxu0 0.0
      %3717 = vmatpush2.msra.mxu0 0.0
      %3718 = vmatprep.subr.mxu0 0.0
      %3719 = vmatpush2.msra.mxu0 0.0
      %3720 = vmatprep.subr.mxu0 0.0
      %3721 = vmatpush2.msra.mxu0 0.0
      %3722 = vmatprep.subr.mxu0 0.0
      %3723 = vmatpush2.msra.mxu0 0.0
      %3724 = vmatprep.subr.mxu0 0.0
      %3725 = vmatpush2.msra.mxu0 0.0
      %3726 = vmatprep.subr.mxu0 0.0
      %3727 = vmatpush2.msra.mxu0 0.0
      %3728 = vmatprep.subr.mxu0 0.0
      %3729 = vmatpush2.msra.mxu0 0.0
      %3730 = vmatprep.subr.mxu0 0.0
      %3731 = vmatpush2.msra.mxu0 0.0
      %3732 = vmatprep.subr.mxu0 0.0
      %3733 = vmatpush2.msra.mxu0 0.0
      %3734 = vmatprep.subr.mxu0 0.0
      %3735 = vmatpush2.msra.mxu0 0.0
      %3736 = vmatprep.subr.mxu0 0.0
      %3737 = vmatpush2.msra.mxu0 0.0
      %3738 = vmatprep.subr.mxu0 0.0
      %3739 = vmatpush2.msra.mxu0 0.0
      %3740 = vmatprep.subr.mxu0 0.0
      %3741 = vmatpush2.msra.mxu0 0.0
      %3742 = vmatprep.subr.mxu0 0.0
      %3743 = vmatpush2.msra.mxu0 0.0
      %3744 = vmatprep.subr.mxu0 0.0
      %3745 = vmatpush2.msra.mxu0 0.0
      %3746 = vmatprep.mubr.f32.mxu0 0.0
      %3747 = vmatmul.mubr.f32.gmra.mxu0 %v3674
      %v3748 = vpop.f32.mrf.mxu0
      %v3749 = vadd.f32 %v3671, %v3748
      %v3750 = vpop.f32.mrf.mxu0
      %3751 = vmatprep.mubr.f32.mxu0 0.0
      %3752 = vmatmul.mubr.f32.gmra.mxu0 %v3677
      %v3753 = vpop.f32.mrf.mxu0
      %v3754 = vadd.f32 %v3671, %v3753
      %v3755 = vpop.f32.mrf.mxu0
      %3756 = vmatprep.mubr.f32.mxu0 0.0
      %3757 = vmatmul.mubr.f32.gmra.mxu0 %v3680
      %v3758 = vpop.f32.mrf.mxu0
      %v3759 = vadd.f32 %v3671, %v3758
      %v3760 = vpop.f32.mrf.mxu0
      %3761 = vdwg.mxu0
      %v3762 = vmul.f32 %v3749, 0.5
      %v3763 = vmul.f32 %v3754, 0.5
      %v3764 = vmul.f32 %v3759, 0.5
      %v3765 = vmul.f32 %v3749, 0.70710677
      %v3766 = vmul.f32 %v3754, 0.70710677
      %v3767 = vmul.f32 %v3759, 0.70710677
      %v3768 = vand.u32 2147483647, %v3765
      %v3769 = vand.u32 2147483647, %v3766
      %v3770 = vand.u32 2147483647, %v3767
      %v3771 = vmul.f32 %v3768, 0.3275911
      %v3772 = vmul.f32 %v3769, 0.3275911
      %v3773 = vmul.f32 %v3770, 0.3275911
      %v3774 = vadd.f32 %v3771, 1.0
      %v3775 = vadd.f32 %v3772, 1.0
      %v3776 = vadd.f32 %v3773, 1.0
      %v3777 = vrcp.pop %v3774
      %v3778 = vrcp.pop %v3775
      %v3779 = vrcp.pop %v3776
      %v3780 = vmul.f32 %v3777, 1.0614054
      %v3781 = vmul.f32 %v3778, 1.0614054
      %v3782 = vmul.f32 %v3779, 1.0614054
      %v3783 = vadd.f32 %v3780, -1.4531521
      %v3784 = vadd.f32 %v3781, -1.4531521
      %v3785 = vadd.f32 %v3782, -1.4531521
      %v3786 = vmul.f32 %v3783, %v3777
      %v3787 = vmul.f32 %v3784, %v3778
      %v3788 = vmul.f32 %v3785, %v3779
      %v3789 = vadd.f32 %v3786, 1.4214138
      %v3790 = vadd.f32 %v3787, 1.4214138
      %v3791 = vadd.f32 %v3788, 1.4214138
      %v3792 = vmul.f32 %v3789, %v3777
      %v3793 = vmul.f32 %v3790, %v3778
      %v3794 = vmul.f32 %v3791, %v3779
      %v3795 = vadd.f32 %v3792, -0.28449672
      %v3796 = vadd.f32 %v3793, -0.28449672
      %v3797 = vadd.f32 %v3794, -0.28449672
      %v3798 = vmul.f32 %v3795, %v3777
      %v3799 = vmul.f32 %v3796, %v3778
      %v3800 = vmul.f32 %v3797, %v3779
      %v3801 = vadd.f32 %v3798, 0.2548296
      %v3802 = vadd.f32 %v3799, 0.2548296
      %v3803 = vadd.f32 %v3800, 0.2548296
      %v3804 = vmul.f32 %v3801, %v3777
      %v3805 = vmul.f32 %v3802, %v3778
      %v3806 = vmul.f32 %v3803, %v3779
      %v3807 = vsub.f32 0.0, %v3768
      %v3808 = vsub.f32 0.0, %v3769
      %v3809 = vsub.f32 0.0, %v3770
      %v3810 = vmul.f32 %v3807, %v3768
      %v3811 = vmul.f32 %v3808, %v3769
      %v3812 = vmul.f32 %v3809, %v3770
      %v3813 = vmul.f32 %v3810, 1.442695
      %v3814 = vpow.pop %v3813
      %v3815 = vmul.f32 %v3811, 1.442695
      %v3816 = vpow.pop %v3815
      %v3817 = vmul.f32 %v3812, 1.442695
      %v3818 = vpow.pop %v3817
      %v3819 = vmul.f32 %v3804, %v3814
      %v3820 = vmul.f32 %v3805, %v3816
      %v3821 = vmul.f32 %v3806, %v3818
      %v3822 = vsub.f32 1.0, %v3819
      %v3823 = vsub.f32 1.0, %v3820
      %v3824 = vsub.f32 1.0, %v3821
      %vm3825 = vcmp.ge.f32.partialorder %v3765, 0.0
      %vm3826 = vcmp.ge.f32.partialorder %v3766, 0.0
      %vm3827 = vcmp.ge.f32.partialorder %v3767, 0.0
      %v3828 = vsub.f32 0.0, %v3822
      %v3829 = vsub.f32 0.0, %v3823
      %v3830 = vsub.f32 0.0, %v3824
      %v3831 = vsel %vm3825, %v3822, %v3828
      %v3832 = vsel %vm3826, %v3823, %v3829
      %v3833 = vsel %vm3827, %v3824, %v3830
      %v3834 = vadd.f32 %v3831, 1.0
      %v3835 = vadd.f32 %v3832, 1.0
      %v3836 = vadd.f32 %v3833, 1.0
      %v3837 = vmul.f32 %v3762, %v3834
      %v3838 = vmul.f32 %v3763, %v3835
      %v3839 = vmul.f32 %v3764, %v3836
      %s3840 = scalar_lea.vmem %s15, 64
      %v3841 = vld [vmem:[%s3840] sm:$0xff]
      %v3842 = vld [vmem:[%s3840 + $0x8] sm:$0xff]
      %v3843 = vld [vmem:[%s3840 + $0x10] sm:$0xff]
      %v3844 = vld [vmem:[%s3840 + $0x18] sm:$0xff]
      %v3845 = vld [vmem:[%s3840 + $0x20] sm:$0xff]
      %v3846 = vld [vmem:[%s3840 + $0x28] sm:$0xff]
      %v3847 = vld [vmem:[%s3840 + $0x30] sm:$0xff]
      %v3848 = vld [vmem:[%s3840 + $0x38] sm:$0xff]
      %s3849 = scalar_lea.vmem %s16, 1
      %v3850 = vld [vmem:[%s3849] sm:$0x1]
      %v3852 = vlaneseq
      %v3853 = vshrl.u32 %v3852, 7
      %v3854 = vsub.s32 0, %v3853
      %v3855 = vrot.slane %v3850, %v3854
      %v3858 = vsel %vm2234, %v3837, 0
      %v3861 = vsel %vm2234, %v3838, 0
      %v3864 = vsel %vm2234, %v3839, 0
      %3866 = vmatprep.subr.mxu0 0.0
      %3867 = vmatpush1.msra.mxu0 0.0
      %3868 = vmatprep.subr.mxu0 0.0
      %3869 = vmatpush1.msra.mxu0 0.0
      %3870 = vmatprep.subr.mxu0 0.0
      %3871 = vmatpush1.msra.mxu0 0.0
      %3872 = vmatprep.subr.mxu0 0.0
      %3873 = vmatpush1.msra.mxu0 0.0
      %3874 = vmatprep.subr.mxu0 0.0
      %3875 = vmatpush1.msra.mxu0 0.0
      %3876 = vmatprep.subr.mxu0 0.0
      %3877 = vmatpush1.msra.mxu0 0.0
      %3878 = vmatprep.subr.mxu0 0.0
      %3879 = vmatpush1.msra.mxu0 0.0
      %3880 = vmatprep.subr.mxu0 0.0
      %3881 = vmatpush1.msra.mxu0 0.0
      %3882 = vmatprep.subr.mxu0 0.0
      %3883 = vmatpush1.msra.mxu0 %v3848
      %3884 = vmatprep.subr.mxu0 0.0
      %3885 = vmatpush1.msra.mxu0 %v3847
      %3886 = vmatprep.subr.mxu0 0.0
      %3887 = vmatpush1.msra.mxu0 %v3846
      %3888 = vmatprep.subr.mxu0 0.0
      %3889 = vmatpush1.msra.mxu0 %v3845
      %3890 = vmatprep.subr.mxu0 0.0
      %3891 = vmatpush1.msra.mxu0 %v3844
      %3892 = vmatprep.subr.mxu0 0.0
      %3893 = vmatpush1.msra.mxu0 %v3843
      %3894 = vmatprep.subr.mxu0 0.0
      %3895 = vmatpush1.msra.mxu0 %v3842
      %3896 = vmatprep.subr.mxu0 0.0
      %3897 = vmatpush1.msra.mxu0 %v3841
      %3898 = vmatprep.subr.mxu0 0.0
      %3899 = vmatpush2.msra.mxu0 0.0
      %3900 = vmatprep.subr.mxu0 0.0
      %3901 = vmatpush2.msra.mxu0 0.0
      %3902 = vmatprep.subr.mxu0 0.0
      %3903 = vmatpush2.msra.mxu0 0.0
      %3904 = vmatprep.subr.mxu0 0.0
      %3905 = vmatpush2.msra.mxu0 0.0
      %3906 = vmatprep.subr.mxu0 0.0
      %3907 = vmatpush2.msra.mxu0 0.0
      %3908 = vmatprep.subr.mxu0 0.0
      %3909 = vmatpush2.msra.mxu0 0.0
      %3910 = vmatprep.subr.mxu0 0.0
      %3911 = vmatpush2.msra.mxu0 0.0
      %3912 = vmatprep.subr.mxu0 0.0
      %3913 = vmatpush2.msra.mxu0 0.0
      %3914 = vmatprep.subr.mxu0 0.0
      %3915 = vmatpush2.msra.mxu0 0.0
      %3916 = vmatprep.subr.mxu0 0.0
      %3917 = vmatpush2.msra.mxu0 0.0
      %3918 = vmatprep.subr.mxu0 0.0
      %3919 = vmatpush2.msra.mxu0 0.0
      %3920 = vmatprep.subr.mxu0 0.0
      %3921 = vmatpush2.msra.mxu0 0.0
      %3922 = vmatprep.subr.mxu0 0.0
      %3923 = vmatpush2.msra.mxu0 0.0
      %3924 = vmatprep.subr.mxu0 0.0
      %3925 = vmatpush2.msra.mxu0 0.0
      %3926 = vmatprep.subr.mxu0 0.0
      %3927 = vmatpush2.msra.mxu0 0.0
      %3928 = vmatprep.subr.mxu0 0.0
      %3929 = vmatpush2.msra.mxu0 0.0
      %3930 = vmatprep.mubr.f32.mxu0 0.0
      %3931 = vmatmul.mubr.f32.gmra.mxu0 %v3858
      %v3932 = vpop.f32.mrf.mxu0
      %v3933 = vadd.f32 %v3855, %v3932
      %v3934 = vpop.f32.mrf.mxu0
      %3935 = vmatprep.mubr.f32.mxu0 0.0
      %3936 = vmatmul.mubr.f32.gmra.mxu0 %v3861
      %v3937 = vpop.f32.mrf.mxu0
      %v3938 = vadd.f32 %v3855, %v3937
      %v3939 = vpop.f32.mrf.mxu0
      %3940 = vmatprep.mubr.f32.mxu0 0.0
      %3941 = vmatmul.mubr.f32.gmra.mxu0 %v3864
      %v3942 = vpop.f32.mrf.mxu0
      %v3943 = vadd.f32 %v3855, %v3942
      %v3944 = vpop.f32.mrf.mxu0
      %3945 = vdwg.mxu0
      %v3946 = vadd.f32 %v3596, %v3933
      %v3947 = vadd.f32 %v3597, %v3938
      %v3948 = vadd.f32 %v3598, %v3943
      %3949 = vst.msk [vmem:[#allocation2] sm:$0xff] %vm709, %v3946
      %3950 = vst.msk [vmem:[#allocation2 + $0x8] sm:$0xff] %vm709, %v3947
      %3951 = vst.msk [vmem:[#allocation2 + $0x10] sm:$0x1] %vm703, %v3948
      %v3952 = vld [vmem:[#allocation2] sm:$0xff]
      %v3953 = vld [vmem:[#allocation2 + $0x8] sm:$0xff]
      %v3954 = vld [vmem:[#allocation2 + $0x10] sm:$0x1]
      %v3955 = vld [vmem:[%s17] sm:$0x1]
      %v3956 = vld [vmem:[%s18] sm:$0x1]
      %v3957 = vsel %vm709, %v3952, 0.0
      %3958 = vadd.xlane.f32.xlu0 %v3957
      %v3959 = vpop.xlane.xlu0 %3958
      %v3960 = vsel %vm709, %v3953, 0.0
      %3961 = vadd.xlane.f32.xlu0 %v3960
      %v3962 = vpop.xlane.xlu0 %3961
      %v3963 = vsel %vm703, %v3954, 0.0
      %3964 = vadd.xlane.f32.xlu0 %v3963
      %v3965 = vpop.xlane.xlu0 %3964
      %v3966 = vmul.f32 %v3959, %v726
      %v3967 = vmul.f32 %v3962, %v726
      %v3968 = vmul.f32 %v3965, %v726
      %v3969 = vsub.f32 %v3952, %v3966
      %v3970 = vsub.f32 %v3953, %v3967
      %v3971 = vsub.f32 %v3954, %v3968
      %v3972 = vmul.f32 %v3969, %v3969
      %v3973 = vmul.f32 %v3970, %v3970
      %v3974 = vmul.f32 %v3971, %v3971
      %v3975 = vsel %vm709, %v3972, 0.0
      %3976 = vadd.xlane.f32.xlu0 %v3975
      %v3977 = vpop.xlane.xlu0 %3976
      %v3978 = vsel %vm709, %v3973, 0.0
      %3979 = vadd.xlane.f32.xlu0 %v3978
      %v3980 = vpop.xlane.xlu0 %3979
      %v3981 = vsel %vm703, %v3974, 0.0
      %3982 = vadd.xlane.f32.xlu0 %v3981
      %v3983 = vpop.xlane.xlu0 %3982
      %v3984 = vmul.f32 %v3977, %v726
      %v3985 = vmul.f32 %v3980, %v726
      %v3986 = vmul.f32 %v3983, %v726
      %v3987 = vadd.f32 %v3984, 1e-06
      %v3988 = vadd.f32 %v3985, 1e-06
      %v3989 = vadd.f32 %v3986, 1e-06
      %v3990 = vrsqrt.pop %v3987
      %v3991 = vrsqrt.pop %v3988
      %v3992 = vrsqrt.pop %v3989
      %v3993 = vmul.f32 %v3969, %v3990
      %v3994 = vmul.f32 %v3970, %v3991
      %v3995 = vmul.f32 %v3971, %v3992
      %v3997 = vlaneseq
      %v3998 = vshrl.u32 %v3997, 7
      %v3999 = vsub.s32 0, %v3998
      %v4000 = vrot.slane %v3955, %v3999
      %v4002 = vmul.f32 %v3993, %v4000
      %v4003 = vmul.f32 %v3994, %v4000
      %v4004 = vmul.f32 %v3995, %v4000
      %v4006 = vlaneseq
      %v4007 = vshrl.u32 %v4006, 7
      %v4008 = vsub.s32 0, %v4007
      %v4009 = vrot.slane %v3956, %v4008
      %v4011 = vadd.f32 %v4002, %v4009
      %v4012 = vadd.f32 %v4003, %v4009
      %v4013 = vadd.f32 %v4004, %v4009
      %4014 = vst.msk [vmem:[%s602] sm:$0xff] %vm709, %v4011
      %4015 = vst.msk [vmem:[%s602 + $0x8] sm:$0xff] %vm709, %v4012
      %4016 = vst.msk [vmem:[%s602 + $0x10] sm:$0x1] %vm703, %v4013
      %p4017 = scmp.lt.s32.totalorder %s30, 1
      %s4018 = scalar_select %p4017, %s30, 1
      %s4019 = smul.addr %s4018, 3
      %s4020 = smul.addr %s4019, 8
      %s4021 = scalar_lea.vmem %s19, %s4020
      // Predicated region
      $region97: #{transformer_forward.1} parent=95 // pred_check
        %p4022 = pneg %p452
      $region98: #{transformer_forward.1} parent=95 // pred_check_branch
        %4024 = sbr.rel (%p4022) target = $region100
      $region99: #{transformer_forward.1} parent=95 // pred_region
        _
      $region100: #{transformer_forward.1} parent=95 // pred_fallthru
        _
    $region96: #{transformer_forward.1} parent=5 // pred_fallthru
      _
    %p4025 = scmp.le.s32.totalorder 2, %s25
    // Predicated region
    $region101: #{transformer_forward.1} parent=5 // pred_check
      %p4026 = pneg %p4025
    $region102: #{transformer_forward.1} parent=5 // pred_check_branch
      %4028 = sbr.rel (%p4026) target = $region104
    $region103: #{transformer_forward.1} parent=5 // pred_region
      %s4029 = ssub.s32 %s25, 2
      // Predicated region
      $region105: #{transformer_forward.1} parent=103 // pred_check
        %p4030 = pneg %p458
      $region106: #{transformer_forward.1} parent=103 // pred_check_branch
        %4032 = sbr.rel (%p4030) target = $region108
      $region107: #{transformer_forward.1} parent=103 // pred_region
        %p4033 = scmp.lt.s32.totalorder %s31, 1
        %s4034 = scalar_select %p4033, %s31, 1
        %s4035 = smul.addr %s4034, 3
        %s4036 = smul.addr %s4035, 8
        %s4037 = scalar_lea.vmem %s19, %s4036
      $region108: #{transformer_forward.1} parent=103 // pred_fallthru
        _
    $region104: #{transformer_forward.1} parent=5 // pred_fallthru
      _
  $region6: #{transformer_forward.1} parent=0 // loop_footer
    %s29 = sadd.s32 1, %s25
  $region7: #{transformer_forward.1} parent=0 // loop_footer_branch
    %24 = sbr.rel target = $region3
  $region8: #{transformer_forward.1} parent=0 // loop_exit
    _

</llo_original>
